<compile_context>
chip_gen: v7x
topology: tpu7x:2x2x1
jax: 0.10.0
libtpu: 0.0.40
codegen_flags: <defaults>
</compile_context>

<pallas_src>
import functools

import jax
import jax.numpy as jnp
from jax import lax
from jax.experimental import pallas as pl
from jax.experimental.pallas import tpu as pltpu

# External (unpacked) per-layer parameter layout, shared with the pure-JAX reference:
N_MATS = 12   # Wq_s Wk_s Wv_s Wo_s | Wa1 Wa2 | Wq_c Wk_c Wv_c Wo_c | Wm1 Wm2
N_VECS = 20   # bq_s bk_s bv_s bo_s | gA bA ba1 ba2 gB bB | bq_c bk_c bv_c bo_c | g1 b1 bm1 bm2 g2 b2

# Packed layout used by the kernel (built in the wrapper):
#   w_dd (L, 7, d, d): 0 Wo_s | 1 Wa1 | 2 Wa2 | 3 Wq_c | 4 Wo_c | 5 Wm1 | 6 Wm2
#   vecs (L, 15, d):   0 bo_s | 1 gA | 2 bA | 3 ba1 | 4 ba2 | 5 gB | 6 bB |
#                      7 bq_c | 8 bo_c | 9 g1 | 10 b1 | 11 bm1 | 12 bm2 | 13 g2 | 14 b2
N_DD = 7
N_V = 15


def _layernorm(v, gamma, beta, eps=1e-5):
    mu = jnp.mean(v, axis=-1, keepdims=True)
    var = jnp.mean((v - mu) ** 2, axis=-1, keepdims=True)
    return (v - mu) * lax.rsqrt(var + eps) * gamma + beta


@functools.lru_cache(maxsize=None)
def _erf_supported():
    """Probe whether lax.erf (exact nn.GELU) lowers on this Mosaic backend."""
    def k(x_ref, o_ref):
        o_ref[...] = lax.erf(x_ref[...])
    try:
        r = pl.pallas_call(k, out_shape=jax.ShapeDtypeStruct((8, 128), jnp.float32))(
            jnp.zeros((8, 128), jnp.float32))
        jax.block_until_ready(r)
        return True
    except Exception:
        return False


def _vmem_capacity_bytes(default=64 * 1024 * 1024):
    try:
        return int(getattr(pltpu.get_tpu_info(), "vmem_capacity_bytes", default))
    except Exception:
        return default


def _pick_row_tile(R, per_row_bytes, fixed_bytes, budget_bytes, max_rt,
                   min_row_blocks=2):
    """Largest divisor rt of R that fits the VMEM budget.  Prefers >= min_row_blocks
    row blocks so the outer 'parallel' axis can be sharded across 2 TensorCores on
    v7x and row-tile DMAs pipeline; v5e/v6e lose ~nothing from having 2 blocks."""
    divisors = [c for c in range(1, R + 1) if R % c == 0]

    def fits(rt):
        return rt <= max_rt and fixed_bytes + rt * per_row_bytes <= budget_bytes

    preferred = [c for c in divisors if R // c >= min_row_blocks and fits(c)]
    if preferred:
        return max(preferred)
    fitting = [c for c in divisors if fits(c)]
    return max(fitting) if fitting else 1


def decoder_kernel(x_ref, cross_ref, wqkv_ref, bqkv_ref, wkvc_ref, bkvc_ref,
                   wdd_ref, vec_ref, predw_ref, predb_ref,
                   out_ref, x_state, pred_acc, *,
                   n_heads, rt, seg, in_seg, d, weights_resident, use_erf_gelu):
    bf16 = jnp.bfloat16
    dh = d // n_heads
    scale = 1.0 / (dh ** 0.5)
    l = pl.program_id(1)
    wl = l if weights_resident else 0   # resident (L, ...) blocks vs streamed (1, ...)

    @pl.when(l == 0)
    def _():                            # new row tile: load x once, clear accumulator
        x_state[...] = x_ref[...]
        pred_acc[...] = jnp.zeros_like(pred_acc)

    x = x_state[...]                    # (rt*seg, d) f32, carried across layers
    cross = cross_ref[...]              # (rt*in_seg, d) bf16 (this layer's encoder output)
    vecs = vec_ref[wl]                  # (N_V, d) f32, loaded once per layer
    b_qkv = bqkv_ref[wl]                # (1, 3d) f32
    b_kv = bkvc_ref[wl]                 # (1, 2d) f32
    predb = predb_ref[wl]               # (1, seg_len) f32

    def vec(i):                         # (1, d); each bias / gamma / beta used once
        return vecs[i:i + 1, :]

    def proj(a, wi, bi):                # (rows, d) @ (d, d) + b, lazy bf16 weight load
        return jnp.dot(a.astype(bf16), wdd_ref[wl, wi],
                       preferred_element_type=jnp.float32) + vec(bi)

    if use_erf_gelu:
        gelu = lambda t: jax.nn.gelu(t, approximate=False)     # nn.GELU default (erf)
    else:
        # TODO(synk): tanh-approximate GELU fallback (tiny numerics delta vs the erf
        # default), used only if lax.erf does not lower on this backend.
        gelu = lambda t: jax.nn.gelu(t, approximate=True)

    def split_heads(t, n_seg):          # (rt*n_seg, nh*dh) -> (rt*nh, n_seg, dh)
        t = t.reshape(rt, n_seg, n_heads, dh)
        return jnp.transpose(t, (0, 2, 1, 3)).reshape(rt * n_heads, n_seg, dh)

    def attend(q, k, v):
        # q: (rt*nh, seg, dh), k/v: (rt*nh, kv, dh); single-batch-dim MXU einsums.
        # TODO(synk): if a bundle dump shows rt*nh tiny vmatmuls dominating, move the
        # score/PV contractions to the VPU (seg*kv_seg is tiny) per the perf review.
        s = jnp.einsum('bqd,bkd->bqk', q.astype(bf16), k.astype(bf16),
                       preferred_element_type=jnp.float32) * scale
        m = jnp.max(s, axis=-1, keepdims=True)
        e = jnp.exp(s - m)
        p = e * pl.reciprocal(jnp.sum(e, axis=-1, keepdims=True), approx=True)
        o = jnp.einsum('bqk,bkd->bqd', p.astype(bf16), v.astype(bf16),
                       preferred_element_type=jnp.float32)
        o = jnp.transpose(o.reshape(rt, n_heads, seg, dh), (0, 2, 1, 3))
        return o.reshape(rt * seg, d)   # == concat over heads on the feature axis

    # ---- self attention (time stage of TwoStageAttentionLayer) ----
    # TODO(synk): cross-dimension (router sender/receiver) stage of TSA omitted.
    qkv = jnp.dot(x.astype(bf16), wqkv_ref[wl],
                  preferred_element_type=jnp.float32) + b_qkv            # (rt*seg, 3d)
    a = attend(split_heads(qkv[:, :d], seg),
               split_heads(qkv[:, d:2 * d], seg),
               split_heads(qkv[:, 2 * d:], seg))
    a = proj(a, 0, 0)                                                    # Wo_s, bo_s
    xa = _layernorm(x + a, vec(1), vec(2))
    ya = jnp.dot(gelu(proj(xa, 1, 3)).astype(bf16), wdd_ref[wl, 2],
                 preferred_element_type=jnp.float32) + vec(4)            # Wa1 / Wa2 MLP
    x1 = _layernorm(xa + ya, vec(5), vec(6))

    # ---- cross attention against cross[l] + norm1 + MLP1 + norm2 ----
    qc = jnp.dot(x1.astype(bf16), wdd_ref[wl, 3],
                 preferred_element_type=jnp.float32) + vec(7)            # Wq_c, bq_c
    kv = jnp.dot(cross, wkvc_ref[wl],
                 preferred_element_type=jnp.float32) + b_kv              # (rt*in_seg, 2d)
    tmp = attend(split_heads(qc, seg),
                 split_heads(kv[:, :d], in_seg),
                 split_heads(kv[:, d:], in_seg))
    tmp = proj(tmp, 4, 8)                                                # Wo_c, bo_c
    x2 = _layernorm(x1 + tmp, vec(9), vec(10))
    y = jnp.dot(gelu(proj(x2, 5, 11)).astype(bf16), wdd_ref[wl, 6],
                preferred_element_type=jnp.float32) + vec(12)            # Wm1 / Wm2 MLP
    dec = _layernorm(x2 + y, vec(13), vec(14))

    # ---- linear_pred; final_predict accumulates over layers ----
    pred = jnp.dot(dec.astype(bf16), predw_ref[wl],
                   preferred_element_type=jnp.float32) + predb

    x_state[...] = dec                   # x for the next layer
    pred_acc[...] = pred_acc[...] + pred

    @pl.when(l == pl.num_programs(1) - 1)        # single writeback per row tile
    def _():
        out_ref[...] = pred_acc[...].astype(out_ref.dtype)


def crossformer_decoder(x, cross, mats, vecs, pred_w, pred_b, n_heads=2):
    B, ts_d, seg, d = x.shape
    L, _, _, in_seg, _ = cross.shape
    seg_len = pred_w.shape[-1]
    assert d % n_heads == 0
    R = B * ts_d
    bf16 = jnp.bfloat16

    # --- flatten (rows, segments) in the wrapper: sublane-dense 2-D blocks ---
    x_rows = x.reshape(R * seg, d).astype(jnp.float32)
    cross_rows = cross.reshape(L, R * in_seg, d).astype(bf16)

    # --- pack weights: fused QKV (self) / KV (cross); remaining (d,d) matrices and
    # (d,) vectors as per-layer slabs; bf16 MXU operands, f32 vectors ---
    w_qkv = jnp.concatenate([mats[:, 0], mats[:, 1], mats[:, 2]], axis=-1).astype(bf16)
    b_qkv = jnp.concatenate([vecs[:, 0], vecs[:, 1], vecs[:, 2]], axis=-1)[:, None, :]
    w_kvc = jnp.concatenate([mats[:, 7], mats[:, 8]], axis=-1).astype(bf16)
    b_kvc = jnp.concatenate([vecs[:, 11], vecs[:, 12]], axis=-1)[:, None, :]
    w_dd = mats[:, jnp.array([3, 4, 5, 6, 9, 10, 11])].astype(bf16)           # (L, N_DD, d, d)
    v_pack = vecs[:, jnp.array([3, 4, 5, 6, 7, 8, 9, 10,
                                13, 14, 15, 16, 17, 18, 19])].astype(jnp.float32)  # (L, N_V, d)
    pred_w_bf = pred_w.astype(bf16)                                           # (L, d, seg_len)
    pred_b_f = pred_b.reshape(L, 1, seg_len).astype(jnp.float32)

    # --- VMEM budgeting: resident weights if they fit, else per-layer streaming;
    # rt and vmem_limit_bytes derived from actual block sizes + queried capacity ---
    vmem_cap = _vmem_capacity_bytes()
    budget = (vmem_cap * 3) // 5
    wb1 = int(w_qkv.size * 2 + w_kvc.size * 2 + w_dd.size * 2 + pred_w_bf.size * 2
              + b_qkv.size * 4 + b_kvc.size * 4 + v_pack.size * 4 + pred_b_f.size * 4)
    weights_resident = 2 * wb1 <= budget // 2
    fixed_bytes = 2 * wb1 if weights_resident else 2 * ((wb1 + L - 1) // L)
    per_row_bytes = (2 * (seg * d * 4 + in_seg * d * 2 + seg * seg_len * 4)   # pipelined blocks
                     + seg * d * 4 + seg * seg_len * 4                        # carried scratch
                     + 10 * seg * d * 4)                                      # activation headroom
    rt = _pick_row_tile(R, per_row_bytes, fixed_bytes, budget,
                        max_rt=max(1, 2048 // seg))
    vmem_limit = min(max(32 << 20, fixed_bytes + rt * per_row_bytes + (16 << 20)),
                     (vmem_cap * 17) // 20)

    if weights_resident:
        # Whole-array blocks with constant index maps: fetched once, VMEM-resident
        # for the entire call; kernel picks the layer with pl.program_id(1).
        def wspec(shape):
            return pl.BlockSpec(shape, lambda r, l: (0,) * len(shape))
    else:
        # v7x / large-model fallback: stream one layer's weights per inner grid step
        # (2-deep BlockSpec pipelining along l hides the DMA behind compute).
        def wspec(shape):
            return pl.BlockSpec((1,) + tuple(shape[1:]),
                                lambda r, l: (l,) + (0,) * (len(shape) - 1))

    kernel = functools.partial(
        decoder_kernel, n_heads=n_heads, rt=rt, seg=seg, in_seg=in_seg, d=d,
        weights_resident=weights_resident, use_erf_gelu=_erf_supported())

    out = pl.pallas_call(
        kernel,
        out_shape=jax.ShapeDtypeStruct((R * seg, seg_len), jnp.float32),
        grid_spec=pltpu.PrefetchScalarGridSpec(
            num_scalar_prefetch=0,
            grid=(R // rt, L),
            in_specs=[
                pl.BlockSpec((rt * seg, d), lambda r, l: (r, 0)),
                pl.BlockSpec((None, rt * in_seg, d), lambda r, l: (l, r, 0)),
                wspec((L, d, 3 * d)),        # fused self-attn QKV weight
                wspec((L, 1, 3 * d)),        # fused self-attn QKV bias
                wspec((L, d, 2 * d)),        # fused cross-attn KV weight
                wspec((L, 1, 2 * d)),        # fused cross-attn KV bias
                wspec((L, N_DD, d, d)),      # remaining (d, d) matrices
                wspec((L, N_V, d)),          # biases / LayerNorm params
                wspec((L, d, seg_len)),      # linear_pred weight
                wspec((L, 1, seg_len)),      # linear_pred bias
            ],
            out_specs=pl.BlockSpec((rt * seg, seg_len), lambda r, l: (r, 0)),
            scratch_shapes=[
                pltpu.VMEM((rt * seg, d), jnp.float32),        # decoder state x (layer carry)
                pltpu.VMEM((rt * seg, seg_len), jnp.float32),  # final_predict accumulator
            ],
        ),
        compiler_params=pltpu.CompilerParams(
            dimension_semantics=("parallel", "arbitrary"),
            vmem_limit_bytes=int(vmem_limit)),
    )(x_rows, cross_rows, w_qkv, b_qkv, w_kvc, b_kvc, w_dd, v_pack,
      pred_w_bf, pred_b_f)

    # rearrange 'b (out_d seg_num) seg_len -> b (seg_num seg_len) out_d'
    fp = out.reshape(B, ts_d, seg, seg_len)
    return jnp.transpose(fp, (0, 2, 3, 1)).reshape(B, seg * seg_len, ts_d)


# ----------------------------- pure-JAX f32 reference -----------------------------

def _ref_mha(q_in, kv_in, Wq, bq, Wk, bk, Wv, bv, Wo, bo, n_heads):
    d = q_in.shape[-1]
    dh = d // n_heads
    q = q_in @ Wq + bq
    k = kv_in @ Wk + bk
    v = kv_in @ Wv + bv
    outs = []
    for h in range(n_heads):
        qh = q[:, h * dh:(h + 1) * dh]
        kh = k[:, h * dh:(h + 1) * dh]
        vh = v[:, h * dh:(h + 1) * dh]
        s = (qh @ kh.T) / (dh ** 0.5)
        p = jax.nn.softmax(s, axis=-1)
        outs.append(p @ vh)
    return jnp.concatenate(outs, axis=-1) @ Wo + bo


def _ref_layer(x, cross, mats, vecs, pred_w, pred_b, n_heads):
    gelu = lambda t: jax.nn.gelu(t, approximate=False)

    def vec(i):
        return vecs[i:i + 1, :]

    a = _ref_mha(x, x, mats[0], vec(0), mats[1], vec(1), mats[2], vec(2),
                 mats[3], vec(3), n_heads)
    xa = _layernorm(x + a, vec(4), vec(5))
    ya = gelu(xa @ mats[4] + vec(6)) @ mats[5] + vec(7)
    x1 = _layernorm(xa + ya, vec(8), vec(9))

    tmp = _ref_mha(x1, cross, mats[6], vec(10), mats[7], vec(11), mats[8], vec(12),
                   mats[9], vec(13), n_heads)
    x2 = _layernorm(x1 + tmp, vec(14), vec(15))
    y = gelu(x2 @ mats[10] + vec(16)) @ mats[11] + vec(17)
    dec = _layernorm(x2 + y, vec(18), vec(19))

    pred = dec @ pred_w + pred_b
    return dec, pred


def decoder_reference(x, cross, mats, vecs, pred_w, pred_b, n_heads=2):
    B, ts_d, seg, d = x.shape
    L = cross.shape[0]
    seg_len = pred_w.shape[-1]
    R = B * ts_d
    x_rows = x.reshape(R, seg, d).astype(jnp.float32)
    cross_rows = cross.reshape(L, R, -1, d).astype(jnp.float32)
    acc = jnp.zeros((R, seg, seg_len), jnp.float32)
    for r in range(R):
        xr = x_rows[r]
        for l in range(L):
            xr, pred = _ref_layer(xr, cross_rows[l, r], mats[l], vecs[l],
                                  pred_w[l], pred_b[l], n_heads)
            acc = acc.at[r].add(pred)
    fp = acc.reshape(B, ts_d, seg, seg_len)
    return jnp.transpose(fp, (0, 2, 3, 1)).reshape(B, seg * seg_len, ts_d)


if __name__ == "__main__":
    B, ts_d, seg, in_seg = 2, 4, 4, 4
    d_model, seg_len, n_heads, n_layers = 32, 8, 2, 2

    key = jax.random.PRNGKey(0)
    ks = jax.random.split(key, 6)
    x = jax.random.normal(ks[0], (B, ts_d, seg, d_model), jnp.float32)
    cross = jax.random.normal(ks[1], (n_layers, B, ts_d, in_seg, d_model), jnp.float32)

    mats = 0.08 * jax.random.normal(ks[2], (n_layers, N_MATS, d_model, d_model), jnp.float32)
    vecs = 0.05 * jax.random.normal(ks[3], (n_layers, N_VECS, d_model), jnp.float32)
    # LayerNorm gammas (indices 4, 8, 14, 18) centred at 1.0
    vecs = vecs.at[:, jnp.array([4, 8, 14, 18]), :].add(1.0)
    pred_w = 0.08 * jax.random.normal(ks[4], (n_layers, d_model, seg_len), jnp.float32)
    pred_b = 0.05 * jax.random.normal(ks[5], (n_layers, 1, seg_len), jnp.float32)

    out = crossformer_decoder(x, cross, mats, vecs, pred_w, pred_b, n_heads)
    out = jax.block_until_ready(out)

    ref = decoder_reference(x, cross, mats, vecs, pred_w, pred_b, n_heads)
    assert out.shape == (B, seg * seg_len, ts_d), out.shape
    assert bool(jnp.all(jnp.isfinite(out)))
    assert bool(jnp.allclose(out, ref, rtol=5e-2, atol=5e-2)), \
        float(jnp.max(jnp.abs(out - ref)))
    print("KERNEL_OK")
</pallas_src>

<mosaic_0001>
module attributes {stable_mosaic.version = 11 : i64} {
  func.func @k(%arg0: memref<8x128xf32, #tpu.memory_space<vmem>>, %arg1: memref<8x128xf32, #tpu.memory_space<vmem>>) attributes {dimension_semantics = [], scalar_prefetch = 0 : i64, scratch_operands = 0 : i64, tpu.core_type = #tpu.core_type<tc>} {
    %c0 = arith.constant 0 : index
    %c0_0 = arith.constant 0 : index
    %0 = vector.load %arg0[%c0, %c0_0] : memref<8x128xf32, #tpu.memory_space<vmem>>, vector<8x128xf32>
    %1 = math.erf %0 : vector<8x128xf32>
    %c0_1 = arith.constant 0 : index
    %c0_2 = arith.constant 0 : index
    %2 = vector.load %arg1[%c0_1, %c0_2] : memref<8x128xf32, #tpu.memory_space<vmem>>, vector<8x128xf32>
    tpu.vector_store %arg1[%c0_1, %c0_2], %1 {strides = array<i32>} : memref<8x128xf32, #tpu.memory_space<vmem>>, vector<8x128xf32>,
    return
  }
}

module attributes {stable_mosaic.version = 11 : i64} {
  func.func @decoder_kernel(%arg0: i32, %arg1: i32, %arg2: memref<16x32xf32, #tpu.memory_space<vmem>>, %arg3: memref<1x16x32xbf16, #tpu.memory_space<vmem>>, %arg4: memref<2x32x96xbf16, #tpu.memory_space<vmem>>, %arg5: memref<2x1x96xf32, #tpu.memory_space<vmem>>, %arg6: memref<2x32x64xbf16, #tpu.memory_space<vmem>>, %arg7: memref<2x1x64xf32, #tpu.memory_space<vmem>>, %arg8: memref<2x7x32x32xbf16, #tpu.memory_space<vmem>>, %arg9: memref<2x15x32xf32, #tpu.memory_space<vmem>>, %arg10: memref<2x32x8xbf16, #tpu.memory_space<vmem>>, %arg11: memref<2x1x8xf32, #tpu.memory_space<vmem>>, %arg12: memref<16x8xf32, #tpu.memory_space<vmem>>, %arg13: memref<16x32xf32, #tpu.memory_space<vmem>>, %arg14: memref<16x8xf32, #tpu.memory_space<vmem>>) attributes {dimension_semantics = [#tpu.dimension_semantics<parallel>, #tpu.dimension_semantics<arbitrary>], iteration_bounds = array<i64: 2, 2>, scalar_prefetch = 0 : i64, scratch_operands = 2 : i64, tpu.core_type = #tpu.core_type<tc>, window_params = [{transform_indices = @transform_0, window_bounds = array<i64: 16, 32>}, {transform_indices = @transform_1, window_bounds = array<i64: 1, 16, 32>}, {pipeline_mode = #tpu.pipeline_mode<synchronous>, transform_indices = @transform_2, window_bounds = array<i64: 2, 32, 96>}, {pipeline_mode = #tpu.pipeline_mode<synchronous>, transform_indices = @transform_3, window_bounds = array<i64: 2, 1, 96>}, {pipeline_mode = #tpu.pipeline_mode<synchronous>, transform_indices = @transform_4, window_bounds = array<i64: 2, 32, 64>}, {pipeline_mode = #tpu.pipeline_mode<synchronous>, transform_indices = @transform_5, window_bounds = array<i64: 2, 1, 64>}, {pipeline_mode = #tpu.pipeline_mode<synchronous>, transform_indices = @transform_6, window_bounds = array<i64: 2, 7, 32, 32>}, {pipeline_mode = #tpu.pipeline_mode<synchronous>, transform_indices = @transform_7, window_bounds = array<i64: 2, 15, 32>}, {pipeline_mode = #tpu.pipeline_mode<synchronous>, transform_indices = @transform_8, window_bounds = array<i64: 2, 32, 8>}, {pipeline_mode = #tpu.pipeline_mode<synchronous>, transform_indices = @transform_9, window_bounds = array<i64: 2, 1, 8>}, {transform_indices = @transform_10, window_bounds = array<i64: 16, 8>}]} {
    %c0_i32 = arith.constant 0 : i32
    %0 = arith.cmpi eq, %arg1, %c0_i32 : i32
    %1 = arith.extui %0 : i1 to i32
    %c0_i32_0 = arith.constant 0 : i32
    %2 = arith.cmpi ne, %1, %c0_i32_0 : i32
    scf.if %2 {
      %c0_88 = arith.constant 0 : index
      %c0_89 = arith.constant 0 : index
      %292 = vector.load %arg2[%c0_88, %c0_89] : memref<16x32xf32, #tpu.memory_space<vmem>>, vector<16x32xf32>
      %c0_90 = arith.constant 0 : index
      %c0_91 = arith.constant 0 : index
      %293 = vector.load %arg13[%c0_90, %c0_91] : memref<16x32xf32, #tpu.memory_space<vmem>>, vector<16x32xf32>
      tpu.vector_store %arg13[%c0_90, %c0_91], %292 {strides = array<i32>} : memref<16x32xf32, #tpu.memory_space<vmem>>, vector<16x32xf32>,
      %cst_92 = arith.constant 0.000000e+00 : f32
      %294 = vector.broadcast %cst_92 : f32 to vector<16x8xf32>
      %c0_93 = arith.constant 0 : index
      %c0_94 = arith.constant 0 : index
      %295 = vector.load %arg14[%c0_93, %c0_94] : memref<16x8xf32, #tpu.memory_space<vmem>>, vector<16x8xf32>
      tpu.vector_store %arg14[%c0_93, %c0_94], %294 {strides = array<i32>} : memref<16x8xf32, #tpu.memory_space<vmem>>, vector<16x8xf32>,
    } else {
    }
    %c0 = arith.constant 0 : index
    %c0_1 = arith.constant 0 : index
    %3 = vector.load %arg13[%c0, %c0_1] : memref<16x32xf32, #tpu.memory_space<vmem>>, vector<16x32xf32>
    %c0_2 = arith.constant 0 : index
    %c0_3 = arith.constant 0 : index
    %c0_4 = arith.constant 0 : index
    %4 = vector.load %arg3[%c0_2, %c0_3, %c0_4] : memref<1x16x32xbf16, #tpu.memory_space<vmem>>, vector<1x16x32xbf16>
    %5 = vector.shape_cast %4 : vector<1x16x32xbf16> to vector<16x32xbf16>
    %6 = arith.index_cast %arg1 : i32 to index
    %c0_5 = arith.constant 0 : index
    %c0_6 = arith.constant 0 : index
    %7 = vector.load %arg9[%6, %c0_5, %c0_6] : memref<2x15x32xf32, #tpu.memory_space<vmem>>, vector<1x15x32xf32>
    %8 = vector.shape_cast %7 : vector<1x15x32xf32> to vector<15x32xf32>
    %9 = arith.index_cast %arg1 : i32 to index
    %c0_7 = arith.constant 0 : index
    %c0_8 = arith.constant 0 : index
    %10 = vector.load %arg5[%9, %c0_7, %c0_8] : memref<2x1x96xf32, #tpu.memory_space<vmem>>, vector<1x1x96xf32>
    %11 = vector.shape_cast %10 : vector<1x1x96xf32> to vector<1x96xf32>
    %12 = arith.index_cast %arg1 : i32 to index
    %c0_9 = arith.constant 0 : index
    %c0_10 = arith.constant 0 : index
    %13 = vector.load %arg7[%12, %c0_9, %c0_10] : memref<2x1x64xf32, #tpu.memory_space<vmem>>, vector<1x1x64xf32>
    %14 = vector.shape_cast %13 : vector<1x1x64xf32> to vector<1x64xf32>
    %15 = arith.index_cast %arg1 : i32 to index
    %c0_11 = arith.constant 0 : index
    %c0_12 = arith.constant 0 : index
    %16 = vector.load %arg11[%15, %c0_11, %c0_12] : memref<2x1x8xf32, #tpu.memory_space<vmem>>, vector<1x1x8xf32>
    %17 = vector.shape_cast %16 : vector<1x1x8xf32> to vector<1x8xf32>
    %18 = arith.truncf %3 : vector<16x32xf32> to vector<16x32xbf16>
    %19 = arith.index_cast %arg1 : i32 to index
    %c0_13 = arith.constant 0 : index
    %c0_14 = arith.constant 0 : index
    %20 = vector.load %arg4[%19, %c0_13, %c0_14] : memref<2x32x96xbf16, #tpu.memory_space<vmem>>, vector<1x32x96xbf16>
    %21 = vector.shape_cast %20 : vector<1x32x96xbf16> to vector<32x96xbf16>
    %cst = arith.constant dense<0.000000e+00> : vector<16x96xf32>
    %22 = tpu.matmul %18, %21, %cst {dimension_numbers = #tpu.dot_dimension_numbers<[1], [0], [0], [1], [0, 0, 1, 1], [], []>} : vector<16x32xbf16>, vector<32x96xbf16>, vector<16x96xf32> -> vector<16x96xf32>
    %23 = vector.broadcast %11 : vector<1x96xf32> to vector<16x96xf32>
    %24 = arith.addf %22, %23 : vector<16x96xf32>
    %25 = vector.extract_strided_slice %24 {offsets = [0, 0], sizes = [16, 32], strides = [1, 1]} : vector<16x96xf32> to vector<16x32xf32>
    %26 = vector.shape_cast %25 : vector<16x32xf32> to vector<4x4x2x16xf32>
    %27 = tpu.transpose %26, [0, 2, 1, 3] : vector<4x4x2x16xf32> -> vector<4x2x4x16xf32>
    %28 = vector.shape_cast %27 : vector<4x2x4x16xf32> to vector<8x4x16xf32>
    %29 = vector.extract_strided_slice %24 {offsets = [0, 32], sizes = [16, 32], strides = [1, 1]} : vector<16x96xf32> to vector<16x32xf32>
    %30 = vector.shape_cast %29 : vector<16x32xf32> to vector<4x4x2x16xf32>
    %31 = tpu.transpose %30, [0, 2, 1, 3] : vector<4x4x2x16xf32> -> vector<4x2x4x16xf32>
    %32 = vector.shape_cast %31 : vector<4x2x4x16xf32> to vector<8x4x16xf32>
    %33 = vector.extract_strided_slice %24 {offsets = [0, 64], sizes = [16, 32], strides = [1, 1]} : vector<16x96xf32> to vector<16x32xf32>
    %34 = vector.shape_cast %33 : vector<16x32xf32> to vector<4x4x2x16xf32>
    %35 = tpu.transpose %34, [0, 2, 1, 3] : vector<4x4x2x16xf32> -> vector<4x2x4x16xf32>
    %36 = vector.shape_cast %35 : vector<4x2x4x16xf32> to vector<8x4x16xf32>
    %37 = arith.truncf %28 : vector<8x4x16xf32> to vector<8x4x16xbf16>
    %38 = arith.truncf %32 : vector<8x4x16xf32> to vector<8x4x16xbf16>
    "tpu.trace_start"() <{level = 10 : i32, message = "bqd,bkd->bqk"}> : () -> ()
    %cst_15 = arith.constant dense<0.000000e+00> : vector<8x4x4xf32>
    %39 = tpu.matmul %37, %38, %cst_15 {dimension_numbers = #tpu.dot_dimension_numbers<[2], [2], [1], [1], [0, 0, 0, 1, 1, 1], [0], [0]>} : vector<8x4x16xbf16>, vector<8x4x16xbf16>, vector<8x4x4xf32> -> vector<8x4x4xf32>
    "tpu.trace_stop"() : () -> ()
    %cst_16 = arith.constant 2.500000e-01 : f32
    %40 = vector.broadcast %cst_16 : f32 to vector<8x4x4xf32>
    %41 = arith.mulf %39, %40 : vector<8x4x4xf32>
    %cst_17 = arith.constant dense<0xFF800000> : vector<8x4xf32>
    %42 = vector.multi_reduction <maximumf>, %41, %cst_17 [2] : vector<8x4x4xf32> to vector<8x4xf32>
    %43 = vector.shape_cast %42 : vector<8x4xf32> to vector<8x4x1xf32>
    %44 = vector.broadcast %43 : vector<8x4x1xf32> to vector<8x4x4xf32>
    %45 = arith.subf %41, %44 : vector<8x4x4xf32>
    %46 = math.exp %45 : vector<8x4x4xf32>
    %cst_18 = arith.constant dense<0.000000e+00> : vector<8x4xf32>
    %47 = vector.multi_reduction <add>, %46, %cst_18 [2] : vector<8x4x4xf32> to vector<8x4xf32>
    %48 = vector.shape_cast %47 : vector<8x4xf32> to vector<8x4x1xf32>
    %49 = tpu.reciprocal %48 {approx = true} : vector<8x4x1xf32> -> vector<8x4x1xf32>
    %50 = vector.broadcast %49 : vector<8x4x1xf32> to vector<8x4x4xf32>
    %51 = arith.mulf %46, %50 : vector<8x4x4xf32>
    %52 = arith.truncf %51 : vector<8x4x4xf32> to vector<8x4x4xbf16>
    %53 = arith.truncf %36 : vector<8x4x16xf32> to vector<8x4x16xbf16>
    "tpu.trace_start"() <{level = 10 : i32, message = "bqk,bkd->bqd"}> : () -> ()
    %cst_19 = arith.constant dense<0.000000e+00> : vector<8x4x16xf32>
    %54 = tpu.matmul %52, %53, %cst_19 {dimension_numbers = #tpu.dot_dimension_numbers<[2], [1], [1], [2], [0, 0, 0, 1, 1, 2], [0], [0]>} : vector<8x4x4xbf16>, vector<8x4x16xbf16>, vector<8x4x16xf32> -> vector<8x4x16xf32>
    "tpu.trace_stop"() : () -> ()
    %55 = vector.shape_cast %54 : vector<8x4x16xf32> to vector<4x2x4x16xf32>
    %56 = tpu.transpose %55, [0, 2, 1, 3] : vector<4x2x4x16xf32> -> vector<4x4x2x16xf32>
    %57 = vector.shape_cast %56 : vector<4x4x2x16xf32> to vector<16x32xf32>
    %58 = arith.truncf %57 : vector<16x32xf32> to vector<16x32xbf16>
    %59 = arith.index_cast %arg1 : i32 to index
    %c0_20 = arith.constant 0 : index
    %c0_21 = arith.constant 0 : index
    %c0_22 = arith.constant 0 : index
    %60 = vector.load %arg8[%59, %c0_20, %c0_21, %c0_22] : memref<2x7x32x32xbf16, #tpu.memory_space<vmem>>, vector<1x1x32x32xbf16>
    %61 = vector.shape_cast %60 : vector<1x1x32x32xbf16> to vector<32x32xbf16>
    %cst_23 = arith.constant dense<0.000000e+00> : vector<16x32xf32>
    %62 = tpu.matmul %58, %61, %cst_23 {dimension_numbers = #tpu.dot_dimension_numbers<[1], [0], [0], [1], [0, 0, 1, 1], [], []>} : vector<16x32xbf16>, vector<32x32xbf16>, vector<16x32xf32> -> vector<16x32xf32>
    %63 = vector.extract_strided_slice %8 {offsets = [0, 0], sizes = [1, 32], strides = [1, 1]} : vector<15x32xf32> to vector<1x32xf32>
    %64 = vector.broadcast %63 : vector<1x32xf32> to vector<16x32xf32>
    %65 = arith.addf %62, %64 : vector<16x32xf32>
    %66 = arith.addf %3, %65 : vector<16x32xf32>
    %67 = vector.extract_strided_slice %8 {offsets = [1, 0], sizes = [1, 32], strides = [1, 1]} : vector<15x32xf32> to vector<1x32xf32>
    %68 = vector.extract_strided_slice %8 {offsets = [2, 0], sizes = [1, 32], strides = [1, 1]} : vector<15x32xf32> to vector<1x32xf32>
    %cst_24 = arith.constant dense<0.000000e+00> : vector<16xf32>
    %69 = vector.multi_reduction <add>, %66, %cst_24 [1] : vector<16x32xf32> to vector<16xf32>
    %70 = vector.shape_cast %69 : vector<16xf32> to vector<16x1xf32>
    %cst_25 = arith.constant 3.200000e+01 : f32
    %71 = vector.broadcast %cst_25 : f32 to vector<16x1xf32>
    %72 = arith.divf %70, %71 : vector<16x1xf32>
    %73 = vector.broadcast %72 : vector<16x1xf32> to vector<16x32xf32>
    %74 = arith.subf %66, %73 : vector<16x32xf32>
    %75 = arith.mulf %74, %74 : vector<16x32xf32>
    %cst_26 = arith.constant dense<0.000000e+00> : vector<16xf32>
    %76 = vector.multi_reduction <add>, %75, %cst_26 [1] : vector<16x32xf32> to vector<16xf32>
    %77 = vector.shape_cast %76 : vector<16xf32> to vector<16x1xf32>
    %cst_27 = arith.constant 3.200000e+01 : f32
    %78 = vector.broadcast %cst_27 : f32 to vector<16x1xf32>
    %79 = arith.divf %77, %78 : vector<16x1xf32>
    %80 = vector.broadcast %72 : vector<16x1xf32> to vector<16x32xf32>
    %81 = arith.subf %66, %80 : vector<16x32xf32>
    %cst_28 = arith.constant 9.99999974E-6 : f32
    %82 = vector.broadcast %cst_28 : f32 to vector<16x1xf32>
    %83 = arith.addf %79, %82 : vector<16x1xf32>
    %84 = math.rsqrt %83 : vector<16x1xf32>
    %85 = vector.broadcast %84 : vector<16x1xf32> to vector<16x32xf32>
    %86 = arith.mulf %81, %85 : vector<16x32xf32>
    %87 = vector.broadcast %67 : vector<1x32xf32> to vector<16x32xf32>
    %88 = arith.mulf %86, %87 : vector<16x32xf32>
    %89 = vector.broadcast %68 : vector<1x32xf32> to vector<16x32xf32>
    %90 = arith.addf %88, %89 : vector<16x32xf32>
    %91 = arith.truncf %90 : vector<16x32xf32> to vector<16x32xbf16>
    %92 = arith.index_cast %arg1 : i32 to index
    %c1 = arith.constant 1 : index
    %c0_29 = arith.constant 0 : index
    %c0_30 = arith.constant 0 : index
    %93 = vector.load %arg8[%92, %c1, %c0_29, %c0_30] : memref<2x7x32x32xbf16, #tpu.memory_space<vmem>>, vector<1x1x32x32xbf16>
    %94 = vector.shape_cast %93 : vector<1x1x32x32xbf16> to vector<32x32xbf16>
    %cst_31 = arith.constant dense<0.000000e+00> : vector<16x32xf32>
    %95 = tpu.matmul %91, %94, %cst_31 {dimension_numbers = #tpu.dot_dimension_numbers<[1], [0], [0], [1], [0, 0, 1, 1], [], []>} : vector<16x32xbf16>, vector<32x32xbf16>, vector<16x32xf32> -> vector<16x32xf32>
    %96 = vector.extract_strided_slice %8 {offsets = [3, 0], sizes = [1, 32], strides = [1, 1]} : vector<15x32xf32> to vector<1x32xf32>
    %97 = vector.broadcast %96 : vector<1x32xf32> to vector<16x32xf32>
    %98 = arith.addf %95, %97 : vector<16x32xf32>
    %99 = arith.mulf %98, %98 : vector<16x32xf32>
    %100 = arith.mulf %98, %99 : vector<16x32xf32>
    %cst_32 = arith.constant 4.471500e-02 : f32
    %101 = vector.broadcast %cst_32 : f32 to vector<16x32xf32>
    %102 = arith.mulf %101, %100 : vector<16x32xf32>
    %103 = arith.addf %98, %102 : vector<16x32xf32>
    %cst_33 = arith.constant 0.797884583 : f32
    %104 = vector.broadcast %cst_33 : f32 to vector<16x32xf32>
    %105 = arith.mulf %104, %103 : vector<16x32xf32>
    %106 = math.tanh %105 : vector<16x32xf32>
    %cst_34 = arith.constant 1.000000e+00 : f32
    %107 = vector.broadcast %cst_34 : f32 to vector<16x32xf32>
    %108 = arith.addf %107, %106 : vector<16x32xf32>
    %cst_35 = arith.constant 5.000000e-01 : f32
    %109 = vector.broadcast %cst_35 : f32 to vector<16x32xf32>
    %110 = arith.mulf %109, %108 : vector<16x32xf32>
    %111 = arith.mulf %98, %110 : vector<16x32xf32>
    %112 = arith.truncf %111 : vector<16x32xf32> to vector<16x32xbf16>
    %113 = arith.index_cast %arg1 : i32 to index
    %c2 = arith.constant 2 : index
    %c0_36 = arith.constant 0 : index
    %c0_37 = arith.constant 0 : index
    %114 = vector.load %arg8[%113, %c2, %c0_36, %c0_37] : memref<2x7x32x32xbf16, #tpu.memory_space<vmem>>, vector<1x1x32x32xbf16>
    %115 = vector.shape_cast %114 : vector<1x1x32x32xbf16> to vector<32x32xbf16>
    %cst_38 = arith.constant dense<0.000000e+00> : vector<16x32xf32>
    %116 = tpu.matmul %112, %115, %cst_38 {dimension_numbers = #tpu.dot_dimension_numbers<[1], [0], [0], [1], [0, 0, 1, 1], [], []>} : vector<16x32xbf16>, vector<32x32xbf16>, vector<16x32xf32> -> vector<16x32xf32>
    %117 = vector.extract_strided_slice %8 {offsets = [4, 0], sizes = [1, 32], strides = [1, 1]} : vector<15x32xf32> to vector<1x32xf32>
    %118 = vector.broadcast %117 : vector<1x32xf32> to vector<16x32xf32>
    %119 = arith.addf %116, %118 : vector<16x32xf32>
    %120 = arith.addf %90, %119 : vector<16x32xf32>
    %121 = vector.extract_strided_slice %8 {offsets = [5, 0], sizes = [1, 32], strides = [1, 1]} : vector<15x32xf32> to vector<1x32xf32>
    %122 = vector.extract_strided_slice %8 {offsets = [6, 0], sizes = [1, 32], strides = [1, 1]} : vector<15x32xf32> to vector<1x32xf32>
    %cst_39 = arith.constant dense<0.000000e+00> : vector<16xf32>
    %123 = vector.multi_reduction <add>, %120, %cst_39 [1] : vector<16x32xf32> to vector<16xf32>
    %124 = vector.shape_cast %123 : vector<16xf32> to vector<16x1xf32>
    %cst_40 = arith.constant 3.200000e+01 : f32
    %125 = vector.broadcast %cst_40 : f32 to vector<16x1xf32>
    %126 = arith.divf %124, %125 : vector<16x1xf32>
    %127 = vector.broadcast %126 : vector<16x1xf32> to vector<16x32xf32>
    %128 = arith.subf %120, %127 : vector<16x32xf32>
    %129 = arith.mulf %128, %128 : vector<16x32xf32>
    %cst_41 = arith.constant dense<0.000000e+00> : vector<16xf32>
    %130 = vector.multi_reduction <add>, %129, %cst_41 [1] : vector<16x32xf32> to vector<16xf32>
    %131 = vector.shape_cast %130 : vector<16xf32> to vector<16x1xf32>
    %cst_42 = arith.constant 3.200000e+01 : f32
    %132 = vector.broadcast %cst_42 : f32 to vector<16x1xf32>
    %133 = arith.divf %131, %132 : vector<16x1xf32>
    %134 = vector.broadcast %126 : vector<16x1xf32> to vector<16x32xf32>
    %135 = arith.subf %120, %134 : vector<16x32xf32>
    %cst_43 = arith.constant 9.99999974E-6 : f32
    %136 = vector.broadcast %cst_43 : f32 to vector<16x1xf32>
    %137 = arith.addf %133, %136 : vector<16x1xf32>
    %138 = math.rsqrt %137 : vector<16x1xf32>
    %139 = vector.broadcast %138 : vector<16x1xf32> to vector<16x32xf32>
    %140 = arith.mulf %135, %139 : vector<16x32xf32>
    %141 = vector.broadcast %121 : vector<1x32xf32> to vector<16x32xf32>
    %142 = arith.mulf %140, %141 : vector<16x32xf32>
    %143 = vector.broadcast %122 : vector<1x32xf32> to vector<16x32xf32>
    %144 = arith.addf %142, %143 : vector<16x32xf32>
    %145 = arith.truncf %144 : vector<16x32xf32> to vector<16x32xbf16>
    %146 = arith.index_cast %arg1 : i32 to index
    %c3 = arith.constant 3 : index
    %c0_44 = arith.constant 0 : index
    %c0_45 = arith.constant 0 : index
    %147 = vector.load %arg8[%146, %c3, %c0_44, %c0_45] : memref<2x7x32x32xbf16, #tpu.memory_space<vmem>>, vector<1x1x32x32xbf16>
    %148 = vector.shape_cast %147 : vector<1x1x32x32xbf16> to vector<32x32xbf16>
    %cst_46 = arith.constant dense<0.000000e+00> : vector<16x32xf32>
    %149 = tpu.matmul %145, %148, %cst_46 {dimension_numbers = #tpu.dot_dimension_numbers<[1], [0], [0], [1], [0, 0, 1, 1], [], []>} : vector<16x32xbf16>, vector<32x32xbf16>, vector<16x32xf32> -> vector<16x32xf32>
    %150 = vector.extract_strided_slice %8 {offsets = [7, 0], sizes = [1, 32], strides = [1, 1]} : vector<15x32xf32> to vector<1x32xf32>
    %151 = vector.broadcast %150 : vector<1x32xf32> to vector<16x32xf32>
    %152 = arith.addf %149, %151 : vector<16x32xf32>
    %153 = arith.index_cast %arg1 : i32 to index
    %c0_47 = arith.constant 0 : index
    %c0_48 = arith.constant 0 : index
    %154 = vector.load %arg6[%153, %c0_47, %c0_48] : memref<2x32x64xbf16, #tpu.memory_space<vmem>>, vector<1x32x64xbf16>
    %155 = vector.shape_cast %154 : vector<1x32x64xbf16> to vector<32x64xbf16>
    %cst_49 = arith.constant dense<0.000000e+00> : vector<16x64xf32>
    %156 = tpu.matmul %5, %155, %cst_49 {dimension_numbers = #tpu.dot_dimension_numbers<[1], [0], [0], [1], [0, 0, 1, 1], [], []>} : vector<16x32xbf16>, vector<32x64xbf16>, vector<16x64xf32> -> vector<16x64xf32>
    %157 = vector.broadcast %14 : vector<1x64xf32> to vector<16x64xf32>
    %158 = arith.addf %156, %157 : vector<16x64xf32>
    %159 = vector.shape_cast %152 : vector<16x32xf32> to vector<4x4x2x16xf32>
    %160 = tpu.transpose %159, [0, 2, 1, 3] : vector<4x4x2x16xf32> -> vector<4x2x4x16xf32>
    %161 = vector.shape_cast %160 : vector<4x2x4x16xf32> to vector<8x4x16xf32>
    %162 = vector.extract_strided_slice %158 {offsets = [0, 0], sizes = [16, 32], strides = [1, 1]} : vector<16x64xf32> to vector<16x32xf32>
    %163 = vector.shape_cast %162 : vector<16x32xf32> to vector<4x4x2x16xf32>
    %164 = tpu.transpose %163, [0, 2, 1, 3] : vector<4x4x2x16xf32> -> vector<4x2x4x16xf32>
    %165 = vector.shape_cast %164 : vector<4x2x4x16xf32> to vector<8x4x16xf32>
    %166 = vector.extract_strided_slice %158 {offsets = [0, 32], sizes = [16, 32], strides = [1, 1]} : vector<16x64xf32> to vector<16x32xf32>
    %167 = vector.shape_cast %166 : vector<16x32xf32> to vector<4x4x2x16xf32>
    %168 = tpu.transpose %167, [0, 2, 1, 3] : vector<4x4x2x16xf32> -> vector<4x2x4x16xf32>
    %169 = vector.shape_cast %168 : vector<4x2x4x16xf32> to vector<8x4x16xf32>
    %170 = arith.truncf %161 : vector<8x4x16xf32> to vector<8x4x16xbf16>
    %171 = arith.truncf %165 : vector<8x4x16xf32> to vector<8x4x16xbf16>
    "tpu.trace_start"() <{level = 10 : i32, message = "bqd,bkd->bqk"}> : () -> ()
    %cst_50 = arith.constant dense<0.000000e+00> : vector<8x4x4xf32>
    %172 = tpu.matmul %170, %171, %cst_50 {dimension_numbers = #tpu.dot_dimension_numbers<[2], [2], [1], [1], [0, 0, 0, 1, 1, 1], [0], [0]>} : vector<8x4x16xbf16>, vector<8x4x16xbf16>, vector<8x4x4xf32> -> vector<8x4x4xf32>
    "tpu.trace_stop"() : () -> ()
    %cst_51 = arith.constant 2.500000e-01 : f32
    %173 = vector.broadcast %cst_51 : f32 to vector<8x4x4xf32>
    %174 = arith.mulf %172, %173 : vector<8x4x4xf32>
    %cst_52 = arith.constant dense<0xFF800000> : vector<8x4xf32>
    %175 = vector.multi_reduction <maximumf>, %174, %cst_52 [2] : vector<8x4x4xf32> to vector<8x4xf32>
    %176 = vector.shape_cast %175 : vector<8x4xf32> to vector<8x4x1xf32>
    %177 = vector.broadcast %176 : vector<8x4x1xf32> to vector<8x4x4xf32>
    %178 = arith.subf %174, %177 : vector<8x4x4xf32>
    %179 = math.exp %178 : vector<8x4x4xf32>
    %cst_53 = arith.constant dense<0.000000e+00> : vector<8x4xf32>
    %180 = vector.multi_reduction <add>, %179, %cst_53 [2] : vector<8x4x4xf32> to vector<8x4xf32>
    %181 = vector.shape_cast %180 : vector<8x4xf32> to vector<8x4x1xf32>
    %182 = tpu.reciprocal %181 {approx = true} : vector<8x4x1xf32> -> vector<8x4x1xf32>
    %183 = vector.broadcast %182 : vector<8x4x1xf32> to vector<8x4x4xf32>
    %184 = arith.mulf %179, %183 : vector<8x4x4xf32>
    %185 = arith.truncf %184 : vector<8x4x4xf32> to vector<8x4x4xbf16>
    %186 = arith.truncf %169 : vector<8x4x16xf32> to vector<8x4x16xbf16>
    "tpu.trace_start"() <{level = 10 : i32, message = "bqk,bkd->bqd"}> : () -> ()
    %cst_54 = arith.constant dense<0.000000e+00> : vector<8x4x16xf32>
    %187 = tpu.matmul %185, %186, %cst_54 {dimension_numbers = #tpu.dot_dimension_numbers<[2], [1], [1], [2], [0, 0, 0, 1, 1, 2], [0], [0]>} : vector<8x4x4xbf16>, vector<8x4x16xbf16>, vector<8x4x16xf32> -> vector<8x4x16xf32>
    "tpu.trace_stop"() : () -> ()
    %188 = vector.shape_cast %187 : vector<8x4x16xf32> to vector<4x2x4x16xf32>
    %189 = tpu.transpose %188, [0, 2, 1, 3] : vector<4x2x4x16xf32> -> vector<4x4x2x16xf32>
    %190 = vector.shape_cast %189 : vector<4x4x2x16xf32> to vector<16x32xf32>
    %191 = arith.truncf %190 : vector<16x32xf32> to vector<16x32xbf16>
    %192 = arith.index_cast %arg1 : i32 to index
    %c4 = arith.constant 4 : index
    %c0_55 = arith.constant 0 : index
    %c0_56 = arith.constant 0 : index
    %193 = vector.load %arg8[%192, %c4, %c0_55, %c0_56] : memref<2x7x32x32xbf16, #tpu.memory_space<vmem>>, vector<1x1x32x32xbf16>
    %194 = vector.shape_cast %193 : vector<1x1x32x32xbf16> to vector<32x32xbf16>
    %cst_57 = arith.constant dense<0.000000e+00> : vector<16x32xf32>
    %195 = tpu.matmul %191, %194, %cst_57 {dimension_numbers = #tpu.dot_dimension_numbers<[1], [0], [0], [1], [0, 0, 1, 1], [], []>} : vector<16x32xbf16>, vector<32x32xbf16>, vector<16x32xf32> -> vector<16x32xf32>
    %196 = vector.extract_strided_slice %8 {offsets = [8, 0], sizes = [1, 32], strides = [1, 1]} : vector<15x32xf32> to vector<1x32xf32>
    %197 = vector.broadcast %196 : vector<1x32xf32> to vector<16x32xf32>
    %198 = arith.addf %195, %197 : vector<16x32xf32>
    %199 = arith.addf %144, %198 : vector<16x32xf32>
    %200 = vector.extract_strided_slice %8 {offsets = [9, 0], sizes = [1, 32], strides = [1, 1]} : vector<15x32xf32> to vector<1x32xf32>
    %201 = vector.extract_strided_slice %8 {offsets = [10, 0], sizes = [1, 32], strides = [1, 1]} : vector<15x32xf32> to vector<1x32xf32>
    %cst_58 = arith.constant dense<0.000000e+00> : vector<16xf32>
    %202 = vector.multi_reduction <add>, %199, %cst_58 [1] : vector<16x32xf32> to vector<16xf32>
    %203 = vector.shape_cast %202 : vector<16xf32> to vector<16x1xf32>
    %cst_59 = arith.constant 3.200000e+01 : f32
    %204 = vector.broadcast %cst_59 : f32 to vector<16x1xf32>
    %205 = arith.divf %203, %204 : vector<16x1xf32>
    %206 = vector.broadcast %205 : vector<16x1xf32> to vector<16x32xf32>
    %207 = arith.subf %199, %206 : vector<16x32xf32>
    %208 = arith.mulf %207, %207 : vector<16x32xf32>
    %cst_60 = arith.constant dense<0.000000e+00> : vector<16xf32>
    %209 = vector.multi_reduction <add>, %208, %cst_60 [1] : vector<16x32xf32> to vector<16xf32>
    %210 = vector.shape_cast %209 : vector<16xf32> to vector<16x1xf32>
    %cst_61 = arith.constant 3.200000e+01 : f32
    %211 = vector.broadcast %cst_61 : f32 to vector<16x1xf32>
    %212 = arith.divf %210, %211 : vector<16x1xf32>
    %213 = vector.broadcast %205 : vector<16x1xf32> to vector<16x32xf32>
    %214 = arith.subf %199, %213 : vector<16x32xf32>
    %cst_62 = arith.constant 9.99999974E-6 : f32
    %215 = vector.broadcast %cst_62 : f32 to vector<16x1xf32>
    %216 = arith.addf %212, %215 : vector<16x1xf32>
    %217 = math.rsqrt %216 : vector<16x1xf32>
    %218 = vector.broadcast %217 : vector<16x1xf32> to vector<16x32xf32>
    %219 = arith.mulf %214, %218 : vector<16x32xf32>
    %220 = vector.broadcast %200 : vector<1x32xf32> to vector<16x32xf32>
    %221 = arith.mulf %219, %220 : vector<16x32xf32>
    %222 = vector.broadcast %201 : vector<1x32xf32> to vector<16x32xf32>
    %223 = arith.addf %221, %222 : vector<16x32xf32>
    %224 = arith.truncf %223 : vector<16x32xf32> to vector<16x32xbf16>
    %225 = arith.index_cast %arg1 : i32 to index
    %c5 = arith.constant 5 : index
    %c0_63 = arith.constant 0 : index
    %c0_64 = arith.constant 0 : index
    %226 = vector.load %arg8[%225, %c5, %c0_63, %c0_64] : memref<2x7x32x32xbf16, #tpu.memory_space<vmem>>, vector<1x1x32x32xbf16>
    %227 = vector.shape_cast %226 : vector<1x1x32x32xbf16> to vector<32x32xbf16>
    %cst_65 = arith.constant dense<0.000000e+00> : vector<16x32xf32>
    %228 = tpu.matmul %224, %227, %cst_65 {dimension_numbers = #tpu.dot_dimension_numbers<[1], [0], [0], [1], [0, 0, 1, 1], [], []>} : vector<16x32xbf16>, vector<32x32xbf16>, vector<16x32xf32> -> vector<16x32xf32>
    %229 = vector.extract_strided_slice %8 {offsets = [11, 0], sizes = [1, 32], strides = [1, 1]} : vector<15x32xf32> to vector<1x32xf32>
    %230 = vector.broadcast %229 : vector<1x32xf32> to vector<16x32xf32>
    %231 = arith.addf %228, %230 : vector<16x32xf32>
    %232 = arith.mulf %231, %231 : vector<16x32xf32>
    %233 = arith.mulf %231, %232 : vector<16x32xf32>
    %cst_66 = arith.constant 4.471500e-02 : f32
    %234 = vector.broadcast %cst_66 : f32 to vector<16x32xf32>
    %235 = arith.mulf %234, %233 : vector<16x32xf32>
    %236 = arith.addf %231, %235 : vector<16x32xf32>
    %cst_67 = arith.constant 0.797884583 : f32
    %237 = vector.broadcast %cst_67 : f32 to vector<16x32xf32>
    %238 = arith.mulf %237, %236 : vector<16x32xf32>
    %239 = math.tanh %238 : vector<16x32xf32>
    %cst_68 = arith.constant 1.000000e+00 : f32
    %240 = vector.broadcast %cst_68 : f32 to vector<16x32xf32>
    %241 = arith.addf %240, %239 : vector<16x32xf32>
    %cst_69 = arith.constant 5.000000e-01 : f32
    %242 = vector.broadcast %cst_69 : f32 to vector<16x32xf32>
    %243 = arith.mulf %242, %241 : vector<16x32xf32>
    %244 = arith.mulf %231, %243 : vector<16x32xf32>
    %245 = arith.truncf %244 : vector<16x32xf32> to vector<16x32xbf16>
    %246 = arith.index_cast %arg1 : i32 to index
    %c6 = arith.constant 6 : index
    %c0_70 = arith.constant 0 : index
    %c0_71 = arith.constant 0 : index
    %247 = vector.load %arg8[%246, %c6, %c0_70, %c0_71] : memref<2x7x32x32xbf16, #tpu.memory_space<vmem>>, vector<1x1x32x32xbf16>
    %248 = vector.shape_cast %247 : vector<1x1x32x32xbf16> to vector<32x32xbf16>
    %cst_72 = arith.constant dense<0.000000e+00> : vector<16x32xf32>
    %249 = tpu.matmul %245, %248, %cst_72 {dimension_numbers = #tpu.dot_dimension_numbers<[1], [0], [0], [1], [0, 0, 1, 1], [], []>} : vector<16x32xbf16>, vector<32x32xbf16>, vector<16x32xf32> -> vector<16x32xf32>
    %250 = vector.extract_strided_slice %8 {offsets = [12, 0], sizes = [1, 32], strides = [1, 1]} : vector<15x32xf32> to vector<1x32xf32>
    %251 = vector.broadcast %250 : vector<1x32xf32> to vector<16x32xf32>
    %252 = arith.addf %249, %251 : vector<16x32xf32>
    %253 = arith.addf %223, %252 : vector<16x32xf32>
    %254 = vector.extract_strided_slice %8 {offsets = [13, 0], sizes = [1, 32], strides = [1, 1]} : vector<15x32xf32> to vector<1x32xf32>
    %255 = vector.extract_strided_slice %8 {offsets = [14, 0], sizes = [1, 32], strides = [1, 1]} : vector<15x32xf32> to vector<1x32xf32>
    %cst_73 = arith.constant dense<0.000000e+00> : vector<16xf32>
    %256 = vector.multi_reduction <add>, %253, %cst_73 [1] : vector<16x32xf32> to vector<16xf32>
    %257 = vector.shape_cast %256 : vector<16xf32> to vector<16x1xf32>
    %cst_74 = arith.constant 3.200000e+01 : f32
    %258 = vector.broadcast %cst_74 : f32 to vector<16x1xf32>
    %259 = arith.divf %257, %258 : vector<16x1xf32>
    %260 = vector.broadcast %259 : vector<16x1xf32> to vector<16x32xf32>
    %261 = arith.subf %253, %260 : vector<16x32xf32>
    %262 = arith.mulf %261, %261 : vector<16x32xf32>
    %cst_75 = arith.constant dense<0.000000e+00> : vector<16xf32>
    %263 = vector.multi_reduction <add>, %262, %cst_75 [1] : vector<16x32xf32> to vector<16xf32>
    %264 = vector.shape_cast %263 : vector<16xf32> to vector<16x1xf32>
    %cst_76 = arith.constant 3.200000e+01 : f32
    %265 = vector.broadcast %cst_76 : f32 to vector<16x1xf32>
    %266 = arith.divf %264, %265 : vector<16x1xf32>
    %267 = vector.broadcast %259 : vector<16x1xf32> to vector<16x32xf32>
    %268 = arith.subf %253, %267 : vector<16x32xf32>
    %cst_77 = arith.constant 9.99999974E-6 : f32
    %269 = vector.broadcast %cst_77 : f32 to vector<16x1xf32>
    %270 = arith.addf %266, %269 : vector<16x1xf32>
    %271 = math.rsqrt %270 : vector<16x1xf32>
    %272 = vector.broadcast %271 : vector<16x1xf32> to vector<16x32xf32>
    %273 = arith.mulf %268, %272 : vector<16x32xf32>
    %274 = vector.broadcast %254 : vector<1x32xf32> to vector<16x32xf32>
    %275 = arith.mulf %273, %274 : vector<16x32xf32>
    %276 = vector.broadcast %255 : vector<1x32xf32> to vector<16x32xf32>
    %277 = arith.addf %275, %276 : vector<16x32xf32>
    %278 = arith.truncf %277 : vector<16x32xf32> to vector<16x32xbf16>
    %279 = arith.index_cast %arg1 : i32 to index
    %c0_78 = arith.constant 0 : index
    %c0_79 = arith.constant 0 : index
    %280 = vector.load %arg10[%279, %c0_78, %c0_79] : memref<2x32x8xbf16, #tpu.memory_space<vmem>>, vector<1x32x8xbf16>
    %281 = vector.shape_cast %280 : vector<1x32x8xbf16> to vector<32x8xbf16>
    %cst_80 = arith.constant dense<0.000000e+00> : vector<16x8xf32>
    %282 = tpu.matmul %278, %281, %cst_80 {dimension_numbers = #tpu.dot_dimension_numbers<[1], [0], [0], [1], [0, 0, 1, 1], [], []>} : vector<16x32xbf16>, vector<32x8xbf16>, vector<16x8xf32> -> vector<16x8xf32>
    %283 = vector.broadcast %17 : vector<1x8xf32> to vector<16x8xf32>
    %284 = arith.addf %282, %283 : vector<16x8xf32>
    %c0_81 = arith.constant 0 : index
    %c0_82 = arith.constant 0 : index
    %285 = vector.load %arg13[%c0_81, %c0_82] : memref<16x32xf32, #tpu.memory_space<vmem>>, vector<16x32xf32>
    tpu.vector_store %arg13[%c0_81, %c0_82], %277 {strides = array<i32>} : memref<16x32xf32, #tpu.memory_space<vmem>>, vector<16x32xf32>,
    %c0_83 = arith.constant 0 : index
    %c0_84 = arith.constant 0 : index
    %286 = vector.load %arg14[%c0_83, %c0_84] : memref<16x8xf32, #tpu.memory_space<vmem>>, vector<16x8xf32>
    %287 = arith.addf %286, %284 : vector<16x8xf32>
    %c0_85 = arith.constant 0 : index
    %c0_86 = arith.constant 0 : index
    %288 = vector.load %arg14[%c0_85, %c0_86] : memref<16x8xf32, #tpu.memory_space<vmem>>, vector<16x8xf32>
    tpu.vector_store %arg14[%c0_85, %c0_86], %287 {strides = array<i32>} : memref<16x8xf32, #tpu.memory_space<vmem>>, vector<16x8xf32>,
    %c1_i32 = arith.constant 1 : i32
    %289 = arith.cmpi eq, %arg1, %c1_i32 : i32
    %290 = arith.extui %289 : i1 to i32
    %c0_i32_87 = arith.constant 0 : i32
    %291 = arith.cmpi ne, %290, %c0_i32_87 : i32
    scf.if %291 {
      %c0_88 = arith.constant 0 : index
      %c0_89 = arith.constant 0 : index
      %292 = vector.load %arg14[%c0_88, %c0_89] : memref<16x8xf32, #tpu.memory_space<vmem>>, vector<16x8xf32>
      %c0_90 = arith.constant 0 : index
      %c0_91 = arith.constant 0 : index
      %293 = vector.load %arg12[%c0_90, %c0_91] : memref<16x8xf32, #tpu.memory_space<vmem>>, vector<16x8xf32>
      tpu.vector_store %arg12[%c0_90, %c0_91], %292 {strides = array<i32>} : memref<16x8xf32, #tpu.memory_space<vmem>>, vector<16x8xf32>,
    } else {
    }
    return
  }
  func.func @transform_0(%arg0: i32, %arg1: i32) -> (i32, i32) {
    %c0_i32 = arith.constant 0 : i32
    %c0_i32_0 = arith.constant 0 : i32
    return %arg0, %c0_i32 : i32, i32
  }
  func.func @transform_1(%arg0: i32, %arg1: i32) -> (i32, i32, i32) {
    %c0_i32 = arith.constant 0 : i32
    %c0_i32_0 = arith.constant 0 : i32
    return %arg1, %arg0, %c0_i32 : i32, i32, i32
  }
  func.func @transform_2(%arg0: i32, %arg1: i32) -> (i32, i32, i32) {
    %c0_i32 = arith.constant 0 : i32
    %c0_i32_0 = arith.constant 0 : i32
    %c0_i32_1 = arith.constant 0 : i32
    %c0_i32_2 = arith.constant 0 : i32
    return %c0_i32, %c0_i32_0, %c0_i32_1 : i32, i32, i32
  }
  func.func @transform_3(%arg0: i32, %arg1: i32) -> (i32, i32, i32) {
    %c0_i32 = arith.constant 0 : i32
    %c0_i32_0 = arith.constant 0 : i32
    %c0_i32_1 = arith.constant 0 : i32
    %c0_i32_2 = arith.constant 0 : i32
    return %c0_i32, %c0_i32_0, %c0_i32_1 : i32, i32, i32
  }
  func.func @transform_4(%arg0: i32, %arg1: i32) -> (i32, i32, i32) {
    %c0_i32 = arith.constant 0 : i32
    %c0_i32_0 = arith.constant 0 : i32
    %c0_i32_1 = arith.constant 0 : i32
    %c0_i32_2 = arith.constant 0 : i32
    return %c0_i32, %c0_i32_0, %c0_i32_1 : i32, i32, i32
  }
  func.func @transform_5(%arg0: i32, %arg1: i32) -> (i32, i32, i32) {
    %c0_i32 = arith.constant 0 : i32
    %c0_i32_0 = arith.constant 0 : i32
    %c0_i32_1 = arith.constant 0 : i32
    %c0_i32_2 = arith.constant 0 : i32
    return %c0_i32, %c0_i32_0, %c0_i32_1 : i32, i32, i32
  }
  func.func @transform_6(%arg0: i32, %arg1: i32) -> (i32, i32, i32, i32) {
    %c0_i32 = arith.constant 0 : i32
    %c0_i32_0 = arith.constant 0 : i32
    %c0_i32_1 = arith.constant 0 : i32
    %c0_i32_2 = arith.constant 0 : i32
    %c0_i32_3 = arith.constant 0 : i32
    return %c0_i32, %c0_i32_0, %c0_i32_1, %c0_i32_2 : i32, i32, i32, i32
  }
  func.func @transform_7(%arg0: i32, %arg1: i32) -> (i32, i32, i32) {
    %c0_i32 = arith.constant 0 : i32
    %c0_i32_0 = arith.constant 0 : i32
    %c0_i32_1 = arith.constant 0 : i32
    %c0_i32_2 = arith.constant 0 : i32
    return %c0_i32, %c0_i32_0, %c0_i32_1 : i32, i32, i32
  }
  func.func @transform_8(%arg0: i32, %arg1: i32) -> (i32, i32, i32) {
    %c0_i32 = arith.constant 0 : i32
    %c0_i32_0 = arith.constant 0 : i32
    %c0_i32_1 = arith.constant 0 : i32
    %c0_i32_2 = arith.constant 0 : i32
    return %c0_i32, %c0_i32_0, %c0_i32_1 : i32, i32, i32
  }
  func.func @transform_9(%arg0: i32, %arg1: i32) -> (i32, i32, i32) {
    %c0_i32 = arith.constant 0 : i32
    %c0_i32_0 = arith.constant 0 : i32
    %c0_i32_1 = arith.constant 0 : i32
    %c0_i32_2 = arith.constant 0 : i32
    return %c0_i32, %c0_i32_0, %c0_i32_1 : i32, i32, i32
  }
  func.func @transform_10(%arg0: i32, %arg1: i32) -> (i32, i32) {
    %c0_i32 = arith.constant 0 : i32
    %c0_i32_0 = arith.constant 0 : i32
    return %arg0, %c0_i32 : i32, i32
  }
}

</mosaic_0001>

<llo_original>
// kernel: tpu_custom_call.1
$region0: #{tpu_custom_call.1}
  #allocation0 [shape = 'u32[]', space=smem, size = 0x4, offset = 0x4, fixed_abs, tag = 'smem constant byte address 0x4 - core index']
  #allocation1 [shape = 'u32[144,128]{1,0:T(1,128)}', space=vmem, size = 0x12000, scoped, tag = 'internal scratch']
  %s0 = inlined_call_operand.hbm [shape: f32[8,128], index: 0, kind: input, shape index: {}]
  %s1 = inlined_call_operand.hbm [shape: f32[8,128], index: 1, kind: output, shape index: {}]
  %s2 = sld [smem:[#allocation0]]
  $region18: #{tpu_custom_call.1} parent=0
    _
  %s4 = ssub.s32 1, %s2
  %s5 = scalar_select 0, %s4, %s2
  $region1: #{tpu_custom_call.1} parent=0
    #allocation2 [shape = 'u8[4096]{0}', space=vmem, size = 0x1000, scoped, tag = 'input window, operand 0, single buffered']
    #allocation3 [shape = 's32[1]{0}', space=sflag, size = 0x4, scoped, tag = 'scoped memory for tpu_custom_call.1']
    #allocation4 [shape = 's32[1]{0}', space=sflag, size = 0x4, scoped, tag = 'scoped memory for tpu_custom_call.1']
    #allocation5 [shape = 'u8[4096]{0}', space=vmem, size = 0x1000, scoped, tag = 'output window, operand 0, single buffered']
    %6 = vsyncpa [#allocation3], 0
    %7 = vsyncpa [#allocation4], 0
    // Predicated region
    $region2: #{tpu_custom_call.1} parent=1 // pred_check
      _
    $region3: #{tpu_custom_call.1} parent=1 // pred_check_branch
      %9 = sbr.rel (0) target = $region5
    $region4: #{tpu_custom_call.1} parent=1 // pred_region
      %s11 = ssub.s32 128, 128
      %12 = vsyncadd [#allocation3], %s11
      %s14 = sshll.u32 [#allocation2], 4
      %s15 = int_to_ptr.vmem [resolvable:$true] %s14
      %17 = dma.hbm_to_vmem [thread:$0]  %s0, 128, %s15, [#allocation3]
    $region5: #{tpu_custom_call.1} parent=1 // pred_fallthru
      _
    // Predicated region
    $region6: #{tpu_custom_call.1} parent=1 // pred_check
      _
    $region7: #{tpu_custom_call.1} parent=1 // pred_check_branch
      %19 = sbr.rel (0) target = $region9
    $region8: #{tpu_custom_call.1} parent=1 // pred_region
      %20 = dma.done [#allocation3], 128
    $region9: #{tpu_custom_call.1} parent=1 // pred_fallthru
      _
    %v21 = vld [vmem:[#allocation2] sm:$0xff]
    %v22 = verf.f32.pop %v21
    %23 = vst [vmem:[#allocation5] sm:$0xff] %v22
    // Predicated region
    $region10: #{tpu_custom_call.1} parent=1 // pred_check
      _
    $region11: #{tpu_custom_call.1} parent=1 // pred_check_branch
      %25 = sbr.rel (0) target = $region13
    $region12: #{tpu_custom_call.1} parent=1 // pred_region
      %s27 = ssub.s32 128, 128
      %28 = vsyncadd [#allocation4], %s27
      %s30 = sshll.u32 [#allocation5], 4
      %s31 = int_to_ptr.vmem [resolvable:$true] %s30
      %33 = dma.vmem_to_hbm [thread:$0]  %s31, 128, %s1, [#allocation4]
    $region13: #{tpu_custom_call.1} parent=1 // pred_fallthru
      _
    // Predicated region
    $region14: #{tpu_custom_call.1} parent=1 // pred_check
      _
    $region15: #{tpu_custom_call.1} parent=1 // pred_check_branch
      %35 = sbr.rel (0) target = $region17
    $region16: #{tpu_custom_call.1} parent=1 // pred_region
      %36 = dma.done [#allocation4], 128
    $region17: #{tpu_custom_call.1} parent=1 // pred_fallthru
      _
    %37 = vsyncpa [#allocation3], 1
    %38 = vsyncpa [#allocation4], 1

// kernel: tpu_custom_call.1
$region0: #{tpu_custom_call.1}
  #allocation0 [shape = 'u32[]', space=smem, size = 0x4, offset = 0x4, fixed_abs, tag = 'smem constant byte address 0x4 - core index']
  #allocation1 [shape = 'u32[144,128]{1,0:T(1,128)}', space=vmem, size = 0x12000, scoped, tag = 'internal scratch']
  #allocation2 [shape = 'f32[16,32]{1,0:T(8,128)}', space=vmem, size = 0x2000, scoped, tag = 'scratch operand']
  #allocation3 [shape = 'f32[16,8]{1,0:T(8,128)}', space=vmem, size = 0x2000, scoped, tag = 'scratch operand']
  %s0 = inlined_call_operand.vmem [shape: f32[32,32], index: 0, kind: input, shape index: {}]
  %s1 = inlined_call_operand.vmem [shape: bf16[2,32,32], index: 1, kind: input, shape index: {}]
  %s2 = inlined_call_operand.vmem [shape: bf16[2,32,96], index: 2, kind: input, shape index: {}]
  %s3 = inlined_call_operand.vmem [shape: f32[2,1,96], index: 3, kind: input, shape index: {}]
  %s4 = inlined_call_operand.hbm [shape: bf16[2,32,64], index: 4, kind: input, shape index: {}]
  %s5 = inlined_call_operand.vmem [shape: f32[2,1,64], index: 5, kind: input, shape index: {}]
  %s6 = inlined_call_operand.hbm [shape: bf16[2,7,32,32], index: 6, kind: input, shape index: {}]
  %s7 = inlined_call_operand.vmem [shape: f32[2,15,32], index: 7, kind: input, shape index: {}]
  %s8 = inlined_call_operand.vmem [shape: bf16[2,32,8], index: 8, kind: input, shape index: {}]
  %s9 = inlined_call_operand.vmem [shape: f32[2,1,8], index: 9, kind: input, shape index: {}]
  %s10 = inlined_call_operand.vmem [shape: f32[32,8], index: 10, kind: output, shape index: {}]
  %s11 = sld [smem:[#allocation0]]
  $region89: #{tpu_custom_call.1} parent=0
    _
  %s13 = ssub.s32 1, %s11
  %s14 = scalar_select 0, %s13, %s11
  $region1: #{tpu_custom_call.1} parent=0
    #allocation4 [shape = 'u8[16384]{0}', space=vmem, size = 0x4000, scoped, tag = 'input window, operand 4, single buffered']
    #allocation5 [shape = 's32[2]{0}', space=sflag, size = 0x8, scoped, tag = 'scoped memory for tpu_custom_call.1']
    #allocation6 [shape = 'u8[114688]{0}', space=vmem, size = 0x1c000, scoped, tag = 'input window, operand 6, single buffered']
    #allocation7 [shape = 's32[1]{0}', space=sflag, size = 0x4, scoped, tag = 'scoped memory for tpu_custom_call.1']
    %15 = vsyncpa [#allocation5], 0
    %16 = vsyncpa [#allocation7], 0
    loop: start=0, step=1, limit=6
    $region2: #{tpu_custom_call.1} parent=1 // loop_pre_header
      _
    $region3: #{tpu_custom_call.1} parent=1 // loop_header
      %s18 = sphi 0, %s22
      %p19 = scmp.ge.s32.totalorder %s18, 6
      %s25 = sphi 0, %s37
      %s26 = sphi 0, %s33
      %s27 = sphi 0, %s25
      %s28 = sphi 0, %s26
      %s29 = sphi 0, %s27
      %s30 = sphi 0, %s28
      %s40 = sphi 0, %s42
      %s43 = sphi 0, %s40
      %s44 = sphi 0, %s43
      %s60 = sphi 0, %s44
      %s68 = sphi 0, %s70
      %s71 = sphi 0, %s68
      %s72 = sphi 0, %s71
      %s88 = sphi 0, %s72
      %s92 = sphi 0, %s92
      %s94 = sphi 0, %s92
      %s95 = sphi 0, %s94
      %s109 = sphi 0, %s95
      %s113 = sphi 0, %s113
      %s115 = sphi 0, %s113
      %s116 = sphi 0, %s115
      %s130 = sphi 0, %s116
      %s134 = sphi 0, %s134
      %s136 = sphi 0, %s134
      %s137 = sphi 0, %s136
      %s151 = sphi 0, %s137
      %s155 = sphi 0, %s155
      %s157 = sphi 0, %s155
      %s158 = sphi 0, %s157
      %s172 = sphi 0, %s158
      %s176 = sphi 0, %s176
      %s178 = sphi 0, %s176
      %s179 = sphi 0, %s178
      %s193 = sphi 0, %s179
      %s197 = sphi 0, %s197
      %s199 = sphi 0, %s197
      %s200 = sphi 0, %s199
      %s214 = sphi 0, %s200
      %s218 = sphi 0, %s218
      %s220 = sphi 0, %s218
      %s221 = sphi 0, %s220
      %s235 = sphi 0, %s221
      %s239 = sphi 0, %s239
      %s241 = sphi 0, %s239
      %s242 = sphi 0, %s241
      %s256 = sphi 0, %s242
      %s262 = sphi 0, %s264
      %s265 = sphi 0, %s262
      %s266 = sphi 0, %s265
      %s282 = sphi 0, %s266
    $region4: #{tpu_custom_call.1} parent=1 // loop_header_branch
      %21 = sbr.rel (%p19) target = $region8
    $region5: #{tpu_custom_call.1} parent=1 // loop_body
      %s23 = ssub.s32 %s18, 1
      %s24 = ssub.s32 %s18, 2
      %s31 = sadd.s32 1, %s26
      %p32 = scmp.ge.s32.totalorder %s31, 2
      %s33 = scalar_select %p32, 0, %s31
      %s34 = sadd.s32 1, %s25
      %s35 = scalar_select %p32, %s34, %s25
      %p36 = scmp.ge.s32.totalorder %s35, 2
      %s37 = scalar_select %p36, 0, %s35
      %s38 = ssub.s32 %s25, %s37
      %p39 = scmp.eq.s32.totalorder %s38, 0
      %s41 = sadd.s32 %s40, 1
      %s42 = scalar_select %p39, %s40, %s41
      %p45 = pneg %p39
      %p46 = scmp.eq.s32.totalorder %s18, 3
      %p47 = por %p45, %p46
      %p48 = scmp.ne.s32.totalorder %s40, %s43
      %p49 = scmp.eq.s32.totalorder %s18, 0
      %p50 = por %p48, %p49
      %p51 = scmp.ne.s32.totalorder %s40, %s43
      %p52 = scmp.eq.s32.totalorder %s23, 3
      %p53 = por %p51, %p52
      %p54 = scmp.ne.s32.totalorder %s43, %s44
      %p55 = scmp.eq.s32.totalorder %s23, 0
      %p56 = por %p54, %p55
      %p57 = scmp.ne.s32.totalorder %s43, %s44
      %p58 = scmp.eq.s32.totalorder %s24, 3
      %p59 = por %p57, %p58
      %p61 = scmp.ne.s32.totalorder %s44, %s60
      %p62 = scmp.eq.s32.totalorder %s24, 0
      %p63 = por %p61, %p62
      %s64 = ssub.s32 %s26, %s33
      %s65 = ssub.s32 %s25, %s37
      %s66 = sor.u32 %s64, %s65
      %p67 = scmp.eq.s32.totalorder %s66, 0
      %s69 = sadd.s32 %s68, 1
      %s70 = scalar_select %p67, %s68, %s69
      %p73 = pneg %p67
      %p74 = scmp.eq.s32.totalorder %s18, 3
      %p75 = por %p73, %p74
      %p76 = scmp.ne.s32.totalorder %s68, %s71
      %p77 = scmp.eq.s32.totalorder %s18, 0
      %p78 = por %p76, %p77
      %p79 = scmp.ne.s32.totalorder %s68, %s71
      %p80 = scmp.eq.s32.totalorder %s23, 3
      %p81 = por %p79, %p80
      %p82 = scmp.ne.s32.totalorder %s71, %s72
      %p83 = scmp.eq.s32.totalorder %s23, 0
      %p84 = por %p82, %p83
      %p85 = scmp.ne.s32.totalorder %s71, %s72
      %p86 = scmp.eq.s32.totalorder %s24, 3
      %p87 = por %p85, %p86
      %p89 = scmp.ne.s32.totalorder %s72, %s88
      %p90 = scmp.eq.s32.totalorder %s24, 0
      %p91 = por %p89, %p90
      %s93 = sadd.s32 %s92, 1
      %p96 = scmp.eq.s32.totalorder %s18, 3
      %p97 = scmp.ne.s32.totalorder %s92, %s94
      %p98 = scmp.eq.s32.totalorder %s18, 0
      %p99 = por %p97, %p98
      %p100 = scmp.ne.s32.totalorder %s92, %s94
      %p101 = scmp.eq.s32.totalorder %s23, 3
      %p102 = por %p100, %p101
      %p103 = scmp.ne.s32.totalorder %s94, %s95
      %p104 = scmp.eq.s32.totalorder %s23, 0
      %p105 = por %p103, %p104
      %p106 = scmp.ne.s32.totalorder %s94, %s95
      %p107 = scmp.eq.s32.totalorder %s24, 3
      %p108 = por %p106, %p107
      %p110 = scmp.ne.s32.totalorder %s95, %s109
      %p111 = scmp.eq.s32.totalorder %s24, 0
      %p112 = por %p110, %p111
      %s114 = sadd.s32 %s113, 1
      %p117 = scmp.eq.s32.totalorder %s18, 3
      %p118 = scmp.ne.s32.totalorder %s113, %s115
      %p119 = scmp.eq.s32.totalorder %s18, 0
      %p120 = por %p118, %p119
      %p121 = scmp.ne.s32.totalorder %s113, %s115
      %p122 = scmp.eq.s32.totalorder %s23, 3
      %p123 = por %p121, %p122
      %p124 = scmp.ne.s32.totalorder %s115, %s116
      %p125 = scmp.eq.s32.totalorder %s23, 0
      %p126 = por %p124, %p125
      %p127 = scmp.ne.s32.totalorder %s115, %s116
      %p128 = scmp.eq.s32.totalorder %s24, 3
      %p129 = por %p127, %p128
      %p131 = scmp.ne.s32.totalorder %s116, %s130
      %p132 = scmp.eq.s32.totalorder %s24, 0
      %p133 = por %p131, %p132
      %s135 = sadd.s32 %s134, 1
      %p138 = scmp.eq.s32.totalorder %s18, 3
      %p139 = scmp.ne.s32.totalorder %s134, %s136
      %p140 = scmp.eq.s32.totalorder %s18, 0
      %p141 = por %p139, %p140
      %p142 = scmp.ne.s32.totalorder %s134, %s136
      %p143 = scmp.eq.s32.totalorder %s23, 3
      %p144 = por %p142, %p143
      %p145 = scmp.ne.s32.totalorder %s136, %s137
      %p146 = scmp.eq.s32.totalorder %s23, 0
      %p147 = por %p145, %p146
      %p148 = scmp.ne.s32.totalorder %s136, %s137
      %p149 = scmp.eq.s32.totalorder %s24, 3
      %p150 = por %p148, %p149
      %p152 = scmp.ne.s32.totalorder %s137, %s151
      %p153 = scmp.eq.s32.totalorder %s24, 0
      %p154 = por %p152, %p153
      %s156 = sadd.s32 %s155, 1
      %p159 = scmp.eq.s32.totalorder %s18, 3
      %p160 = scmp.ne.s32.totalorder %s155, %s157
      %p161 = scmp.eq.s32.totalorder %s18, 0
      %p162 = por %p160, %p161
      %p163 = scmp.ne.s32.totalorder %s155, %s157
      %p164 = scmp.eq.s32.totalorder %s23, 3
      %p165 = por %p163, %p164
      %p166 = scmp.ne.s32.totalorder %s157, %s158
      %p167 = scmp.eq.s32.totalorder %s23, 0
      %p168 = por %p166, %p167
      %p169 = scmp.ne.s32.totalorder %s157, %s158
      %p170 = scmp.eq.s32.totalorder %s24, 3
      %p171 = por %p169, %p170
      %p173 = scmp.ne.s32.totalorder %s158, %s172
      %p174 = scmp.eq.s32.totalorder %s24, 0
      %p175 = por %p173, %p174
      %s177 = sadd.s32 %s176, 1
      %p180 = scmp.eq.s32.totalorder %s18, 3
      %p181 = scmp.ne.s32.totalorder %s176, %s178
      %p182 = scmp.eq.s32.totalorder %s18, 0
      %p183 = por %p181, %p182
      %p184 = scmp.ne.s32.totalorder %s176, %s178
      %p185 = scmp.eq.s32.totalorder %s23, 3
      %p186 = por %p184, %p185
      %p187 = scmp.ne.s32.totalorder %s178, %s179
      %p188 = scmp.eq.s32.totalorder %s23, 0
      %p189 = por %p187, %p188
      %p190 = scmp.ne.s32.totalorder %s178, %s179
      %p191 = scmp.eq.s32.totalorder %s24, 3
      %p192 = por %p190, %p191
      %p194 = scmp.ne.s32.totalorder %s179, %s193
      %p195 = scmp.eq.s32.totalorder %s24, 0
      %p196 = por %p194, %p195
      %s198 = sadd.s32 %s197, 1
      %p201 = scmp.eq.s32.totalorder %s18, 3
      %p202 = scmp.ne.s32.totalorder %s197, %s199
      %p203 = scmp.eq.s32.totalorder %s18, 0
      %p204 = por %p202, %p203
      %p205 = scmp.ne.s32.totalorder %s197, %s199
      %p206 = scmp.eq.s32.totalorder %s23, 3
      %p207 = por %p205, %p206
      %p208 = scmp.ne.s32.totalorder %s199, %s200
      %p209 = scmp.eq.s32.totalorder %s23, 0
      %p210 = por %p208, %p209
      %p211 = scmp.ne.s32.totalorder %s199, %s200
      %p212 = scmp.eq.s32.totalorder %s24, 3
      %p213 = por %p211, %p212
      %p215 = scmp.ne.s32.totalorder %s200, %s214
      %p216 = scmp.eq.s32.totalorder %s24, 0
      %p217 = por %p215, %p216
      %s219 = sadd.s32 %s218, 1
      %p222 = scmp.eq.s32.totalorder %s18, 3
      %p223 = scmp.ne.s32.totalorder %s218, %s220
      %p224 = scmp.eq.s32.totalorder %s18, 0
      %p225 = por %p223, %p224
      %p226 = scmp.ne.s32.totalorder %s218, %s220
      %p227 = scmp.eq.s32.totalorder %s23, 3
      %p228 = por %p226, %p227
      %p229 = scmp.ne.s32.totalorder %s220, %s221
      %p230 = scmp.eq.s32.totalorder %s23, 0
      %p231 = por %p229, %p230
      %p232 = scmp.ne.s32.totalorder %s220, %s221
      %p233 = scmp.eq.s32.totalorder %s24, 3
      %p234 = por %p232, %p233
      %p236 = scmp.ne.s32.totalorder %s221, %s235
      %p237 = scmp.eq.s32.totalorder %s24, 0
      %p238 = por %p236, %p237
      %s240 = sadd.s32 %s239, 1
      %p243 = scmp.eq.s32.totalorder %s18, 3
      %p244 = scmp.ne.s32.totalorder %s239, %s241
      %p245 = scmp.eq.s32.totalorder %s18, 0
      %p246 = por %p244, %p245
      %p247 = scmp.ne.s32.totalorder %s239, %s241
      %p248 = scmp.eq.s32.totalorder %s23, 3
      %p249 = por %p247, %p248
      %p250 = scmp.ne.s32.totalorder %s241, %s242
      %p251 = scmp.eq.s32.totalorder %s23, 0
      %p252 = por %p250, %p251
      %p253 = scmp.ne.s32.totalorder %s241, %s242
      %p254 = scmp.eq.s32.totalorder %s24, 3
      %p255 = por %p253, %p254
      %p257 = scmp.ne.s32.totalorder %s242, %s256
      %p258 = scmp.eq.s32.totalorder %s24, 0
      %p259 = por %p257, %p258
      %s260 = ssub.s32 %s25, %s37
      %p261 = scmp.eq.s32.totalorder %s260, 0
      %s263 = sadd.s32 %s262, 1
      %s264 = scalar_select %p261, %s262, %s263
      %p267 = pneg %p261
      %p268 = scmp.eq.s32.totalorder %s18, 3
      %p269 = por %p267, %p268
      %p270 = scmp.ne.s32.totalorder %s262, %s265
      %p271 = scmp.eq.s32.totalorder %s18, 0
      %p272 = por %p270, %p271
      %p273 = scmp.ne.s32.totalorder %s262, %s265
      %p274 = scmp.eq.s32.totalorder %s23, 3
      %p275 = por %p273, %p274
      %p276 = scmp.ne.s32.totalorder %s265, %s266
      %p277 = scmp.eq.s32.totalorder %s23, 0
      %p278 = por %p276, %p277
      %p279 = scmp.ne.s32.totalorder %s265, %s266
      %p280 = scmp.eq.s32.totalorder %s24, 3
      %p281 = por %p279, %p280
      %p283 = scmp.ne.s32.totalorder %s266, %s282
      %p284 = scmp.eq.s32.totalorder %s24, 0
      %p285 = por %p283, %p284
      %p286 = scmp.le.s32.totalorder 1, %s18
      %p287 = scmp.lt.s32.totalorder %s18, 5
      %p288 = pnand %p286, %p287
      %p289 = pneg %p288
      // Predicated region
      $region9: #{tpu_custom_call.1} parent=5 // pred_check
        _
      $region10: #{tpu_custom_call.1} parent=5 // pred_check_branch
        %291 = sbr.rel (%p288) target = $region12
      $region11: #{tpu_custom_call.1} parent=5 // pred_region
        %s292 = ssub.s32 %s18, 1
        // Predicated region
        $region13: #{tpu_custom_call.1} parent=11 // pred_check
          %p293 = pneg %p105
        $region14: #{tpu_custom_call.1} parent=11 // pred_check_branch
          %295 = sbr.rel (%p293) target = $region16
        $region15: #{tpu_custom_call.1} parent=11 // pred_region
          _
        $region16: #{tpu_custom_call.1} parent=11 // pred_fallthru
          _
        // Predicated region
        $region17: #{tpu_custom_call.1} parent=11 // pred_check
          %p296 = pneg %p126
        $region18: #{tpu_custom_call.1} parent=11 // pred_check_branch
          %298 = sbr.rel (%p296) target = $region20
        $region19: #{tpu_custom_call.1} parent=11 // pred_region
          _
        $region20: #{tpu_custom_call.1} parent=11 // pred_fallthru
          _
        // Predicated region
        $region21: #{tpu_custom_call.1} parent=11 // pred_check
          %p299 = pneg %p147
        $region22: #{tpu_custom_call.1} parent=11 // pred_check_branch
          %301 = sbr.rel (%p299) target = $region24
        $region23: #{tpu_custom_call.1} parent=11 // pred_region
          %s303 = ssub.s32 512, 512
          %304 = vsyncadd [#allocation5], %s303
          %s305 = sshll.u32 [#allocation4], 4
          %s306 = int_to_ptr.vmem [resolvable:$true] %s305
          %311 = dma.hbm_to_vmem [thread:$0]  %s4, 512, %s306, [#allocation5], 64, 64, 4
        $region24: #{tpu_custom_call.1} parent=11 // pred_fallthru
          _
        // Predicated region
        $region25: #{tpu_custom_call.1} parent=11 // pred_check
          %p312 = pneg %p168
        $region26: #{tpu_custom_call.1} parent=11 // pred_check_branch
          %314 = sbr.rel (%p312) target = $region28
        $region27: #{tpu_custom_call.1} parent=11 // pred_region
          _
        $region28: #{tpu_custom_call.1} parent=11 // pred_fallthru
          _
        // Predicated region
        $region29: #{tpu_custom_call.1} parent=11 // pred_check
          %p315 = pneg %p189
        $region30: #{tpu_custom_call.1} parent=11 // pred_check_branch
          %317 = sbr.rel (%p315) target = $region32
        $region31: #{tpu_custom_call.1} parent=11 // pred_region
          %s319 = ssub.s32 3584, 3584
          %320 = vsyncadd [#allocation7], %s319
          %s321 = sshll.u32 [#allocation6], 4
          %s322 = int_to_ptr.vmem [resolvable:$true] %s321
          %327 = dma.hbm_to_vmem [thread:$0]  %s6, 3584, %s322, [#allocation7], 64, 64, 4
        $region32: #{tpu_custom_call.1} parent=11 // pred_fallthru
          _
        // Predicated region
        $region33: #{tpu_custom_call.1} parent=11 // pred_check
          %p328 = pneg %p210
        $region34: #{tpu_custom_call.1} parent=11 // pred_check_branch
          %330 = sbr.rel (%p328) target = $region36
        $region35: #{tpu_custom_call.1} parent=11 // pred_region
          _
        $region36: #{tpu_custom_call.1} parent=11 // pred_fallthru
          _
        // Predicated region
        $region37: #{tpu_custom_call.1} parent=11 // pred_check
          %p331 = pneg %p231
        $region38: #{tpu_custom_call.1} parent=11 // pred_check_branch
          %333 = sbr.rel (%p331) target = $region40
        $region39: #{tpu_custom_call.1} parent=11 // pred_region
          _
        $region40: #{tpu_custom_call.1} parent=11 // pred_fallthru
          _
        // Predicated region
        $region41: #{tpu_custom_call.1} parent=11 // pred_check
          %p334 = pneg %p252
        $region42: #{tpu_custom_call.1} parent=11 // pred_check_branch
          %336 = sbr.rel (%p334) target = $region44
        $region43: #{tpu_custom_call.1} parent=11 // pred_region
          _
        $region44: #{tpu_custom_call.1} parent=11 // pred_fallthru
          _
      $region12: #{tpu_custom_call.1} parent=5 // pred_fallthru
        _
      %p337 = scmp.lt.s32.totalorder %s18, 4
      // Predicated region
      $region45: #{tpu_custom_call.1} parent=5 // pred_check
        %p338 = pneg %p337
      $region46: #{tpu_custom_call.1} parent=5 // pred_check_branch
        %340 = sbr.rel (%p338) target = $region48
      $region47: #{tpu_custom_call.1} parent=5 // pred_region
        // Predicated region
        $region49: #{tpu_custom_call.1} parent=47 // pred_check
          %p341 = pneg %p50
        $region50: #{tpu_custom_call.1} parent=47 // pred_check_branch
          %343 = sbr.rel (%p341) target = $region52
        $region51: #{tpu_custom_call.1} parent=47 // pred_region
          %s344 = smul.u32 2, %s25
          %p345 = scmp.lt.s32.totalorder %s344, 3
          %s346 = scalar_select %p345, %s344, 3
          %s347 = smul.addr %s346, 8
          %s348 = scalar_lea.vmem %s0, %s347
          %s349 = smul.u32 2, %s25
        $region52: #{tpu_custom_call.1} parent=47 // pred_fallthru
          _
        // Predicated region
        $region53: #{tpu_custom_call.1} parent=47 // pred_check
          %p350 = pneg %p78
        $region54: #{tpu_custom_call.1} parent=47 // pred_check_branch
          %352 = sbr.rel (%p350) target = $region56
        $region55: #{tpu_custom_call.1} parent=47 // pred_region
          %s353 = smul.u32 2, %s25
          %p354 = scmp.lt.s32.totalorder %s26, 1
          %s355 = scalar_select %p354, %s26, 1
          %p356 = scmp.lt.s32.totalorder %s353, 3
          %s357 = scalar_select %p356, %s353, 3
          %s358 = smul.addr %s355, 4
          %s359 = sadd.s32 %s357, %s358
          %s360 = smul.addr %s359, 4
          %s361 = scalar_lea.vmem %s1, %s360
          %s362 = smul.u32 2, %s25
        $region56: #{tpu_custom_call.1} parent=47 // pred_fallthru
          _
      $region48: #{tpu_custom_call.1} parent=5 // pred_fallthru
        _
      %p363 = scmp.le.s32.totalorder 1, %s18
      %p364 = scmp.lt.s32.totalorder %s18, 5
      %p365 = pnand %p363, %p364
      %p366 = pneg %p365
      // Predicated region
      $region57: #{tpu_custom_call.1} parent=5 // pred_check
        _
      $region58: #{tpu_custom_call.1} parent=5 // pred_check_branch
        %368 = sbr.rel (%p365) target = $region60
      $region59: #{tpu_custom_call.1} parent=5 // pred_region
        %s369 = ssub.s32 %s18, 1
        // Predicated region
        $region61: #{tpu_custom_call.1} parent=59 // pred_check
          %p370 = pneg %p147
        $region62: #{tpu_custom_call.1} parent=59 // pred_check_branch
          %372 = sbr.rel (%p370) target = $region64
        $region63: #{tpu_custom_call.1} parent=59 // pred_region
          %373 = dma.done [#allocation5], 512
        $region64: #{tpu_custom_call.1} parent=59 // pred_fallthru
          _
        // Predicated region
        $region65: #{tpu_custom_call.1} parent=59 // pred_check
          %p374 = pneg %p189
        $region66: #{tpu_custom_call.1} parent=59 // pred_check_branch
          %376 = sbr.rel (%p374) target = $region68
        $region67: #{tpu_custom_call.1} parent=59 // pred_region
          %377 = dma.done [#allocation7], 3584
        $region68: #{tpu_custom_call.1} parent=59 // pred_fallthru
          _
        %s378 = smul.u32 2, %s27
        %p379 = scmp.lt.s32.totalorder %s378, 3
        %s380 = scalar_select %p379, %s378, 3
        %s381 = smul.addr %s380, 8
        %s382 = scalar_lea.vmem %s0, %s381
        %p383 = pneg %p56
        %p384 = pneg %p53
        %s385 = smul.u32 2, %s27
        %p386 = scmp.lt.s32.totalorder %s28, 1
        %s387 = scalar_select %p386, %s28, 1
        %p388 = scmp.lt.s32.totalorder %s385, 3
        %s389 = scalar_select %p388, %s385, 3
        %s390 = smul.addr %s387, 4
        %s391 = sadd.s32 %s389, %s390
        %s392 = smul.addr %s391, 4
        %s393 = scalar_lea.vmem %s1, %s392
        %p394 = pneg %p84
        %p395 = pneg %p81
        %p396 = pneg %p105
        %p397 = pneg %p102
        %p398 = pneg %p126
        %p399 = pneg %p123
        %p400 = pneg %p147
        %p401 = pneg %p144
        %p402 = pneg %p168
        %p403 = pneg %p165
        %p404 = pneg %p189
        %p405 = pneg %p186
        %p406 = pneg %p210
        %p407 = pneg %p207
        %p408 = pneg %p231
        %p409 = pneg %p228
        %p410 = pneg %p252
        %p411 = pneg %p249
        %p412 = pneg %p278
        %p413 = pneg %p275
        %s414 = smul.u32 2, %s27
        %p415 = scmp.lt.s32.totalorder %s414, 3
        %s416 = scalar_select %p415, %s414, 3
        %s417 = smul.addr %s416, 8
        %s418 = scalar_lea.vmem %s10, %s417
        %s419 = smul.u32 2, %s27
        %p420 = scmp.lt.s32.totalorder %s419, 3
        %s421 = scalar_select %p420, %s419, 3
        %s422 = smul.addr %s421, 8
        %s423 = scalar_lea.vmem %s0, %s422
        %s424 = smul.u32 2, %s27
        %s425 = smul.u32 2, %s27
        %p426 = scmp.lt.s32.totalorder %s28, 1
        %s427 = scalar_select %p426, %s28, 1
        %p428 = scmp.lt.s32.totalorder %s425, 3
        %s429 = scalar_select %p428, %s425, 3
        %s430 = smul.addr %s427, 4
        %s431 = sadd.s32 %s429, %s430
        %s432 = smul.addr %s431, 4
        %s433 = scalar_lea.vmem %s1, %s432
        %s434 = smul.u32 2, %s27
        %s435 = smul.u32 2, %s27
        %p436 = scmp.lt.s32.totalorder %s435, 3
        %s437 = scalar_select %p436, %s435, 3
        %s438 = smul.addr %s437, 8
        %s439 = scalar_lea.vmem %s10, %s438
        %s440 = smul.u32 2, %s27
        %p442 = scmp.eq.s32.totalorder %s28, 0
        // Predicated region
        $region69: #{tpu_custom_call.1} parent=59 // pred_check
          %p443 = pneg %p442
        $region70: #{tpu_custom_call.1} parent=59 // pred_check_branch
          %445 = sbr.rel (%p443) target = $region72
        $region71: #{tpu_custom_call.1} parent=59 // pred_region
          %v446 = vld [vmem:[%s423] sm:$0xff]
          %v447 = vld [vmem:[%s423 + $0x8] sm:$0xff]
          %vm448 = vcmask 261120
          %449 = vst.msk [vmem:[#allocation2] sm:$0xff] %vm448, %v446
          %450 = vst.msk [vmem:[#allocation2 + $0x8] sm:$0xff] %vm448, %v447
          %vm451 = vcmask 64512
          %452 = vst.msk [vmem:[#allocation3] sm:$0xff] %vm451, 0.0
          %453 = vst.msk [vmem:[#allocation3 + $0x8] sm:$0xff] %vm451, 0.0
        $region72: #{tpu_custom_call.1} parent=59 // pred_fallthru
          _
        %v454 = vld [vmem:[#allocation2] sm:$0xff]
        %v455 = vld [vmem:[#allocation2 + $0x8] sm:$0xff]
        %v456 = vld [vmem:[%s433] sm:$0xf]
        %v457 = vld [vmem:[%s433 + $0x4] sm:$0xf]
        %s458 = smul.u32 %s28, 16
        %s459 = scalar_lea.vmem %s7, %s458
        %v460 = vld [vmem:[%s459] sm:$0xff]
        %v461 = vld [vmem:[%s459 + $0x8] sm:$0x7f]
        %s462 = scalar_lea.vmem %s3, %s28
        %v463 = vld [vmem:[%s462] sm:$0x1]
        %s464 = scalar_lea.vmem %s5, %s28
        %v465 = vld [vmem:[%s464] sm:$0x1]
        %s466 = scalar_lea.vmem %s9, %s28
        %v467 = vld [vmem:[%s466] sm:$0x1]
        %v468 = vpack.c.bf16 %v455, %v454
        %s469 = smul.u32 %s28, 4
        %s470 = smul.addr %s469, 4
        %s471 = scalar_lea.vmem %s2, %s470
        %v472 = vld [vmem:[%s471] sm:$0xf]
        %v473 = vld [vmem:[%s471 + $0x4] sm:$0xf]
        %v474 = vld [vmem:[%s471 + $0x8] sm:$0xf]
        %v475 = vld [vmem:[%s471 + $0xc] sm:$0xf]
        %v477 = vlaneseq
        %v478 = vshrl.u32 %v477, 7
        %v479 = vsub.s32 0, %v478
        %v480 = vrot.slane %v463, %v479
        %v486 = vunpack.c.l.b16 %v472
        %v487 = vunpack.c.l.b16 %v473
        %v488 = vunpack.c.l.b16 %v474
        %v489 = vunpack.c.l.b16 %v475
        %v490 = vpack.c.b16 %v487, %v486
        %v491 = vpack.c.b16 %v489, %v488
        %vm494 = vcmask 261120
        %v496 = vsel %vm494, %v468, 0
        %498 = vmatprep.subr.bf16.mxu0 0
        %499 = vmatpush1.bf16.msra.mxu0 %v490
        %500 = vmatprep.subr.bf16.mxu0 0
        %501 = vmatpush1.bf16.msra.mxu0 %v491
        %502 = vmatprep.subr.bf16.mxu0 0
        %503 = vmatpush1.bf16.msra.mxu0 0
        %504 = vmatprep.subr.bf16.mxu0 0
        %505 = vmatpush1.bf16.msra.mxu0 0
        %506 = vmatprep.subr.bf16.mxu0 0
        %507 = vmatpush1.bf16.msra.mxu0 0
        %508 = vmatprep.subr.bf16.mxu0 0
        %509 = vmatpush1.bf16.msra.mxu0 0
        %510 = vmatprep.subr.bf16.mxu0 0
        %511 = vmatpush1.bf16.msra.mxu0 0
        %512 = vmatprep.subr.bf16.mxu0 0
        %513 = vmatpush1.bf16.msra.mxu0 0
        %514 = vmatprep.subr.bf16.mxu0 0
        %515 = vmatpush1.bf16.msra.mxu0 0
        %516 = vmatprep.subr.bf16.mxu0 0
        %517 = vmatpush1.bf16.msra.mxu0 0
        %518 = vmatprep.subr.bf16.mxu0 0
        %519 = vmatpush1.bf16.msra.mxu0 0
        %520 = vmatprep.subr.bf16.mxu0 0
        %521 = vmatpush1.bf16.msra.mxu0 0
        %522 = vmatprep.subr.bf16.mxu0 0
        %523 = vmatpush1.bf16.msra.mxu0 0
        %524 = vmatprep.subr.bf16.mxu0 0
        %525 = vmatpush1.bf16.msra.mxu0 0
        %526 = vmatprep.subr.bf16.mxu0 0
        %527 = vmatpush1.bf16.msra.mxu0 0
        %528 = vmatprep.subr.bf16.mxu0 0
        %529 = vmatpush1.bf16.msra.mxu0 0
        %530 = vmatprep.mubr.bf16.mxu0 0
        %531 = vmatmul.mubr.bf16.gmra.mrb[0].mxu0 %v496
        %v532 = vpop.f32.mrb[0].mxu0
        %v533 = vadd.f32 %v480, %v532
        %v534 = vpop.f32.mrb[0].mxu0
        %v535 = vpop.f32.mrb[0].mxu0
        %v536 = vadd.f32 %v480, %v535
        %v537 = vpop.f32.mrb[0].mxu0
        %538 = vdwg.mxu0
        %541 = vrot.lane.b32.xlu0 %v533, 112
        %v542 = vpop.permute.xlu0 %541
        %543 = vrot.lane.b32.xlu0 %v536, 112
        %v544 = vpop.permute.xlu0 %543
        %v547 = vcombine.high %v533, 0.0
        %v549 = vunpack.c.l.s4 1983009808
        %v550 = vunpack.c.0.s8 %v549
        %v551 = vlaneseq
        %v552 = vshrl.u32 %v551, 7
        %v553 = vsub.s32 %v550, %v552
        %v554 = vrot.slane %v533, %v553
        %v556 = vunpack.c.l.s4 1983009808
        %v557 = vunpack.c.0.s8 %v556
        %v558 = vlaneseq
        %v559 = vshrl.u32 %v558, 7
        %v560 = vsub.s32 %v557, %v559
        %v561 = vrot.slane %v547, %v560
        %v562 = vcombine.high %v542, 0.0
        %v564 = vunpack.c.l.s4 1983009808
        %v565 = vunpack.c.0.s8 %v564
        %v566 = vlaneseq
        %v567 = vshrl.u32 %v566, 7
        %v568 = vsub.s32 %v565, %v567
        %v569 = vrot.slane %v542, %v568
        %v571 = vunpack.c.l.s4 1983009808
        %v572 = vunpack.c.0.s8 %v571
        %v573 = vlaneseq
        %v574 = vshrl.u32 %v573, 7
        %v575 = vsub.s32 %v572, %v574
        %v576 = vrot.slane %v562, %v575
        %v577 = vcombine.low %v554, %v569
        %v578 = vcombine.high %v554, %v569
        %v580 = vunpack.c.l.s4 1934713408
        %v581 = vunpack.c.0.s8 %v580
        %v582 = vlaneseq
        %v583 = vshrl.u32 %v582, 7
        %v584 = vsub.s32 %v581, %v583
        %v585 = vrot.slane %v577, %v584
        %v587 = vunpack.c.l.s4 1934713408
        %v588 = vunpack.c.0.s8 %v587
        %v589 = vlaneseq
        %v590 = vshrl.u32 %v589, 7
        %v591 = vsub.s32 %v588, %v590
        %v592 = vrot.slane %v578, %v591
        %v593 = vcombine.low %v561, %v576
        %v594 = vcombine.high %v561, %v576
        %v596 = vunpack.c.l.s4 1934713408
        %v597 = vunpack.c.0.s8 %v596
        %v598 = vlaneseq
        %v599 = vshrl.u32 %v598, 7
        %v600 = vsub.s32 %v597, %v599
        %v601 = vrot.slane %v593, %v600
        %v603 = vunpack.c.l.s4 1934713408
        %v604 = vunpack.c.0.s8 %v603
        %v605 = vlaneseq
        %v606 = vshrl.u32 %v605, 7
        %v607 = vsub.s32 %v604, %v606
        %v608 = vrot.slane %v594, %v607
        %v609 = vcombine.high %v585, 0.0
        %v610 = vcombine.high %v592, 0.0
        %v611 = vcombine.high %v601, 0.0
        %v612 = vcombine.high %v608, 0.0
        %v613 = vcombine.high %v536, 0.0
        %v615 = vunpack.c.l.s4 1983009808
        %v616 = vunpack.c.0.s8 %v615
        %v617 = vlaneseq
        %v618 = vshrl.u32 %v617, 7
        %v619 = vsub.s32 %v616, %v618
        %v620 = vrot.slane %v536, %v619
        %v622 = vunpack.c.l.s4 1983009808
        %v623 = vunpack.c.0.s8 %v622
        %v624 = vlaneseq
        %v625 = vshrl.u32 %v624, 7
        %v626 = vsub.s32 %v623, %v625
        %v627 = vrot.slane %v613, %v626
        %v628 = vcombine.high %v544, 0.0
        %v630 = vunpack.c.l.s4 1983009808
        %v631 = vunpack.c.0.s8 %v630
        %v632 = vlaneseq
        %v633 = vshrl.u32 %v632, 7
        %v634 = vsub.s32 %v631, %v633
        %v635 = vrot.slane %v544, %v634
        %v637 = vunpack.c.l.s4 1983009808
        %v638 = vunpack.c.0.s8 %v637
        %v639 = vlaneseq
        %v640 = vshrl.u32 %v639, 7
        %v641 = vsub.s32 %v638, %v640
        %v642 = vrot.slane %v628, %v641
        %v643 = vcombine.low %v620, %v635
        %v644 = vcombine.high %v620, %v635
        %v646 = vunpack.c.l.s4 1934713408
        %v647 = vunpack.c.0.s8 %v646
        %v648 = vlaneseq
        %v649 = vshrl.u32 %v648, 7
        %v650 = vsub.s32 %v647, %v649
        %v651 = vrot.slane %v643, %v650
        %v653 = vunpack.c.l.s4 1934713408
        %v654 = vunpack.c.0.s8 %v653
        %v655 = vlaneseq
        %v656 = vshrl.u32 %v655, 7
        %v657 = vsub.s32 %v654, %v656
        %v658 = vrot.slane %v644, %v657
        %v659 = vcombine.low %v627, %v642
        %v660 = vcombine.high %v627, %v642
        %v662 = vunpack.c.l.s4 1934713408
        %v663 = vunpack.c.0.s8 %v662
        %v664 = vlaneseq
        %v665 = vshrl.u32 %v664, 7
        %v666 = vsub.s32 %v663, %v665
        %v667 = vrot.slane %v659, %v666
        %v669 = vunpack.c.l.s4 1934713408
        %v670 = vunpack.c.0.s8 %v669
        %v671 = vlaneseq
        %v672 = vshrl.u32 %v671, 7
        %v673 = vsub.s32 %v670, %v672
        %v674 = vrot.slane %v660, %v673
        %v675 = vcombine.high %v651, 0.0
        %v676 = vcombine.high %v658, 0.0
        %v677 = vcombine.high %v667, 0.0
        %v678 = vcombine.high %v674, 0.0
        %v679 = vcombine.low %v585, %v592
        %v681 = vunpack.c.l.s4 1983009808
        %v682 = vunpack.c.0.s8 %v681
        %v683 = vlaneseq
        %v684 = vshrl.u32 %v683, 7
        %v685 = vsub.s32 %v682, %v684
        %v686 = vrot.slane %v679, %v685
        %v687 = vcombine.low %v609, %v610
        %v689 = vunpack.c.l.s4 1983009808
        %v690 = vunpack.c.0.s8 %v689
        %v691 = vlaneseq
        %v692 = vshrl.u32 %v691, 7
        %v693 = vsub.s32 %v690, %v692
        %v694 = vrot.slane %v687, %v693
        %v695 = vcombine.low %v686, %v694
        %v697 = vunpack.c.l.s4 1934713408
        %v698 = vunpack.c.0.s8 %v697
        %v699 = vlaneseq
        %v700 = vshrl.u32 %v699, 7
        %v701 = vsub.s32 %v698, %v700
        %v702 = vrot.slane %v695, %v701
        %v703 = vcombine.high %v702, 0.0
        %v704 = vcombine.low %v601, %v608
        %v706 = vunpack.c.l.s4 1983009808
        %v707 = vunpack.c.0.s8 %v706
        %v708 = vlaneseq
        %v709 = vshrl.u32 %v708, 7
        %v710 = vsub.s32 %v707, %v709
        %v711 = vrot.slane %v704, %v710
        %v712 = vcombine.low %v611, %v612
        %v714 = vunpack.c.l.s4 1983009808
        %v715 = vunpack.c.0.s8 %v714
        %v716 = vlaneseq
        %v717 = vshrl.u32 %v716, 7
        %v718 = vsub.s32 %v715, %v717
        %v719 = vrot.slane %v712, %v718
        %v720 = vcombine.low %v711, %v719
        %v722 = vunpack.c.l.s4 1934713408
        %v723 = vunpack.c.0.s8 %v722
        %v724 = vlaneseq
        %v725 = vshrl.u32 %v724, 7
        %v726 = vsub.s32 %v723, %v725
        %v727 = vrot.slane %v720, %v726
        %v728 = vcombine.high %v727, 0.0
        %v729 = vcombine.low %v651, %v658
        %v731 = vunpack.c.l.s4 1983009808
        %v732 = vunpack.c.0.s8 %v731
        %v733 = vlaneseq
        %v734 = vshrl.u32 %v733, 7
        %v735 = vsub.s32 %v732, %v734
        %v736 = vrot.slane %v729, %v735
        %v737 = vcombine.low %v675, %v676
        %v739 = vunpack.c.l.s4 1983009808
        %v740 = vunpack.c.0.s8 %v739
        %v741 = vlaneseq
        %v742 = vshrl.u32 %v741, 7
        %v743 = vsub.s32 %v740, %v742
        %v744 = vrot.slane %v737, %v743
        %v745 = vcombine.low %v736, %v744
        %v747 = vunpack.c.l.s4 1934713408
        %v748 = vunpack.c.0.s8 %v747
        %v749 = vlaneseq
        %v750 = vshrl.u32 %v749, 7
        %v751 = vsub.s32 %v748, %v750
        %v752 = vrot.slane %v745, %v751
        %v753 = vcombine.high %v752, 0.0
        %v754 = vcombine.low %v667, %v674
        %v756 = vunpack.c.l.s4 1983009808
        %v757 = vunpack.c.0.s8 %v756
        %v758 = vlaneseq
        %v759 = vshrl.u32 %v758, 7
        %v760 = vsub.s32 %v757, %v759
        %v761 = vrot.slane %v754, %v760
        %v762 = vcombine.low %v677, %v678
        %v764 = vunpack.c.l.s4 1983009808
        %v765 = vunpack.c.0.s8 %v764
        %v766 = vlaneseq
        %v767 = vshrl.u32 %v766, 7
        %v768 = vsub.s32 %v765, %v767
        %v769 = vrot.slane %v762, %v768
        %v770 = vcombine.low %v761, %v769
        %v772 = vunpack.c.l.s4 1934713408
        %v773 = vunpack.c.0.s8 %v772
        %v774 = vlaneseq
        %v775 = vshrl.u32 %v774, 7
        %v776 = vsub.s32 %v773, %v775
        %v777 = vrot.slane %v770, %v776
        %v778 = vcombine.high %v777, 0.0
        %779 = vrot.lane.b32.xlu0 %v533, 96
        %v780 = vpop.permute.xlu0 %779
        %781 = vrot.lane.b32.xlu0 %v536, 96
        %v782 = vpop.permute.xlu0 %781
        %783 = vrot.lane.b32.xlu0 %v542, 96
        %v784 = vpop.permute.xlu0 %783
        %785 = vrot.lane.b32.xlu0 %v544, 96
        %v786 = vpop.permute.xlu0 %785
        %v791 = vcombine.high %v780, 0.0
        %v793 = vunpack.c.l.s4 1983009808
        %v794 = vunpack.c.0.s8 %v793
        %v795 = vlaneseq
        %v796 = vshrl.u32 %v795, 7
        %v797 = vsub.s32 %v794, %v796
        %v798 = vrot.slane %v780, %v797
        %v800 = vunpack.c.l.s4 1983009808
        %v801 = vunpack.c.0.s8 %v800
        %v802 = vlaneseq
        %v803 = vshrl.u32 %v802, 7
        %v804 = vsub.s32 %v801, %v803
        %v805 = vrot.slane %v791, %v804
        %v806 = vcombine.high %v784, 0.0
        %v808 = vunpack.c.l.s4 1983009808
        %v809 = vunpack.c.0.s8 %v808
        %v810 = vlaneseq
        %v811 = vshrl.u32 %v810, 7
        %v812 = vsub.s32 %v809, %v811
        %v813 = vrot.slane %v784, %v812
        %v815 = vunpack.c.l.s4 1983009808
        %v816 = vunpack.c.0.s8 %v815
        %v817 = vlaneseq
        %v818 = vshrl.u32 %v817, 7
        %v819 = vsub.s32 %v816, %v818
        %v820 = vrot.slane %v806, %v819
        %v821 = vcombine.low %v798, %v813
        %v822 = vcombine.high %v798, %v813
        %v824 = vunpack.c.l.s4 1934713408
        %v825 = vunpack.c.0.s8 %v824
        %v826 = vlaneseq
        %v827 = vshrl.u32 %v826, 7
        %v828 = vsub.s32 %v825, %v827
        %v829 = vrot.slane %v821, %v828
        %v831 = vunpack.c.l.s4 1934713408
        %v832 = vunpack.c.0.s8 %v831
        %v833 = vlaneseq
        %v834 = vshrl.u32 %v833, 7
        %v835 = vsub.s32 %v832, %v834
        %v836 = vrot.slane %v822, %v835
        %v837 = vcombine.low %v805, %v820
        %v838 = vcombine.high %v805, %v820
        %v840 = vunpack.c.l.s4 1934713408
        %v841 = vunpack.c.0.s8 %v840
        %v842 = vlaneseq
        %v843 = vshrl.u32 %v842, 7
        %v844 = vsub.s32 %v841, %v843
        %v845 = vrot.slane %v837, %v844
        %v847 = vunpack.c.l.s4 1934713408
        %v848 = vunpack.c.0.s8 %v847
        %v849 = vlaneseq
        %v850 = vshrl.u32 %v849, 7
        %v851 = vsub.s32 %v848, %v850
        %v852 = vrot.slane %v838, %v851
        %v853 = vcombine.high %v829, 0.0
        %v854 = vcombine.high %v836, 0.0
        %v855 = vcombine.high %v845, 0.0
        %v856 = vcombine.high %v852, 0.0
        %v857 = vcombine.high %v782, 0.0
        %v859 = vunpack.c.l.s4 1983009808
        %v860 = vunpack.c.0.s8 %v859
        %v861 = vlaneseq
        %v862 = vshrl.u32 %v861, 7
        %v863 = vsub.s32 %v860, %v862
        %v864 = vrot.slane %v782, %v863
        %v866 = vunpack.c.l.s4 1983009808
        %v867 = vunpack.c.0.s8 %v866
        %v868 = vlaneseq
        %v869 = vshrl.u32 %v868, 7
        %v870 = vsub.s32 %v867, %v869
        %v871 = vrot.slane %v857, %v870
        %v872 = vcombine.high %v786, 0.0
        %v874 = vunpack.c.l.s4 1983009808
        %v875 = vunpack.c.0.s8 %v874
        %v876 = vlaneseq
        %v877 = vshrl.u32 %v876, 7
        %v878 = vsub.s32 %v875, %v877
        %v879 = vrot.slane %v786, %v878
        %v881 = vunpack.c.l.s4 1983009808
        %v882 = vunpack.c.0.s8 %v881
        %v883 = vlaneseq
        %v884 = vshrl.u32 %v883, 7
        %v885 = vsub.s32 %v882, %v884
        %v886 = vrot.slane %v872, %v885
        %v887 = vcombine.low %v864, %v879
        %v888 = vcombine.high %v864, %v879
        %v890 = vunpack.c.l.s4 1934713408
        %v891 = vunpack.c.0.s8 %v890
        %v892 = vlaneseq
        %v893 = vshrl.u32 %v892, 7
        %v894 = vsub.s32 %v891, %v893
        %v895 = vrot.slane %v887, %v894
        %v897 = vunpack.c.l.s4 1934713408
        %v898 = vunpack.c.0.s8 %v897
        %v899 = vlaneseq
        %v900 = vshrl.u32 %v899, 7
        %v901 = vsub.s32 %v898, %v900
        %v902 = vrot.slane %v888, %v901
        %v903 = vcombine.low %v871, %v886
        %v904 = vcombine.high %v871, %v886
        %v906 = vunpack.c.l.s4 1934713408
        %v907 = vunpack.c.0.s8 %v906
        %v908 = vlaneseq
        %v909 = vshrl.u32 %v908, 7
        %v910 = vsub.s32 %v907, %v909
        %v911 = vrot.slane %v903, %v910
        %v913 = vunpack.c.l.s4 1934713408
        %v914 = vunpack.c.0.s8 %v913
        %v915 = vlaneseq
        %v916 = vshrl.u32 %v915, 7
        %v917 = vsub.s32 %v914, %v916
        %v918 = vrot.slane %v904, %v917
        %v919 = vcombine.high %v895, 0.0
        %v920 = vcombine.high %v902, 0.0
        %v921 = vcombine.high %v911, 0.0
        %v922 = vcombine.high %v918, 0.0
        %v923 = vcombine.low %v829, %v836
        %v925 = vunpack.c.l.s4 1983009808
        %v926 = vunpack.c.0.s8 %v925
        %v927 = vlaneseq
        %v928 = vshrl.u32 %v927, 7
        %v929 = vsub.s32 %v926, %v928
        %v930 = vrot.slane %v923, %v929
        %v931 = vcombine.low %v853, %v854
        %v933 = vunpack.c.l.s4 1983009808
        %v934 = vunpack.c.0.s8 %v933
        %v935 = vlaneseq
        %v936 = vshrl.u32 %v935, 7
        %v937 = vsub.s32 %v934, %v936
        %v938 = vrot.slane %v931, %v937
        %v939 = vcombine.low %v930, %v938
        %v941 = vunpack.c.l.s4 1934713408
        %v942 = vunpack.c.0.s8 %v941
        %v943 = vlaneseq
        %v944 = vshrl.u32 %v943, 7
        %v945 = vsub.s32 %v942, %v944
        %v946 = vrot.slane %v939, %v945
        %v947 = vcombine.high %v946, 0.0
        %v948 = vcombine.low %v845, %v852
        %v950 = vunpack.c.l.s4 1983009808
        %v951 = vunpack.c.0.s8 %v950
        %v952 = vlaneseq
        %v953 = vshrl.u32 %v952, 7
        %v954 = vsub.s32 %v951, %v953
        %v955 = vrot.slane %v948, %v954
        %v956 = vcombine.low %v855, %v856
        %v958 = vunpack.c.l.s4 1983009808
        %v959 = vunpack.c.0.s8 %v958
        %v960 = vlaneseq
        %v961 = vshrl.u32 %v960, 7
        %v962 = vsub.s32 %v959, %v961
        %v963 = vrot.slane %v956, %v962
        %v964 = vcombine.low %v955, %v963
        %v966 = vunpack.c.l.s4 1934713408
        %v967 = vunpack.c.0.s8 %v966
        %v968 = vlaneseq
        %v969 = vshrl.u32 %v968, 7
        %v970 = vsub.s32 %v967, %v969
        %v971 = vrot.slane %v964, %v970
        %v972 = vcombine.high %v971, 0.0
        %v973 = vcombine.low %v895, %v902
        %v975 = vunpack.c.l.s4 1983009808
        %v976 = vunpack.c.0.s8 %v975
        %v977 = vlaneseq
        %v978 = vshrl.u32 %v977, 7
        %v979 = vsub.s32 %v976, %v978
        %v980 = vrot.slane %v973, %v979
        %v981 = vcombine.low %v919, %v920
        %v983 = vunpack.c.l.s4 1983009808
        %v984 = vunpack.c.0.s8 %v983
        %v985 = vlaneseq
        %v986 = vshrl.u32 %v985, 7
        %v987 = vsub.s32 %v984, %v986
        %v988 = vrot.slane %v981, %v987
        %v989 = vcombine.low %v980, %v988
        %v991 = vunpack.c.l.s4 1934713408
        %v992 = vunpack.c.0.s8 %v991
        %v993 = vlaneseq
        %v994 = vshrl.u32 %v993, 7
        %v995 = vsub.s32 %v992, %v994
        %v996 = vrot.slane %v989, %v995
        %v997 = vcombine.high %v996, 0.0
        %v998 = vcombine.low %v911, %v918
        %v1000 = vunpack.c.l.s4 1983009808
        %v1001 = vunpack.c.0.s8 %v1000
        %v1002 = vlaneseq
        %v1003 = vshrl.u32 %v1002, 7
        %v1004 = vsub.s32 %v1001, %v1003
        %v1005 = vrot.slane %v998, %v1004
        %v1006 = vcombine.low %v921, %v922
        %v1008 = vunpack.c.l.s4 1983009808
        %v1009 = vunpack.c.0.s8 %v1008
        %v1010 = vlaneseq
        %v1011 = vshrl.u32 %v1010, 7
        %v1012 = vsub.s32 %v1009, %v1011
        %v1013 = vrot.slane %v1006, %v1012
        %v1014 = vcombine.low %v1005, %v1013
        %v1016 = vunpack.c.l.s4 1934713408
        %v1017 = vunpack.c.0.s8 %v1016
        %v1018 = vlaneseq
        %v1019 = vshrl.u32 %v1018, 7
        %v1020 = vsub.s32 %v1017, %v1019
        %v1021 = vrot.slane %v1014, %v1020
        %v1022 = vcombine.high %v1021, 0.0
        %1023 = vrot.lane.b32.xlu0 %v533, 64
        %v1024 = vpop.permute.xlu0 %1023
        %1025 = vrot.lane.b32.xlu0 %v536, 64
        %v1026 = vpop.permute.xlu0 %1025
        %1027 = vrot.lane.b32.xlu0 %v542, 64
        %v1028 = vpop.permute.xlu0 %1027
        %1029 = vrot.lane.b32.xlu0 %v544, 64
        %v1030 = vpop.permute.xlu0 %1029
        %v1035 = vcombine.high %v1024, 0.0
        %v1037 = vunpack.c.l.s4 1983009808
        %v1038 = vunpack.c.0.s8 %v1037
        %v1039 = vlaneseq
        %v1040 = vshrl.u32 %v1039, 7
        %v1041 = vsub.s32 %v1038, %v1040
        %v1042 = vrot.slane %v1024, %v1041
        %v1044 = vunpack.c.l.s4 1983009808
        %v1045 = vunpack.c.0.s8 %v1044
        %v1046 = vlaneseq
        %v1047 = vshrl.u32 %v1046, 7
        %v1048 = vsub.s32 %v1045, %v1047
        %v1049 = vrot.slane %v1035, %v1048
        %v1050 = vcombine.high %v1028, 0.0
        %v1052 = vunpack.c.l.s4 1983009808
        %v1053 = vunpack.c.0.s8 %v1052
        %v1054 = vlaneseq
        %v1055 = vshrl.u32 %v1054, 7
        %v1056 = vsub.s32 %v1053, %v1055
        %v1057 = vrot.slane %v1028, %v1056
        %v1059 = vunpack.c.l.s4 1983009808
        %v1060 = vunpack.c.0.s8 %v1059
        %v1061 = vlaneseq
        %v1062 = vshrl.u32 %v1061, 7
        %v1063 = vsub.s32 %v1060, %v1062
        %v1064 = vrot.slane %v1050, %v1063
        %v1065 = vcombine.low %v1042, %v1057
        %v1066 = vcombine.high %v1042, %v1057
        %v1068 = vunpack.c.l.s4 1934713408
        %v1069 = vunpack.c.0.s8 %v1068
        %v1070 = vlaneseq
        %v1071 = vshrl.u32 %v1070, 7
        %v1072 = vsub.s32 %v1069, %v1071
        %v1073 = vrot.slane %v1065, %v1072
        %v1075 = vunpack.c.l.s4 1934713408
        %v1076 = vunpack.c.0.s8 %v1075
        %v1077 = vlaneseq
        %v1078 = vshrl.u32 %v1077, 7
        %v1079 = vsub.s32 %v1076, %v1078
        %v1080 = vrot.slane %v1066, %v1079
        %v1081 = vcombine.low %v1049, %v1064
        %v1082 = vcombine.high %v1049, %v1064
        %v1084 = vunpack.c.l.s4 1934713408
        %v1085 = vunpack.c.0.s8 %v1084
        %v1086 = vlaneseq
        %v1087 = vshrl.u32 %v1086, 7
        %v1088 = vsub.s32 %v1085, %v1087
        %v1089 = vrot.slane %v1081, %v1088
        %v1091 = vunpack.c.l.s4 1934713408
        %v1092 = vunpack.c.0.s8 %v1091
        %v1093 = vlaneseq
        %v1094 = vshrl.u32 %v1093, 7
        %v1095 = vsub.s32 %v1092, %v1094
        %v1096 = vrot.slane %v1082, %v1095
        %v1097 = vcombine.high %v1073, 0.0
        %v1098 = vcombine.high %v1080, 0.0
        %v1099 = vcombine.high %v1089, 0.0
        %v1100 = vcombine.high %v1096, 0.0
        %v1101 = vcombine.high %v1026, 0.0
        %v1103 = vunpack.c.l.s4 1983009808
        %v1104 = vunpack.c.0.s8 %v1103
        %v1105 = vlaneseq
        %v1106 = vshrl.u32 %v1105, 7
        %v1107 = vsub.s32 %v1104, %v1106
        %v1108 = vrot.slane %v1026, %v1107
        %v1110 = vunpack.c.l.s4 1983009808
        %v1111 = vunpack.c.0.s8 %v1110
        %v1112 = vlaneseq
        %v1113 = vshrl.u32 %v1112, 7
        %v1114 = vsub.s32 %v1111, %v1113
        %v1115 = vrot.slane %v1101, %v1114
        %v1116 = vcombine.high %v1030, 0.0
        %v1118 = vunpack.c.l.s4 1983009808
        %v1119 = vunpack.c.0.s8 %v1118
        %v1120 = vlaneseq
        %v1121 = vshrl.u32 %v1120, 7
        %v1122 = vsub.s32 %v1119, %v1121
        %v1123 = vrot.slane %v1030, %v1122
        %v1125 = vunpack.c.l.s4 1983009808
        %v1126 = vunpack.c.0.s8 %v1125
        %v1127 = vlaneseq
        %v1128 = vshrl.u32 %v1127, 7
        %v1129 = vsub.s32 %v1126, %v1128
        %v1130 = vrot.slane %v1116, %v1129
        %v1131 = vcombine.low %v1108, %v1123
        %v1132 = vcombine.high %v1108, %v1123
        %v1134 = vunpack.c.l.s4 1934713408
        %v1135 = vunpack.c.0.s8 %v1134
        %v1136 = vlaneseq
        %v1137 = vshrl.u32 %v1136, 7
        %v1138 = vsub.s32 %v1135, %v1137
        %v1139 = vrot.slane %v1131, %v1138
        %v1141 = vunpack.c.l.s4 1934713408
        %v1142 = vunpack.c.0.s8 %v1141
        %v1143 = vlaneseq
        %v1144 = vshrl.u32 %v1143, 7
        %v1145 = vsub.s32 %v1142, %v1144
        %v1146 = vrot.slane %v1132, %v1145
        %v1147 = vcombine.low %v1115, %v1130
        %v1148 = vcombine.high %v1115, %v1130
        %v1150 = vunpack.c.l.s4 1934713408
        %v1151 = vunpack.c.0.s8 %v1150
        %v1152 = vlaneseq
        %v1153 = vshrl.u32 %v1152, 7
        %v1154 = vsub.s32 %v1151, %v1153
        %v1155 = vrot.slane %v1147, %v1154
        %v1157 = vunpack.c.l.s4 1934713408
        %v1158 = vunpack.c.0.s8 %v1157
        %v1159 = vlaneseq
        %v1160 = vshrl.u32 %v1159, 7
        %v1161 = vsub.s32 %v1158, %v1160
        %v1162 = vrot.slane %v1148, %v1161
        %v1163 = vcombine.high %v1139, 0.0
        %v1164 = vcombine.high %v1146, 0.0
        %v1165 = vcombine.high %v1155, 0.0
        %v1166 = vcombine.high %v1162, 0.0
        %v1167 = vcombine.low %v1073, %v1080
        %v1169 = vunpack.c.l.s4 1983009808
        %v1170 = vunpack.c.0.s8 %v1169
        %v1171 = vlaneseq
        %v1172 = vshrl.u32 %v1171, 7
        %v1173 = vsub.s32 %v1170, %v1172
        %v1174 = vrot.slane %v1167, %v1173
        %v1175 = vcombine.low %v1097, %v1098
        %v1177 = vunpack.c.l.s4 1983009808
        %v1178 = vunpack.c.0.s8 %v1177
        %v1179 = vlaneseq
        %v1180 = vshrl.u32 %v1179, 7
        %v1181 = vsub.s32 %v1178, %v1180
        %v1182 = vrot.slane %v1175, %v1181
        %v1183 = vcombine.low %v1174, %v1182
        %v1185 = vunpack.c.l.s4 1934713408
        %v1186 = vunpack.c.0.s8 %v1185
        %v1187 = vlaneseq
        %v1188 = vshrl.u32 %v1187, 7
        %v1189 = vsub.s32 %v1186, %v1188
        %v1190 = vrot.slane %v1183, %v1189
        %v1191 = vcombine.high %v1190, 0.0
        %v1192 = vcombine.low %v1089, %v1096
        %v1194 = vunpack.c.l.s4 1983009808
        %v1195 = vunpack.c.0.s8 %v1194
        %v1196 = vlaneseq
        %v1197 = vshrl.u32 %v1196, 7
        %v1198 = vsub.s32 %v1195, %v1197
        %v1199 = vrot.slane %v1192, %v1198
        %v1200 = vcombine.low %v1099, %v1100
        %v1202 = vunpack.c.l.s4 1983009808
        %v1203 = vunpack.c.0.s8 %v1202
        %v1204 = vlaneseq
        %v1205 = vshrl.u32 %v1204, 7
        %v1206 = vsub.s32 %v1203, %v1205
        %v1207 = vrot.slane %v1200, %v1206
        %v1208 = vcombine.low %v1199, %v1207
        %v1210 = vunpack.c.l.s4 1934713408
        %v1211 = vunpack.c.0.s8 %v1210
        %v1212 = vlaneseq
        %v1213 = vshrl.u32 %v1212, 7
        %v1214 = vsub.s32 %v1211, %v1213
        %v1215 = vrot.slane %v1208, %v1214
        %v1216 = vcombine.high %v1215, 0.0
        %v1217 = vcombine.low %v1139, %v1146
        %v1219 = vunpack.c.l.s4 1983009808
        %v1220 = vunpack.c.0.s8 %v1219
        %v1221 = vlaneseq
        %v1222 = vshrl.u32 %v1221, 7
        %v1223 = vsub.s32 %v1220, %v1222
        %v1224 = vrot.slane %v1217, %v1223
        %v1225 = vcombine.low %v1163, %v1164
        %v1227 = vunpack.c.l.s4 1983009808
        %v1228 = vunpack.c.0.s8 %v1227
        %v1229 = vlaneseq
        %v1230 = vshrl.u32 %v1229, 7
        %v1231 = vsub.s32 %v1228, %v1230
        %v1232 = vrot.slane %v1225, %v1231
        %v1233 = vcombine.low %v1224, %v1232
        %v1235 = vunpack.c.l.s4 1934713408
        %v1236 = vunpack.c.0.s8 %v1235
        %v1237 = vlaneseq
        %v1238 = vshrl.u32 %v1237, 7
        %v1239 = vsub.s32 %v1236, %v1238
        %v1240 = vrot.slane %v1233, %v1239
        %v1241 = vcombine.high %v1240, 0.0
        %v1242 = vcombine.low %v1155, %v1162
        %v1244 = vunpack.c.l.s4 1983009808
        %v1245 = vunpack.c.0.s8 %v1244
        %v1246 = vlaneseq
        %v1247 = vshrl.u32 %v1246, 7
        %v1248 = vsub.s32 %v1245, %v1247
        %v1249 = vrot.slane %v1242, %v1248
        %v1250 = vcombine.low %v1165, %v1166
        %v1252 = vunpack.c.l.s4 1983009808
        %v1253 = vunpack.c.0.s8 %v1252
        %v1254 = vlaneseq
        %v1255 = vshrl.u32 %v1254, 7
        %v1256 = vsub.s32 %v1253, %v1255
        %v1257 = vrot.slane %v1250, %v1256
        %v1258 = vcombine.low %v1249, %v1257
        %v1260 = vunpack.c.l.s4 1934713408
        %v1261 = vunpack.c.0.s8 %v1260
        %v1262 = vlaneseq
        %v1263 = vshrl.u32 %v1262, 7
        %v1264 = vsub.s32 %v1261, %v1263
        %v1265 = vrot.slane %v1258, %v1264
        %v1266 = vcombine.high %v1265, 0.0
        %v1267 = vpack.c.bf16 %v702, %v702
        %v1268 = vpack.c.bf16 %v703, %v703
        %v1269 = vpack.c.bf16 %v727, %v727
        %v1270 = vpack.c.bf16 %v728, %v728
        %v1271 = vpack.c.bf16 %v752, %v752
        %v1272 = vpack.c.bf16 %v753, %v753
        %v1273 = vpack.c.bf16 %v777, %v777
        %v1274 = vpack.c.bf16 %v778, %v778
        %v1275 = vpack.c.bf16 %v946, %v946
        %v1276 = vpack.c.bf16 %v947, %v947
        %v1277 = vpack.c.bf16 %v971, %v971
        %v1278 = vpack.c.bf16 %v972, %v972
        %v1279 = vpack.c.bf16 %v996, %v996
        %v1280 = vpack.c.bf16 %v997, %v997
        %v1281 = vpack.c.bf16 %v1021, %v1021
        %v1282 = vpack.c.bf16 %v1022, %v1022
        %vm1283 = vcmask 130048
        %v1285 = vsel %vm1283, %v1267, 0
        %v1288 = vsel %vm1283, %v1275, 0
        %1290 = vmatprep.subr.bf16.mxu0 0
        %1291 = vmatpush1.bf16.xpose.msra.mxu0 %v1288
        %1292 = vmatprep.subr.bf16.mxu0 0
        %1293 = vmatpush1.bf16.xpose.msra.mxu0 0
        %1294 = vmatprep.subr.bf16.mxu0 0
        %1295 = vmatpush1.bf16.xpose.msra.mxu0 0
        %1296 = vmatprep.subr.bf16.mxu0 0
        %1297 = vmatpush1.bf16.xpose.msra.mxu0 0
        %1298 = vmatprep.subr.bf16.mxu0 0
        %1299 = vmatpush1.bf16.xpose.msra.mxu0 0
        %1300 = vmatprep.subr.bf16.mxu0 0
        %1301 = vmatpush1.bf16.xpose.msra.mxu0 0
        %1302 = vmatprep.subr.bf16.mxu0 0
        %1303 = vmatpush1.bf16.xpose.msra.mxu0 0
        %1304 = vmatprep.subr.bf16.mxu0 0
        %1305 = vmatpush1.bf16.xpose.msra.mxu0 0
        %1306 = vmatprep.subr.bf16.mxu0 0
        %1307 = vmatpush1.bf16.xpose.msra.mxu0 0
        %1308 = vmatprep.subr.bf16.mxu0 0
        %1309 = vmatpush1.bf16.xpose.msra.mxu0 0
        %1310 = vmatprep.subr.bf16.mxu0 0
        %1311 = vmatpush1.bf16.xpose.msra.mxu0 0
        %1312 = vmatprep.subr.bf16.mxu0 0
        %1313 = vmatpush1.bf16.xpose.msra.mxu0 0
        %1314 = vmatprep.subr.bf16.mxu0 0
        %1315 = vmatpush1.bf16.xpose.msra.mxu0 0
        %1316 = vmatprep.subr.bf16.mxu0 0
        %1317 = vmatpush1.bf16.xpose.msra.mxu0 0
        %1318 = vmatprep.subr.bf16.mxu0 0
        %1319 = vmatpush1.bf16.xpose.msra.mxu0 0
        %1320 = vmatprep.subr.bf16.mxu0 0
        %1321 = vmatpush1.bf16.xpose.msra.mxu0 0
        %1322 = vmatprep.mubr.bf16.mxu0 0
        %1323 = vmatmul.mubr.bf16.gmra.mrb[0].mxu0 %v1285
        %v1324 = vpop.f32.mrb[0].mxu0
        %v1325 = vadd.f32 0.0, %v1324
        %v1326 = vpop.f32.mrb[0].mxu0
        %v1327 = vpop.f32.mrb[0].mxu0
        %v1328 = vpop.f32.mrb[0].mxu0
        %1329 = vdwg.mxu0
        %v1331 = vsel %vm1283, %v1268, 0
        %v1334 = vsel %vm1283, %v1276, 0
        %1336 = vmatprep.subr.bf16.mxu0 0
        %1337 = vmatpush1.bf16.xpose.msra.mxu0 %v1334
        %1338 = vmatprep.subr.bf16.mxu0 0
        %1339 = vmatpush1.bf16.xpose.msra.mxu0 0
        %1340 = vmatprep.subr.bf16.mxu0 0
        %1341 = vmatpush1.bf16.xpose.msra.mxu0 0
        %1342 = vmatprep.subr.bf16.mxu0 0
        %1343 = vmatpush1.bf16.xpose.msra.mxu0 0
        %1344 = vmatprep.subr.bf16.mxu0 0
        %1345 = vmatpush1.bf16.xpose.msra.mxu0 0
        %1346 = vmatprep.subr.bf16.mxu0 0
        %1347 = vmatpush1.bf16.xpose.msra.mxu0 0
        %1348 = vmatprep.subr.bf16.mxu0 0
        %1349 = vmatpush1.bf16.xpose.msra.mxu0 0
        %1350 = vmatprep.subr.bf16.mxu0 0
        %1351 = vmatpush1.bf16.xpose.msra.mxu0 0
        %1352 = vmatprep.subr.bf16.mxu0 0
        %1353 = vmatpush1.bf16.xpose.msra.mxu0 0
        %1354 = vmatprep.subr.bf16.mxu0 0
        %1355 = vmatpush1.bf16.xpose.msra.mxu0 0
        %1356 = vmatprep.subr.bf16.mxu0 0
        %1357 = vmatpush1.bf16.xpose.msra.mxu0 0
        %1358 = vmatprep.subr.bf16.mxu0 0
        %1359 = vmatpush1.bf16.xpose.msra.mxu0 0
        %1360 = vmatprep.subr.bf16.mxu0 0
        %1361 = vmatpush1.bf16.xpose.msra.mxu0 0
        %1362 = vmatprep.subr.bf16.mxu0 0
        %1363 = vmatpush1.bf16.xpose.msra.mxu0 0
        %1364 = vmatprep.subr.bf16.mxu0 0
        %1365 = vmatpush1.bf16.xpose.msra.mxu0 0
        %1366 = vmatprep.subr.bf16.mxu0 0
        %1367 = vmatpush1.bf16.xpose.msra.mxu0 0
        %1368 = vmatprep.mubr.bf16.mxu0 0
        %1369 = vmatmul.mubr.bf16.gmra.mrb[0].mxu0 %v1331
        %v1370 = vpop.f32.mrb[0].mxu0
        %v1371 = vadd.f32 0.0, %v1370
        %v1372 = vpop.f32.mrb[0].mxu0
        %v1373 = vpop.f32.mrb[0].mxu0
        %v1374 = vpop.f32.mrb[0].mxu0
        %1375 = vdwg.mxu0
        %v1377 = vsel %vm1283, %v1269, 0
        %v1380 = vsel %vm1283, %v1277, 0
        %1382 = vmatprep.subr.bf16.mxu0 0
        %1383 = vmatpush1.bf16.xpose.msra.mxu0 %v1380
        %1384 = vmatprep.subr.bf16.mxu0 0
        %1385 = vmatpush1.bf16.xpose.msra.mxu0 0
        %1386 = vmatprep.subr.bf16.mxu0 0
        %1387 = vmatpush1.bf16.xpose.msra.mxu0 0
        %1388 = vmatprep.subr.bf16.mxu0 0
        %1389 = vmatpush1.bf16.xpose.msra.mxu0 0
        %1390 = vmatprep.subr.bf16.mxu0 0
        %1391 = vmatpush1.bf16.xpose.msra.mxu0 0
        %1392 = vmatprep.subr.bf16.mxu0 0
        %1393 = vmatpush1.bf16.xpose.msra.mxu0 0
        %1394 = vmatprep.subr.bf16.mxu0 0
        %1395 = vmatpush1.bf16.xpose.msra.mxu0 0
        %1396 = vmatprep.subr.bf16.mxu0 0
        %1397 = vmatpush1.bf16.xpose.msra.mxu0 0
        %1398 = vmatprep.subr.bf16.mxu0 0
        %1399 = vmatpush1.bf16.xpose.msra.mxu0 0
        %1400 = vmatprep.subr.bf16.mxu0 0
        %1401 = vmatpush1.bf16.xpose.msra.mxu0 0
        %1402 = vmatprep.subr.bf16.mxu0 0
        %1403 = vmatpush1.bf16.xpose.msra.mxu0 0
        %1404 = vmatprep.subr.bf16.mxu0 0
        %1405 = vmatpush1.bf16.xpose.msra.mxu0 0
        %1406 = vmatprep.subr.bf16.mxu0 0
        %1407 = vmatpush1.bf16.xpose.msra.mxu0 0
        %1408 = vmatprep.subr.bf16.mxu0 0
        %1409 = vmatpush1.bf16.xpose.msra.mxu0 0
        %1410 = vmatprep.subr.bf16.mxu0 0
        %1411 = vmatpush1.bf16.xpose.msra.mxu0 0
        %1412 = vmatprep.subr.bf16.mxu0 0
        %1413 = vmatpush1.bf16.xpose.msra.mxu0 0
        %1414 = vmatprep.mubr.bf16.mxu0 0
        %1415 = vmatmul.mubr.bf16.gmra.mrb[0].mxu0 %v1377
        %v1416 = vpop.f32.mrb[0].mxu0
        %v1417 = vadd.f32 0.0, %v1416
        %v1418 = vpop.f32.mrb[0].mxu0
        %v1419 = vpop.f32.mrb[0].mxu0
        %v1420 = vpop.f32.mrb[0].mxu0
        %1421 = vdwg.mxu0
        %v1423 = vsel %vm1283, %v1270, 0
        %v1426 = vsel %vm1283, %v1278, 0
        %1428 = vmatprep.subr.bf16.mxu0 0
        %1429 = vmatpush1.bf16.xpose.msra.mxu0 %v1426
        %1430 = vmatprep.subr.bf16.mxu0 0
        %1431 = vmatpush1.bf16.xpose.msra.mxu0 0
        %1432 = vmatprep.subr.bf16.mxu0 0
        %1433 = vmatpush1.bf16.xpose.msra.mxu0 0
        %1434 = vmatprep.subr.bf16.mxu0 0
        %1435 = vmatpush1.bf16.xpose.msra.mxu0 0
        %1436 = vmatprep.subr.bf16.mxu0 0
        %1437 = vmatpush1.bf16.xpose.msra.mxu0 0
        %1438 = vmatprep.subr.bf16.mxu0 0
        %1439 = vmatpush1.bf16.xpose.msra.mxu0 0
        %1440 = vmatprep.subr.bf16.mxu0 0
        %1441 = vmatpush1.bf16.xpose.msra.mxu0 0
        %1442 = vmatprep.subr.bf16.mxu0 0
        %1443 = vmatpush1.bf16.xpose.msra.mxu0 0
        %1444 = vmatprep.subr.bf16.mxu0 0
        %1445 = vmatpush1.bf16.xpose.msra.mxu0 0
        %1446 = vmatprep.subr.bf16.mxu0 0
        %1447 = vmatpush1.bf16.xpose.msra.mxu0 0
        %1448 = vmatprep.subr.bf16.mxu0 0
        %1449 = vmatpush1.bf16.xpose.msra.mxu0 0
        %1450 = vmatprep.subr.bf16.mxu0 0
        %1451 = vmatpush1.bf16.xpose.msra.mxu0 0
        %1452 = vmatprep.subr.bf16.mxu0 0
        %1453 = vmatpush1.bf16.xpose.msra.mxu0 0
        %1454 = vmatprep.subr.bf16.mxu0 0
        %1455 = vmatpush1.bf16.xpose.msra.mxu0 0
        %1456 = vmatprep.subr.bf16.mxu0 0
        %1457 = vmatpush1.bf16.xpose.msra.mxu0 0
        %1458 = vmatprep.subr.bf16.mxu0 0
        %1459 = vmatpush1.bf16.xpose.msra.mxu0 0
        %1460 = vmatprep.mubr.bf16.mxu0 0
        %1461 = vmatmul.mubr.bf16.gmra.mrb[0].mxu0 %v1423
        %v1462 = vpop.f32.mrb[0].mxu0
        %v1463 = vadd.f32 0.0, %v1462
        %v1464 = vpop.f32.mrb[0].mxu0
        %v1465 = vpop.f32.mrb[0].mxu0
        %v1466 = vpop.f32.mrb[0].mxu0
        %1467 = vdwg.mxu0
        %v1469 = vsel %vm1283, %v1271, 0
        %v1472 = vsel %vm1283, %v1279, 0
        %1474 = vmatprep.subr.bf16.mxu0 0
        %1475 = vmatpush1.bf16.xpose.msra.mxu0 %v1472
        %1476 = vmatprep.subr.bf16.mxu0 0
        %1477 = vmatpush1.bf16.xpose.msra.mxu0 0
        %1478 = vmatprep.subr.bf16.mxu0 0
        %1479 = vmatpush1.bf16.xpose.msra.mxu0 0
        %1480 = vmatprep.subr.bf16.mxu0 0
        %1481 = vmatpush1.bf16.xpose.msra.mxu0 0
        %1482 = vmatprep.subr.bf16.mxu0 0
        %1483 = vmatpush1.bf16.xpose.msra.mxu0 0
        %1484 = vmatprep.subr.bf16.mxu0 0
        %1485 = vmatpush1.bf16.xpose.msra.mxu0 0
        %1486 = vmatprep.subr.bf16.mxu0 0
        %1487 = vmatpush1.bf16.xpose.msra.mxu0 0
        %1488 = vmatprep.subr.bf16.mxu0 0
        %1489 = vmatpush1.bf16.xpose.msra.mxu0 0
        %1490 = vmatprep.subr.bf16.mxu0 0
        %1491 = vmatpush1.bf16.xpose.msra.mxu0 0
        %1492 = vmatprep.subr.bf16.mxu0 0
        %1493 = vmatpush1.bf16.xpose.msra.mxu0 0
        %1494 = vmatprep.subr.bf16.mxu0 0
        %1495 = vmatpush1.bf16.xpose.msra.mxu0 0
        %1496 = vmatprep.subr.bf16.mxu0 0
        %1497 = vmatpush1.bf16.xpose.msra.mxu0 0
        %1498 = vmatprep.subr.bf16.mxu0 0
        %1499 = vmatpush1.bf16.xpose.msra.mxu0 0
        %1500 = vmatprep.subr.bf16.mxu0 0
        %1501 = vmatpush1.bf16.xpose.msra.mxu0 0
        %1502 = vmatprep.subr.bf16.mxu0 0
        %1503 = vmatpush1.bf16.xpose.msra.mxu0 0
        %1504 = vmatprep.subr.bf16.mxu0 0
        %1505 = vmatpush1.bf16.xpose.msra.mxu0 0
        %1506 = vmatprep.mubr.bf16.mxu0 0
        %1507 = vmatmul.mubr.bf16.gmra.mrb[0].mxu0 %v1469
        %v1508 = vpop.f32.mrb[0].mxu0
        %v1509 = vadd.f32 0.0, %v1508
        %v1510 = vpop.f32.mrb[0].mxu0
        %v1511 = vpop.f32.mrb[0].mxu0
        %v1512 = vpop.f32.mrb[0].mxu0
        %1513 = vdwg.mxu0
        %v1515 = vsel %vm1283, %v1272, 0
        %v1518 = vsel %vm1283, %v1280, 0
        %1520 = vmatprep.subr.bf16.mxu0 0
        %1521 = vmatpush1.bf16.xpose.msra.mxu0 %v1518
        %1522 = vmatprep.subr.bf16.mxu0 0
        %1523 = vmatpush1.bf16.xpose.msra.mxu0 0
        %1524 = vmatprep.subr.bf16.mxu0 0
        %1525 = vmatpush1.bf16.xpose.msra.mxu0 0
        %1526 = vmatprep.subr.bf16.mxu0 0
        %1527 = vmatpush1.bf16.xpose.msra.mxu0 0
        %1528 = vmatprep.subr.bf16.mxu0 0
        %1529 = vmatpush1.bf16.xpose.msra.mxu0 0
        %1530 = vmatprep.subr.bf16.mxu0 0
        %1531 = vmatpush1.bf16.xpose.msra.mxu0 0
        %1532 = vmatprep.subr.bf16.mxu0 0
        %1533 = vmatpush1.bf16.xpose.msra.mxu0 0
        %1534 = vmatprep.subr.bf16.mxu0 0
        %1535 = vmatpush1.bf16.xpose.msra.mxu0 0
        %1536 = vmatprep.subr.bf16.mxu0 0
        %1537 = vmatpush1.bf16.xpose.msra.mxu0 0
        %1538 = vmatprep.subr.bf16.mxu0 0
        %1539 = vmatpush1.bf16.xpose.msra.mxu0 0
        %1540 = vmatprep.subr.bf16.mxu0 0
        %1541 = vmatpush1.bf16.xpose.msra.mxu0 0
        %1542 = vmatprep.subr.bf16.mxu0 0
        %1543 = vmatpush1.bf16.xpose.msra.mxu0 0
        %1544 = vmatprep.subr.bf16.mxu0 0
        %1545 = vmatpush1.bf16.xpose.msra.mxu0 0
        %1546 = vmatprep.subr.bf16.mxu0 0
        %1547 = vmatpush1.bf16.xpose.msra.mxu0 0
        %1548 = vmatprep.subr.bf16.mxu0 0
        %1549 = vmatpush1.bf16.xpose.msra.mxu0 0
        %1550 = vmatprep.subr.bf16.mxu0 0
        %1551 = vmatpush1.bf16.xpose.msra.mxu0 0
        %1552 = vmatprep.mubr.bf16.mxu0 0
        %1553 = vmatmul.mubr.bf16.gmra.mrb[0].mxu0 %v1515
        %v1554 = vpop.f32.mrb[0].mxu0
        %v1555 = vadd.f32 0.0, %v1554
        %v1556 = vpop.f32.mrb[0].mxu0
        %v1557 = vpop.f32.mrb[0].mxu0
        %v1558 = vpop.f32.mrb[0].mxu0
        %1559 = vdwg.mxu0
        %v1561 = vsel %vm1283, %v1273, 0
        %v1564 = vsel %vm1283, %v1281, 0
        %1566 = vmatprep.subr.bf16.mxu0 0
        %1567 = vmatpush1.bf16.xpose.msra.mxu0 %v1564
        %1568 = vmatprep.subr.bf16.mxu0 0
        %1569 = vmatpush1.bf16.xpose.msra.mxu0 0
        %1570 = vmatprep.subr.bf16.mxu0 0
        %1571 = vmatpush1.bf16.xpose.msra.mxu0 0
        %1572 = vmatprep.subr.bf16.mxu0 0
        %1573 = vmatpush1.bf16.xpose.msra.mxu0 0
        %1574 = vmatprep.subr.bf16.mxu0 0
        %1575 = vmatpush1.bf16.xpose.msra.mxu0 0
        %1576 = vmatprep.subr.bf16.mxu0 0
        %1577 = vmatpush1.bf16.xpose.msra.mxu0 0
        %1578 = vmatprep.subr.bf16.mxu0 0
        %1579 = vmatpush1.bf16.xpose.msra.mxu0 0
        %1580 = vmatprep.subr.bf16.mxu0 0
        %1581 = vmatpush1.bf16.xpose.msra.mxu0 0
        %1582 = vmatprep.subr.bf16.mxu0 0
        %1583 = vmatpush1.bf16.xpose.msra.mxu0 0
        %1584 = vmatprep.subr.bf16.mxu0 0
        %1585 = vmatpush1.bf16.xpose.msra.mxu0 0
        %1586 = vmatprep.subr.bf16.mxu0 0
        %1587 = vmatpush1.bf16.xpose.msra.mxu0 0
        %1588 = vmatprep.subr.bf16.mxu0 0
        %1589 = vmatpush1.bf16.xpose.msra.mxu0 0
        %1590 = vmatprep.subr.bf16.mxu0 0
        %1591 = vmatpush1.bf16.xpose.msra.mxu0 0
        %1592 = vmatprep.subr.bf16.mxu0 0
        %1593 = vmatpush1.bf16.xpose.msra.mxu0 0
        %1594 = vmatprep.subr.bf16.mxu0 0
        %1595 = vmatpush1.bf16.xpose.msra.mxu0 0
        %1596 = vmatprep.subr.bf16.mxu0 0
        %1597 = vmatpush1.bf16.xpose.msra.mxu0 0
        %1598 = vmatprep.mubr.bf16.mxu0 0
        %1599 = vmatmul.mubr.bf16.gmra.mrb[0].mxu0 %v1561
        %v1600 = vpop.f32.mrb[0].mxu0
        %v1601 = vadd.f32 0.0, %v1600
        %v1602 = vpop.f32.mrb[0].mxu0
        %v1603 = vpop.f32.mrb[0].mxu0
        %v1604 = vpop.f32.mrb[0].mxu0
        %1605 = vdwg.mxu0
        %v1607 = vsel %vm1283, %v1274, 0
        %v1610 = vsel %vm1283, %v1282, 0
        %1612 = vmatprep.subr.bf16.mxu0 0
        %1613 = vmatpush1.bf16.xpose.msra.mxu0 %v1610
        %1614 = vmatprep.subr.bf16.mxu0 0
        %1615 = vmatpush1.bf16.xpose.msra.mxu0 0
        %1616 = vmatprep.subr.bf16.mxu0 0
        %1617 = vmatpush1.bf16.xpose.msra.mxu0 0
        %1618 = vmatprep.subr.bf16.mxu0 0
        %1619 = vmatpush1.bf16.xpose.msra.mxu0 0
        %1620 = vmatprep.subr.bf16.mxu0 0
        %1621 = vmatpush1.bf16.xpose.msra.mxu0 0
        %1622 = vmatprep.subr.bf16.mxu0 0
        %1623 = vmatpush1.bf16.xpose.msra.mxu0 0
        %1624 = vmatprep.subr.bf16.mxu0 0
        %1625 = vmatpush1.bf16.xpose.msra.mxu0 0
        %1626 = vmatprep.subr.bf16.mxu0 0
        %1627 = vmatpush1.bf16.xpose.msra.mxu0 0
        %1628 = vmatprep.subr.bf16.mxu0 0
        %1629 = vmatpush1.bf16.xpose.msra.mxu0 0
        %1630 = vmatprep.subr.bf16.mxu0 0
        %1631 = vmatpush1.bf16.xpose.msra.mxu0 0
        %1632 = vmatprep.subr.bf16.mxu0 0
        %1633 = vmatpush1.bf16.xpose.msra.mxu0 0
        %1634 = vmatprep.subr.bf16.mxu0 0
        %1635 = vmatpush1.bf16.xpose.msra.mxu0 0
        %1636 = vmatprep.subr.bf16.mxu0 0
        %1637 = vmatpush1.bf16.xpose.msra.mxu0 0
        %1638 = vmatprep.subr.bf16.mxu0 0
        %1639 = vmatpush1.bf16.xpose.msra.mxu0 0
        %1640 = vmatprep.subr.bf16.mxu0 0
        %1641 = vmatpush1.bf16.xpose.msra.mxu0 0
        %1642 = vmatprep.subr.bf16.mxu0 0
        %1643 = vmatpush1.bf16.xpose.msra.mxu0 0
        %1644 = vmatprep.mubr.bf16.mxu0 0
        %1645 = vmatmul.mubr.bf16.gmra.mrb[0].mxu0 %v1607
        %v1646 = vpop.f32.mrb[0].mxu0
        %v1647 = vadd.f32 0.0, %v1646
        %v1648 = vpop.f32.mrb[0].mxu0
        %v1649 = vpop.f32.mrb[0].mxu0
        %v1650 = vpop.f32.mrb[0].mxu0
        %1651 = vdwg.mxu0
        %v1652 = vmul.f32 %v1325, 0.25
        %v1653 = vmul.f32 %v1371, 0.25
        %v1654 = vmul.f32 %v1417, 0.25
        %v1655 = vmul.f32 %v1463, 0.25
        %v1656 = vmul.f32 %v1509, 0.25
        %v1657 = vmul.f32 %v1555, 0.25
        %v1658 = vmul.f32 %v1601, 0.25
        %v1659 = vmul.f32 %v1647, 0.25
        %vm1660 = vcmask 27648
        %v1661 = vsel %vm1660, %v1652, -inf
        %1662 = vmax.xlane.f32.xlu0 %v1661
        %v1663 = vpop.xlane.xlu0 %1662
        %v1664 = vsel %vm1660, %v1653, -inf
        %1665 = vmax.xlane.f32.xlu0 %v1664
        %v1666 = vpop.xlane.xlu0 %1665
        %v1667 = vsel %vm1660, %v1654, -inf
        %1668 = vmax.xlane.f32.xlu0 %v1667
        %v1669 = vpop.xlane.xlu0 %1668
        %v1670 = vsel %vm1660, %v1655, -inf
        %1671 = vmax.xlane.f32.xlu0 %v1670
        %v1672 = vpop.xlane.xlu0 %1671
        %v1673 = vsel %vm1660, %v1656, -inf
        %1674 = vmax.xlane.f32.xlu0 %v1673
        %v1675 = vpop.xlane.xlu0 %1674
        %v1676 = vsel %vm1660, %v1657, -inf
        %1677 = vmax.xlane.f32.xlu0 %v1676
        %v1678 = vpop.xlane.xlu0 %1677
        %v1679 = vsel %vm1660, %v1658, -inf
        %1680 = vmax.xlane.f32.xlu0 %v1679
        %v1681 = vpop.xlane.xlu0 %1680
        %v1682 = vsel %vm1660, %v1659, -inf
        %1683 = vmax.xlane.f32.xlu0 %v1682
        %v1684 = vpop.xlane.xlu0 %1683
        %v1685 = vsub.f32 %v1652, %v1663
        %v1686 = vsub.f32 %v1653, %v1666
        %v1687 = vsub.f32 %v1654, %v1669
        %v1688 = vsub.f32 %v1655, %v1672
        %v1689 = vsub.f32 %v1656, %v1675
        %v1690 = vsub.f32 %v1657, %v1678
        %v1691 = vsub.f32 %v1658, %v1681
        %v1692 = vsub.f32 %v1659, %v1684
        %v1693 = vmul.f32 %v1685, 1.442695
        %v1694 = vpow.pop %v1693
        %v1695 = vmul.f32 %v1686, 1.442695
        %v1696 = vpow.pop %v1695
        %v1697 = vmul.f32 %v1687, 1.442695
        %v1698 = vpow.pop %v1697
        %v1699 = vmul.f32 %v1688, 1.442695
        %v1700 = vpow.pop %v1699
        %v1701 = vmul.f32 %v1689, 1.442695
        %v1702 = vpow.pop %v1701
        %v1703 = vmul.f32 %v1690, 1.442695
        %v1704 = vpow.pop %v1703
        %v1705 = vmul.f32 %v1691, 1.442695
        %v1706 = vpow.pop %v1705
        %v1707 = vmul.f32 %v1692, 1.442695
        %v1708 = vpow.pop %v1707
        %v1709 = vsel %vm1660, %v1694, 0.0
        %1710 = vadd.xlane.f32.xlu0 %v1709
        %v1711 = vpop.xlane.xlu0 %1710
        %v1712 = vsel %vm1660, %v1696, 0.0
        %1713 = vadd.xlane.f32.xlu0 %v1712
        %v1714 = vpop.xlane.xlu0 %1713
        %v1715 = vsel %vm1660, %v1698, 0.0
        %1716 = vadd.xlane.f32.xlu0 %v1715
        %v1717 = vpop.xlane.xlu0 %1716
        %v1718 = vsel %vm1660, %v1700, 0.0
        %1719 = vadd.xlane.f32.xlu0 %v1718
        %v1720 = vpop.xlane.xlu0 %1719
        %v1721 = vsel %vm1660, %v1702, 0.0
        %1722 = vadd.xlane.f32.xlu0 %v1721
        %v1723 = vpop.xlane.xlu0 %1722
        %v1724 = vsel %vm1660, %v1704, 0.0
        %1725 = vadd.xlane.f32.xlu0 %v1724
        %v1726 = vpop.xlane.xlu0 %1725
        %v1727 = vsel %vm1660, %v1706, 0.0
        %1728 = vadd.xlane.f32.xlu0 %v1727
        %v1729 = vpop.xlane.xlu0 %1728
        %v1730 = vsel %vm1660, %v1708, 0.0
        %1731 = vadd.xlane.f32.xlu0 %v1730
        %v1732 = vpop.xlane.xlu0 %1731
        %v1733 = vrcp.pop %v1711
        %v1734 = vrcp.pop %v1714
        %v1735 = vrcp.pop %v1717
        %v1736 = vrcp.pop %v1720
        %v1737 = vrcp.pop %v1723
        %v1738 = vrcp.pop %v1726
        %v1739 = vrcp.pop %v1729
        %v1740 = vrcp.pop %v1732
        %v1741 = vmul.f32 %v1694, %v1733
        %v1742 = vmul.f32 %v1696, %v1734
        %v1743 = vmul.f32 %v1698, %v1735
        %v1744 = vmul.f32 %v1700, %v1736
        %v1745 = vmul.f32 %v1702, %v1737
        %v1746 = vmul.f32 %v1704, %v1738
        %v1747 = vmul.f32 %v1706, %v1739
        %v1748 = vmul.f32 %v1708, %v1740
        %v1749 = vpack.c.bf16 %v1741, %v1741
        %v1750 = vpack.c.bf16 %v1742, %v1742
        %v1751 = vpack.c.bf16 %v1743, %v1743
        %v1752 = vpack.c.bf16 %v1744, %v1744
        %v1753 = vpack.c.bf16 %v1745, %v1745
        %v1754 = vpack.c.bf16 %v1746, %v1746
        %v1755 = vpack.c.bf16 %v1747, %v1747
        %v1756 = vpack.c.bf16 %v1748, %v1748
        %v1757 = vpack.c.bf16 %v1190, %v1190
        %v1758 = vpack.c.bf16 %v1191, %v1191
        %v1759 = vpack.c.bf16 %v1215, %v1215
        %v1760 = vpack.c.bf16 %v1216, %v1216
        %v1761 = vpack.c.bf16 %v1240, %v1240
        %v1762 = vpack.c.bf16 %v1241, %v1241
        %v1763 = vpack.c.bf16 %v1265, %v1265
        %v1764 = vpack.c.bf16 %v1266, %v1266
        %vm1765 = vcmask 31744
        %v1767 = vsel %vm1765, %v1749, 0
        %vm1769 = vcmask 1041408
        %v1771 = vsel %vm1769, %v1757, 0
        %1773 = vmatprep.subr.bf16.mxu0 0
        %1774 = vmatpush1.bf16.msra.mxu0 %v1771
        %1775 = vmatprep.subr.bf16.mxu0 0
        %1776 = vmatpush1.bf16.msra.mxu0 0
        %1777 = vmatprep.subr.bf16.mxu0 0
        %1778 = vmatpush1.bf16.msra.mxu0 0
        %1779 = vmatprep.subr.bf16.mxu0 0
        %1780 = vmatpush1.bf16.msra.mxu0 0
        %1781 = vmatprep.subr.bf16.mxu0 0
        %1782 = vmatpush1.bf16.msra.mxu0 0
        %1783 = vmatprep.subr.bf16.mxu0 0
        %1784 = vmatpush1.bf16.msra.mxu0 0
        %1785 = vmatprep.subr.bf16.mxu0 0
        %1786 = vmatpush1.bf16.msra.mxu0 0
        %1787 = vmatprep.subr.bf16.mxu0 0
        %1788 = vmatpush1.bf16.msra.mxu0 0
        %1789 = vmatprep.subr.bf16.mxu0 0
        %1790 = vmatpush1.bf16.msra.mxu0 0
        %1791 = vmatprep.subr.bf16.mxu0 0
        %1792 = vmatpush1.bf16.msra.mxu0 0
        %1793 = vmatprep.subr.bf16.mxu0 0
        %1794 = vmatpush1.bf16.msra.mxu0 0
        %1795 = vmatprep.subr.bf16.mxu0 0
        %1796 = vmatpush1.bf16.msra.mxu0 0
        %1797 = vmatprep.subr.bf16.mxu0 0
        %1798 = vmatpush1.bf16.msra.mxu0 0
        %1799 = vmatprep.subr.bf16.mxu0 0
        %1800 = vmatpush1.bf16.msra.mxu0 0
        %1801 = vmatprep.subr.bf16.mxu0 0
        %1802 = vmatpush1.bf16.msra.mxu0 0
        %1803 = vmatprep.subr.bf16.mxu0 0
        %1804 = vmatpush1.bf16.msra.mxu0 0
        %1805 = vmatprep.mubr.bf16.mxu0 0
        %1806 = vmatmul.mubr.bf16.gmra.mrb[0].mxu0 %v1767
        %v1807 = vpop.f32.mrb[0].mxu0
        %v1808 = vadd.f32 0.0, %v1807
        %v1809 = vpop.f32.mrb[0].mxu0
        %v1810 = vpop.f32.mrb[0].mxu0
        %v1811 = vpop.f32.mrb[0].mxu0
        %1812 = vdwg.mxu0
        %v1814 = vsel %vm1765, %v1750, 0
        %v1817 = vsel %vm1769, %v1758, 0
        %1819 = vmatprep.subr.bf16.mxu0 0
        %1820 = vmatpush1.bf16.msra.mxu0 %v1817
        %1821 = vmatprep.subr.bf16.mxu0 0
        %1822 = vmatpush1.bf16.msra.mxu0 0
        %1823 = vmatprep.subr.bf16.mxu0 0
        %1824 = vmatpush1.bf16.msra.mxu0 0
        %1825 = vmatprep.subr.bf16.mxu0 0
        %1826 = vmatpush1.bf16.msra.mxu0 0
        %1827 = vmatprep.subr.bf16.mxu0 0
        %1828 = vmatpush1.bf16.msra.mxu0 0
        %1829 = vmatprep.subr.bf16.mxu0 0
        %1830 = vmatpush1.bf16.msra.mxu0 0
        %1831 = vmatprep.subr.bf16.mxu0 0
        %1832 = vmatpush1.bf16.msra.mxu0 0
        %1833 = vmatprep.subr.bf16.mxu0 0
        %1834 = vmatpush1.bf16.msra.mxu0 0
        %1835 = vmatprep.subr.bf16.mxu0 0
        %1836 = vmatpush1.bf16.msra.mxu0 0
        %1837 = vmatprep.subr.bf16.mxu0 0
        %1838 = vmatpush1.bf16.msra.mxu0 0
        %1839 = vmatprep.subr.bf16.mxu0 0
        %1840 = vmatpush1.bf16.msra.mxu0 0
        %1841 = vmatprep.subr.bf16.mxu0 0
        %1842 = vmatpush1.bf16.msra.mxu0 0
        %1843 = vmatprep.subr.bf16.mxu0 0
        %1844 = vmatpush1.bf16.msra.mxu0 0
        %1845 = vmatprep.subr.bf16.mxu0 0
        %1846 = vmatpush1.bf16.msra.mxu0 0
        %1847 = vmatprep.subr.bf16.mxu0 0
        %1848 = vmatpush1.bf16.msra.mxu0 0
        %1849 = vmatprep.subr.bf16.mxu0 0
        %1850 = vmatpush1.bf16.msra.mxu0 0
        %1851 = vmatprep.mubr.bf16.mxu0 0
        %1852 = vmatmul.mubr.bf16.gmra.mrb[0].mxu0 %v1814
        %v1853 = vpop.f32.mrb[0].mxu0
        %v1854 = vadd.f32 0.0, %v1853
        %v1855 = vpop.f32.mrb[0].mxu0
        %v1856 = vpop.f32.mrb[0].mxu0
        %v1857 = vpop.f32.mrb[0].mxu0
        %1858 = vdwg.mxu0
        %v1860 = vsel %vm1765, %v1751, 0
        %v1863 = vsel %vm1769, %v1759, 0
        %1865 = vmatprep.subr.bf16.mxu0 0
        %1866 = vmatpush1.bf16.msra.mxu0 %v1863
        %1867 = vmatprep.subr.bf16.mxu0 0
        %1868 = vmatpush1.bf16.msra.mxu0 0
        %1869 = vmatprep.subr.bf16.mxu0 0
        %1870 = vmatpush1.bf16.msra.mxu0 0
        %1871 = vmatprep.subr.bf16.mxu0 0
        %1872 = vmatpush1.bf16.msra.mxu0 0
        %1873 = vmatprep.subr.bf16.mxu0 0
        %1874 = vmatpush1.bf16.msra.mxu0 0
        %1875 = vmatprep.subr.bf16.mxu0 0
        %1876 = vmatpush1.bf16.msra.mxu0 0
        %1877 = vmatprep.subr.bf16.mxu0 0
        %1878 = vmatpush1.bf16.msra.mxu0 0
        %1879 = vmatprep.subr.bf16.mxu0 0
        %1880 = vmatpush1.bf16.msra.mxu0 0
        %1881 = vmatprep.subr.bf16.mxu0 0
        %1882 = vmatpush1.bf16.msra.mxu0 0
        %1883 = vmatprep.subr.bf16.mxu0 0
        %1884 = vmatpush1.bf16.msra.mxu0 0
        %1885 = vmatprep.subr.bf16.mxu0 0
        %1886 = vmatpush1.bf16.msra.mxu0 0
        %1887 = vmatprep.subr.bf16.mxu0 0
        %1888 = vmatpush1.bf16.msra.mxu0 0
        %1889 = vmatprep.subr.bf16.mxu0 0
        %1890 = vmatpush1.bf16.msra.mxu0 0
        %1891 = vmatprep.subr.bf16.mxu0 0
        %1892 = vmatpush1.bf16.msra.mxu0 0
        %1893 = vmatprep.subr.bf16.mxu0 0
        %1894 = vmatpush1.bf16.msra.mxu0 0
        %1895 = vmatprep.subr.bf16.mxu0 0
        %1896 = vmatpush1.bf16.msra.mxu0 0
        %1897 = vmatprep.mubr.bf16.mxu0 0
        %1898 = vmatmul.mubr.bf16.gmra.mrb[0].mxu0 %v1860
        %v1899 = vpop.f32.mrb[0].mxu0
        %v1900 = vadd.f32 0.0, %v1899
        %v1901 = vpop.f32.mrb[0].mxu0
        %v1902 = vpop.f32.mrb[0].mxu0
        %v1903 = vpop.f32.mrb[0].mxu0
        %1904 = vdwg.mxu0
        %v1906 = vsel %vm1765, %v1752, 0
        %v1909 = vsel %vm1769, %v1760, 0
        %1911 = vmatprep.subr.bf16.mxu0 0
        %1912 = vmatpush1.bf16.msra.mxu0 %v1909
        %1913 = vmatprep.subr.bf16.mxu0 0
        %1914 = vmatpush1.bf16.msra.mxu0 0
        %1915 = vmatprep.subr.bf16.mxu0 0
        %1916 = vmatpush1.bf16.msra.mxu0 0
        %1917 = vmatprep.subr.bf16.mxu0 0
        %1918 = vmatpush1.bf16.msra.mxu0 0
        %1919 = vmatprep.subr.bf16.mxu0 0
        %1920 = vmatpush1.bf16.msra.mxu0 0
        %1921 = vmatprep.subr.bf16.mxu0 0
        %1922 = vmatpush1.bf16.msra.mxu0 0
        %1923 = vmatprep.subr.bf16.mxu0 0
        %1924 = vmatpush1.bf16.msra.mxu0 0
        %1925 = vmatprep.subr.bf16.mxu0 0
        %1926 = vmatpush1.bf16.msra.mxu0 0
        %1927 = vmatprep.subr.bf16.mxu0 0
        %1928 = vmatpush1.bf16.msra.mxu0 0
        %1929 = vmatprep.subr.bf16.mxu0 0
        %1930 = vmatpush1.bf16.msra.mxu0 0
        %1931 = vmatprep.subr.bf16.mxu0 0
        %1932 = vmatpush1.bf16.msra.mxu0 0
        %1933 = vmatprep.subr.bf16.mxu0 0
        %1934 = vmatpush1.bf16.msra.mxu0 0
        %1935 = vmatprep.subr.bf16.mxu0 0
        %1936 = vmatpush1.bf16.msra.mxu0 0
        %1937 = vmatprep.subr.bf16.mxu0 0
        %1938 = vmatpush1.bf16.msra.mxu0 0
        %1939 = vmatprep.subr.bf16.mxu0 0
        %1940 = vmatpush1.bf16.msra.mxu0 0
        %1941 = vmatprep.subr.bf16.mxu0 0
        %1942 = vmatpush1.bf16.msra.mxu0 0
        %1943 = vmatprep.mubr.bf16.mxu0 0
        %1944 = vmatmul.mubr.bf16.gmra.mrb[0].mxu0 %v1906
        %v1945 = vpop.f32.mrb[0].mxu0
        %v1946 = vadd.f32 0.0, %v1945
        %v1947 = vpop.f32.mrb[0].mxu0
        %v1948 = vpop.f32.mrb[0].mxu0
        %v1949 = vpop.f32.mrb[0].mxu0
        %1950 = vdwg.mxu0
        %v1952 = vsel %vm1765, %v1753, 0
        %v1955 = vsel %vm1769, %v1761, 0
        %1957 = vmatprep.subr.bf16.mxu0 0
        %1958 = vmatpush1.bf16.msra.mxu0 %v1955
        %1959 = vmatprep.subr.bf16.mxu0 0
        %1960 = vmatpush1.bf16.msra.mxu0 0
        %1961 = vmatprep.subr.bf16.mxu0 0
        %1962 = vmatpush1.bf16.msra.mxu0 0
        %1963 = vmatprep.subr.bf16.mxu0 0
        %1964 = vmatpush1.bf16.msra.mxu0 0
        %1965 = vmatprep.subr.bf16.mxu0 0
        %1966 = vmatpush1.bf16.msra.mxu0 0
        %1967 = vmatprep.subr.bf16.mxu0 0
        %1968 = vmatpush1.bf16.msra.mxu0 0
        %1969 = vmatprep.subr.bf16.mxu0 0
        %1970 = vmatpush1.bf16.msra.mxu0 0
        %1971 = vmatprep.subr.bf16.mxu0 0
        %1972 = vmatpush1.bf16.msra.mxu0 0
        %1973 = vmatprep.subr.bf16.mxu0 0
        %1974 = vmatpush1.bf16.msra.mxu0 0
        %1975 = vmatprep.subr.bf16.mxu0 0
        %1976 = vmatpush1.bf16.msra.mxu0 0
        %1977 = vmatprep.subr.bf16.mxu0 0
        %1978 = vmatpush1.bf16.msra.mxu0 0
        %1979 = vmatprep.subr.bf16.mxu0 0
        %1980 = vmatpush1.bf16.msra.mxu0 0
        %1981 = vmatprep.subr.bf16.mxu0 0
        %1982 = vmatpush1.bf16.msra.mxu0 0
        %1983 = vmatprep.subr.bf16.mxu0 0
        %1984 = vmatpush1.bf16.msra.mxu0 0
        %1985 = vmatprep.subr.bf16.mxu0 0
        %1986 = vmatpush1.bf16.msra.mxu0 0
        %1987 = vmatprep.subr.bf16.mxu0 0
        %1988 = vmatpush1.bf16.msra.mxu0 0
        %1989 = vmatprep.mubr.bf16.mxu0 0
        %1990 = vmatmul.mubr.bf16.gmra.mrb[0].mxu0 %v1952
        %v1991 = vpop.f32.mrb[0].mxu0
        %v1992 = vadd.f32 0.0, %v1991
        %v1993 = vpop.f32.mrb[0].mxu0
        %v1994 = vpop.f32.mrb[0].mxu0
        %v1995 = vpop.f32.mrb[0].mxu0
        %1996 = vdwg.mxu0
        %v1998 = vsel %vm1765, %v1754, 0
        %v2001 = vsel %vm1769, %v1762, 0
        %2003 = vmatprep.subr.bf16.mxu0 0
        %2004 = vmatpush1.bf16.msra.mxu0 %v2001
        %2005 = vmatprep.subr.bf16.mxu0 0
        %2006 = vmatpush1.bf16.msra.mxu0 0
        %2007 = vmatprep.subr.bf16.mxu0 0
        %2008 = vmatpush1.bf16.msra.mxu0 0
        %2009 = vmatprep.subr.bf16.mxu0 0
        %2010 = vmatpush1.bf16.msra.mxu0 0
        %2011 = vmatprep.subr.bf16.mxu0 0
        %2012 = vmatpush1.bf16.msra.mxu0 0
        %2013 = vmatprep.subr.bf16.mxu0 0
        %2014 = vmatpush1.bf16.msra.mxu0 0
        %2015 = vmatprep.subr.bf16.mxu0 0
        %2016 = vmatpush1.bf16.msra.mxu0 0
        %2017 = vmatprep.subr.bf16.mxu0 0
        %2018 = vmatpush1.bf16.msra.mxu0 0
        %2019 = vmatprep.subr.bf16.mxu0 0
        %2020 = vmatpush1.bf16.msra.mxu0 0
        %2021 = vmatprep.subr.bf16.mxu0 0
        %2022 = vmatpush1.bf16.msra.mxu0 0
        %2023 = vmatprep.subr.bf16.mxu0 0
        %2024 = vmatpush1.bf16.msra.mxu0 0
        %2025 = vmatprep.subr.bf16.mxu0 0
        %2026 = vmatpush1.bf16.msra.mxu0 0
        %2027 = vmatprep.subr.bf16.mxu0 0
        %2028 = vmatpush1.bf16.msra.mxu0 0
        %2029 = vmatprep.subr.bf16.mxu0 0
        %2030 = vmatpush1.bf16.msra.mxu0 0
        %2031 = vmatprep.subr.bf16.mxu0 0
        %2032 = vmatpush1.bf16.msra.mxu0 0
        %2033 = vmatprep.subr.bf16.mxu0 0
        %2034 = vmatpush1.bf16.msra.mxu0 0
        %2035 = vmatprep.mubr.bf16.mxu0 0
        %2036 = vmatmul.mubr.bf16.gmra.mrb[0].mxu0 %v1998
        %v2037 = vpop.f32.mrb[0].mxu0
        %v2038 = vadd.f32 0.0, %v2037
        %v2039 = vpop.f32.mrb[0].mxu0
        %v2040 = vpop.f32.mrb[0].mxu0
        %v2041 = vpop.f32.mrb[0].mxu0
        %2042 = vdwg.mxu0
        %v2044 = vsel %vm1765, %v1755, 0
        %v2047 = vsel %vm1769, %v1763, 0
        %2049 = vmatprep.subr.bf16.mxu0 0
        %2050 = vmatpush1.bf16.msra.mxu0 %v2047
        %2051 = vmatprep.subr.bf16.mxu0 0
        %2052 = vmatpush1.bf16.msra.mxu0 0
        %2053 = vmatprep.subr.bf16.mxu0 0
        %2054 = vmatpush1.bf16.msra.mxu0 0
        %2055 = vmatprep.subr.bf16.mxu0 0
        %2056 = vmatpush1.bf16.msra.mxu0 0
        %2057 = vmatprep.subr.bf16.mxu0 0
        %2058 = vmatpush1.bf16.msra.mxu0 0
        %2059 = vmatprep.subr.bf16.mxu0 0
        %2060 = vmatpush1.bf16.msra.mxu0 0
        %2061 = vmatprep.subr.bf16.mxu0 0
        %2062 = vmatpush1.bf16.msra.mxu0 0
        %2063 = vmatprep.subr.bf16.mxu0 0
        %2064 = vmatpush1.bf16.msra.mxu0 0
        %2065 = vmatprep.subr.bf16.mxu0 0
        %2066 = vmatpush1.bf16.msra.mxu0 0
        %2067 = vmatprep.subr.bf16.mxu0 0
        %2068 = vmatpush1.bf16.msra.mxu0 0
        %2069 = vmatprep.subr.bf16.mxu0 0
        %2070 = vmatpush1.bf16.msra.mxu0 0
        %2071 = vmatprep.subr.bf16.mxu0 0
        %2072 = vmatpush1.bf16.msra.mxu0 0
        %2073 = vmatprep.subr.bf16.mxu0 0
        %2074 = vmatpush1.bf16.msra.mxu0 0
        %2075 = vmatprep.subr.bf16.mxu0 0
        %2076 = vmatpush1.bf16.msra.mxu0 0
        %2077 = vmatprep.subr.bf16.mxu0 0
        %2078 = vmatpush1.bf16.msra.mxu0 0
        %2079 = vmatprep.subr.bf16.mxu0 0
        %2080 = vmatpush1.bf16.msra.mxu0 0
        %2081 = vmatprep.mubr.bf16.mxu0 0
        %2082 = vmatmul.mubr.bf16.gmra.mrb[0].mxu0 %v2044
        %v2083 = vpop.f32.mrb[0].mxu0
        %v2084 = vadd.f32 0.0, %v2083
        %v2085 = vpop.f32.mrb[0].mxu0
        %v2086 = vpop.f32.mrb[0].mxu0
        %v2087 = vpop.f32.mrb[0].mxu0
        %2088 = vdwg.mxu0
        %v2090 = vsel %vm1765, %v1756, 0
        %v2093 = vsel %vm1769, %v1764, 0
        %2095 = vmatprep.subr.bf16.mxu0 0
        %2096 = vmatpush1.bf16.msra.mxu0 %v2093
        %2097 = vmatprep.subr.bf16.mxu0 0
        %2098 = vmatpush1.bf16.msra.mxu0 0
        %2099 = vmatprep.subr.bf16.mxu0 0
        %2100 = vmatpush1.bf16.msra.mxu0 0
        %2101 = vmatprep.subr.bf16.mxu0 0
        %2102 = vmatpush1.bf16.msra.mxu0 0
        %2103 = vmatprep.subr.bf16.mxu0 0
        %2104 = vmatpush1.bf16.msra.mxu0 0
        %2105 = vmatprep.subr.bf16.mxu0 0
        %2106 = vmatpush1.bf16.msra.mxu0 0
        %2107 = vmatprep.subr.bf16.mxu0 0
        %2108 = vmatpush1.bf16.msra.mxu0 0
        %2109 = vmatprep.subr.bf16.mxu0 0
        %2110 = vmatpush1.bf16.msra.mxu0 0
        %2111 = vmatprep.subr.bf16.mxu0 0
        %2112 = vmatpush1.bf16.msra.mxu0 0
        %2113 = vmatprep.subr.bf16.mxu0 0
        %2114 = vmatpush1.bf16.msra.mxu0 0
        %2115 = vmatprep.subr.bf16.mxu0 0
        %2116 = vmatpush1.bf16.msra.mxu0 0
        %2117 = vmatprep.subr.bf16.mxu0 0
        %2118 = vmatpush1.bf16.msra.mxu0 0
        %2119 = vmatprep.subr.bf16.mxu0 0
        %2120 = vmatpush1.bf16.msra.mxu0 0
        %2121 = vmatprep.subr.bf16.mxu0 0
        %2122 = vmatpush1.bf16.msra.mxu0 0
        %2123 = vmatprep.subr.bf16.mxu0 0
        %2124 = vmatpush1.bf16.msra.mxu0 0
        %2125 = vmatprep.subr.bf16.mxu0 0
        %2126 = vmatpush1.bf16.msra.mxu0 0
        %2127 = vmatprep.mubr.bf16.mxu0 0
        %2128 = vmatmul.mubr.bf16.gmra.mrb[0].mxu0 %v2090
        %v2129 = vpop.f32.mrb[0].mxu0
        %v2130 = vadd.f32 0.0, %v2129
        %v2131 = vpop.f32.mrb[0].mxu0
        %v2132 = vpop.f32.mrb[0].mxu0
        %v2133 = vpop.f32.mrb[0].mxu0
        %2134 = vdwg.mxu0
        %v2136 = vunpack.c.l.s4 1983009808
        %v2137 = vunpack.c.0.s8 %v2136
        %v2138 = vlaneseq
        %v2139 = vshrl.u32 %v2138, 7
        %v2140 = vsub.s32 %v2137, %v2139
        %v2141 = vrot.slane %v1808, %v2140
        %v2143 = vunpack.c.l.s4 1983009808
        %v2144 = vunpack.c.0.s8 %v2143
        %v2145 = vlaneseq
        %v2146 = vshrl.u32 %v2145, 7
        %v2147 = vsub.s32 %v2144, %v2146
        %v2148 = vrot.slane %v1854, %v2147
        %v2149 = vcombine.low %v2141, %v2148
        %v2150 = vcombine.high %v2141, %v2148
        %v2152 = vunpack.c.l.s4 1934713408
        %v2153 = vunpack.c.0.s8 %v2152
        %v2154 = vlaneseq
        %v2155 = vshrl.u32 %v2154, 7
        %v2156 = vsub.s32 %v2153, %v2155
        %v2157 = vrot.slane %v2149, %v2156
        %v2159 = vunpack.c.l.s4 1934713408
        %v2160 = vunpack.c.0.s8 %v2159
        %v2161 = vlaneseq
        %v2162 = vshrl.u32 %v2161, 7
        %v2163 = vsub.s32 %v2160, %v2162
        %v2164 = vrot.slane %v2150, %v2163
        %v2165 = vcombine.high %v2157, 0.0
        %v2166 = vcombine.high %v2164, 0.0
        %v2168 = vunpack.c.l.s4 1983009808
        %v2169 = vunpack.c.0.s8 %v2168
        %v2170 = vlaneseq
        %v2171 = vshrl.u32 %v2170, 7
        %v2172 = vsub.s32 %v2169, %v2171
        %v2173 = vrot.slane %v1900, %v2172
        %v2175 = vunpack.c.l.s4 1983009808
        %v2176 = vunpack.c.0.s8 %v2175
        %v2177 = vlaneseq
        %v2178 = vshrl.u32 %v2177, 7
        %v2179 = vsub.s32 %v2176, %v2178
        %v2180 = vrot.slane %v1946, %v2179
        %v2181 = vcombine.low %v2173, %v2180
        %v2182 = vcombine.high %v2173, %v2180
        %v2184 = vunpack.c.l.s4 1934713408
        %v2185 = vunpack.c.0.s8 %v2184
        %v2186 = vlaneseq
        %v2187 = vshrl.u32 %v2186, 7
        %v2188 = vsub.s32 %v2185, %v2187
        %v2189 = vrot.slane %v2181, %v2188
        %v2191 = vunpack.c.l.s4 1934713408
        %v2192 = vunpack.c.0.s8 %v2191
        %v2193 = vlaneseq
        %v2194 = vshrl.u32 %v2193, 7
        %v2195 = vsub.s32 %v2192, %v2194
        %v2196 = vrot.slane %v2182, %v2195
        %v2197 = vcombine.high %v2189, 0.0
        %v2198 = vcombine.high %v2196, 0.0
        %v2200 = vunpack.c.l.s4 1983009808
        %v2201 = vunpack.c.0.s8 %v2200
        %v2202 = vlaneseq
        %v2203 = vshrl.u32 %v2202, 7
        %v2204 = vsub.s32 %v2201, %v2203
        %v2205 = vrot.slane %v1992, %v2204
        %v2207 = vunpack.c.l.s4 1983009808
        %v2208 = vunpack.c.0.s8 %v2207
        %v2209 = vlaneseq
        %v2210 = vshrl.u32 %v2209, 7
        %v2211 = vsub.s32 %v2208, %v2210
        %v2212 = vrot.slane %v2038, %v2211
        %v2213 = vcombine.low %v2205, %v2212
        %v2214 = vcombine.high %v2205, %v2212
        %v2216 = vunpack.c.l.s4 1934713408
        %v2217 = vunpack.c.0.s8 %v2216
        %v2218 = vlaneseq
        %v2219 = vshrl.u32 %v2218, 7
        %v2220 = vsub.s32 %v2217, %v2219
        %v2221 = vrot.slane %v2213, %v2220
        %v2223 = vunpack.c.l.s4 1934713408
        %v2224 = vunpack.c.0.s8 %v2223
        %v2225 = vlaneseq
        %v2226 = vshrl.u32 %v2225, 7
        %v2227 = vsub.s32 %v2224, %v2226
        %v2228 = vrot.slane %v2214, %v2227
        %v2229 = vcombine.high %v2221, 0.0
        %v2230 = vcombine.high %v2228, 0.0
        %v2232 = vunpack.c.l.s4 1983009808
        %v2233 = vunpack.c.0.s8 %v2232
        %v2234 = vlaneseq
        %v2235 = vshrl.u32 %v2234, 7
        %v2236 = vsub.s32 %v2233, %v2235
        %v2237 = vrot.slane %v2084, %v2236
        %v2239 = vunpack.c.l.s4 1983009808
        %v2240 = vunpack.c.0.s8 %v2239
        %v2241 = vlaneseq
        %v2242 = vshrl.u32 %v2241, 7
        %v2243 = vsub.s32 %v2240, %v2242
        %v2244 = vrot.slane %v2130, %v2243
        %v2245 = vcombine.low %v2237, %v2244
        %v2246 = vcombine.high %v2237, %v2244
        %v2248 = vunpack.c.l.s4 1934713408
        %v2249 = vunpack.c.0.s8 %v2248
        %v2250 = vlaneseq
        %v2251 = vshrl.u32 %v2250, 7
        %v2252 = vsub.s32 %v2249, %v2251
        %v2253 = vrot.slane %v2245, %v2252
        %v2255 = vunpack.c.l.s4 1934713408
        %v2256 = vunpack.c.0.s8 %v2255
        %v2257 = vlaneseq
        %v2258 = vshrl.u32 %v2257, 7
        %v2259 = vsub.s32 %v2256, %v2258
        %v2260 = vrot.slane %v2246, %v2259
        %v2261 = vcombine.high %v2253, 0.0
        %v2262 = vcombine.high %v2260, 0.0
        %v2263 = vcombine.low %v2157, %v2164
        %v2265 = vunpack.c.l.s4 1983009808
        %v2266 = vunpack.c.0.s8 %v2265
        %v2267 = vlaneseq
        %v2268 = vshrl.u32 %v2267, 7
        %v2269 = vsub.s32 %v2266, %v2268
        %v2270 = vrot.slane %v2263, %v2269
        %v2271 = vcombine.low %v2165, %v2166
        %v2273 = vunpack.c.l.s4 1983009808
        %v2274 = vunpack.c.0.s8 %v2273
        %v2275 = vlaneseq
        %v2276 = vshrl.u32 %v2275, 7
        %v2277 = vsub.s32 %v2274, %v2276
        %v2278 = vrot.slane %v2271, %v2277
        %v2279 = vcombine.low %v2189, %v2196
        %v2281 = vunpack.c.l.s4 1983009808
        %v2282 = vunpack.c.0.s8 %v2281
        %v2283 = vlaneseq
        %v2284 = vshrl.u32 %v2283, 7
        %v2285 = vsub.s32 %v2282, %v2284
        %v2286 = vrot.slane %v2279, %v2285
        %v2287 = vcombine.low %v2197, %v2198
        %v2289 = vunpack.c.l.s4 1983009808
        %v2290 = vunpack.c.0.s8 %v2289
        %v2291 = vlaneseq
        %v2292 = vshrl.u32 %v2291, 7
        %v2293 = vsub.s32 %v2290, %v2292
        %v2294 = vrot.slane %v2287, %v2293
        %v2295 = vcombine.low %v2270, %v2278
        %v2297 = vunpack.c.l.s4 1934713408
        %v2298 = vunpack.c.0.s8 %v2297
        %v2299 = vlaneseq
        %v2300 = vshrl.u32 %v2299, 7
        %v2301 = vsub.s32 %v2298, %v2300
        %v2302 = vrot.slane %v2295, %v2301
        %v2303 = vcombine.low %v2286, %v2294
        %v2305 = vunpack.c.l.s4 1934713408
        %v2306 = vunpack.c.0.s8 %v2305
        %v2307 = vlaneseq
        %v2308 = vshrl.u32 %v2307, 7
        %v2309 = vsub.s32 %v2306, %v2308
        %v2310 = vrot.slane %v2303, %v2309
        %v2311 = vcombine.low %v2302, %v2310
        %v2312 = vcombine.high %v2302, %v2310
        %v2313 = vcombine.low %v2221, %v2228
        %v2315 = vunpack.c.l.s4 1983009808
        %v2316 = vunpack.c.0.s8 %v2315
        %v2317 = vlaneseq
        %v2318 = vshrl.u32 %v2317, 7
        %v2319 = vsub.s32 %v2316, %v2318
        %v2320 = vrot.slane %v2313, %v2319
        %v2321 = vcombine.low %v2229, %v2230
        %v2323 = vunpack.c.l.s4 1983009808
        %v2324 = vunpack.c.0.s8 %v2323
        %v2325 = vlaneseq
        %v2326 = vshrl.u32 %v2325, 7
        %v2327 = vsub.s32 %v2324, %v2326
        %v2328 = vrot.slane %v2321, %v2327
        %v2329 = vcombine.low %v2253, %v2260
        %v2331 = vunpack.c.l.s4 1983009808
        %v2332 = vunpack.c.0.s8 %v2331
        %v2333 = vlaneseq
        %v2334 = vshrl.u32 %v2333, 7
        %v2335 = vsub.s32 %v2332, %v2334
        %v2336 = vrot.slane %v2329, %v2335
        %v2337 = vcombine.low %v2261, %v2262
        %v2339 = vunpack.c.l.s4 1983009808
        %v2340 = vunpack.c.0.s8 %v2339
        %v2341 = vlaneseq
        %v2342 = vshrl.u32 %v2341, 7
        %v2343 = vsub.s32 %v2340, %v2342
        %v2344 = vrot.slane %v2337, %v2343
        %v2345 = vcombine.low %v2320, %v2328
        %v2347 = vunpack.c.l.s4 1934713408
        %v2348 = vunpack.c.0.s8 %v2347
        %v2349 = vlaneseq
        %v2350 = vshrl.u32 %v2349, 7
        %v2351 = vsub.s32 %v2348, %v2350
        %v2352 = vrot.slane %v2345, %v2351
        %v2353 = vcombine.low %v2336, %v2344
        %v2355 = vunpack.c.l.s4 1934713408
        %v2356 = vunpack.c.0.s8 %v2355
        %v2357 = vlaneseq
        %v2358 = vshrl.u32 %v2357, 7
        %v2359 = vsub.s32 %v2356, %v2358
        %v2360 = vrot.slane %v2353, %v2359
        %v2361 = vcombine.low %v2352, %v2360
        %v2362 = vcombine.high %v2352, %v2360
        %2365 = vrot.lane.b32.xlu0 %v2312, 16
        %v2366 = vpop.permute.xlu0 %2365
        %2367 = vrot.lane.b32.xlu0 %v2362, 16
        %v2368 = vpop.permute.xlu0 %2367
        %v2371 = vsel %vm1283, %v2311, %v2366
        %v2372 = vsel %vm1283, %v2361, %v2368
        %v2373 = vpack.c.bf16 %v2372, %v2371
        %s2374 = smul.u32 %s28, 28
        %s2375 = smul.addr %s2374, 4
        %s2376 = scalar_lea.vmem [#allocation6], %s2375
        %v2377 = vld [vmem:[%s2376] sm:$0xf]
        %v2378 = vld [vmem:[%s2376 + $0x4] sm:$0xf]
        %v2379 = vld [vmem:[%s2376 + $0x8] sm:$0xf]
        %v2380 = vld [vmem:[%s2376 + $0xc] sm:$0xf]
        %v2381 = vlaneseq
        %v2382 = vshrl.u32 %v2381, 7
        %v2383 = vsub.s32 0, %v2382
        %v2384 = vrot.slane %v460, %v2383
        %v2389 = vunpack.c.l.b16 %v2377
        %v2390 = vunpack.c.l.b16 %v2378
        %v2391 = vunpack.c.l.b16 %v2379
        %v2392 = vunpack.c.l.b16 %v2380
        %v2393 = vpack.c.b16 %v2390, %v2389
        %v2394 = vpack.c.b16 %v2392, %v2391
        %v2398 = vsel %vm494, %v2373, 0
        %2400 = vmatprep.subr.bf16.mxu0 0
        %2401 = vmatpush1.bf16.msra.mxu0 %v2393
        %2402 = vmatprep.subr.bf16.mxu0 0
        %2403 = vmatpush1.bf16.msra.mxu0 %v2394
        %2404 = vmatprep.subr.bf16.mxu0 0
        %2405 = vmatpush1.bf16.msra.mxu0 0
        %2406 = vmatprep.subr.bf16.mxu0 0
        %2407 = vmatpush1.bf16.msra.mxu0 0
        %2408 = vmatprep.subr.bf16.mxu0 0
        %2409 = vmatpush1.bf16.msra.mxu0 0
        %2410 = vmatprep.subr.bf16.mxu0 0
        %2411 = vmatpush1.bf16.msra.mxu0 0
        %2412 = vmatprep.subr.bf16.mxu0 0
        %2413 = vmatpush1.bf16.msra.mxu0 0
        %2414 = vmatprep.subr.bf16.mxu0 0
        %2415 = vmatpush1.bf16.msra.mxu0 0
        %2416 = vmatprep.subr.bf16.mxu0 0
        %2417 = vmatpush1.bf16.msra.mxu0 0
        %2418 = vmatprep.subr.bf16.mxu0 0
        %2419 = vmatpush1.bf16.msra.mxu0 0
        %2420 = vmatprep.subr.bf16.mxu0 0
        %2421 = vmatpush1.bf16.msra.mxu0 0
        %2422 = vmatprep.subr.bf16.mxu0 0
        %2423 = vmatpush1.bf16.msra.mxu0 0
        %2424 = vmatprep.subr.bf16.mxu0 0
        %2425 = vmatpush1.bf16.msra.mxu0 0
        %2426 = vmatprep.subr.bf16.mxu0 0
        %2427 = vmatpush1.bf16.msra.mxu0 0
        %2428 = vmatprep.subr.bf16.mxu0 0
        %2429 = vmatpush1.bf16.msra.mxu0 0
        %2430 = vmatprep.subr.bf16.mxu0 0
        %2431 = vmatpush1.bf16.msra.mxu0 0
        %2432 = vmatprep.mubr.bf16.mxu0 0
        %2433 = vmatmul.mubr.bf16.gmra.mrb[0].mxu0 %v2398
        %v2434 = vpop.f32.mrb[0].mxu0
        %v2435 = vadd.f32 %v2384, %v2434
        %v2436 = vpop.f32.mrb[0].mxu0
        %v2437 = vpop.f32.mrb[0].mxu0
        %v2438 = vadd.f32 %v2384, %v2437
        %v2439 = vpop.f32.mrb[0].mxu0
        %2440 = vdwg.mxu0
        %v2441 = vadd.f32 %v454, %v2435
        %v2442 = vadd.f32 %v455, %v2438
        %v2443 = vsel %vm494, %v2441, 0.0
        %2444 = vadd.xlane.f32.xlu0 %v2443
        %v2445 = vpop.xlane.xlu0 %2444
        %v2446 = vsel %vm494, %v2442, 0.0
        %2447 = vadd.xlane.f32.xlu0 %v2446
        %v2448 = vpop.xlane.xlu0 %2447
        %v2449 = vrcp.pop 32.0
        %v2450 = vmul.f32 %v2445, %v2449
        %v2451 = vmul.f32 %v2448, %v2449
        %v2452 = vsub.f32 %v2441, %v2450
        %v2453 = vsub.f32 %v2442, %v2451
        %v2454 = vmul.f32 %v2452, %v2452
        %v2455 = vmul.f32 %v2453, %v2453
        %v2456 = vsel %vm494, %v2454, 0.0
        %2457 = vadd.xlane.f32.xlu0 %v2456
        %v2458 = vpop.xlane.xlu0 %2457
        %v2459 = vsel %vm494, %v2455, 0.0
        %2460 = vadd.xlane.f32.xlu0 %v2459
        %v2461 = vpop.xlane.xlu0 %2460
        %v2462 = vmul.f32 %v2458, %v2449
        %v2463 = vmul.f32 %v2461, %v2449
        %v2464 = vadd.f32 %v2462, 1e-05
        %v2465 = vadd.f32 %v2463, 1e-05
        %v2466 = vrsqrt.pop %v2464
        %v2467 = vrsqrt.pop %v2465
        %v2468 = vmul.f32 %v2452, %v2466
        %v2469 = vmul.f32 %v2453, %v2467
        %v2470 = vlaneseq
        %v2471 = vshrl.u32 %v2470, 7
        %v2472 = vsub.s32 1, %v2471
        %v2473 = vrot.slane %v460, %v2472
        %v2474 = vmul.f32 %v2468, %v2473
        %v2475 = vmul.f32 %v2469, %v2473
        %v2476 = vlaneseq
        %v2477 = vshrl.u32 %v2476, 7
        %v2478 = vsub.s32 2, %v2477
        %v2479 = vrot.slane %v460, %v2478
        %v2480 = vadd.f32 %v2474, %v2479
        %v2481 = vadd.f32 %v2475, %v2479
        %v2482 = vpack.c.bf16 %v2481, %v2480
        %s2483 = sadd.s32 4, %s2374
        %s2484 = smul.addr %s2483, 4
        %s2485 = scalar_lea.vmem [#allocation6], %s2484
        %v2486 = vld [vmem:[%s2485] sm:$0xf]
        %v2487 = vld [vmem:[%s2485 + $0x4] sm:$0xf]
        %v2488 = vld [vmem:[%s2485 + $0x8] sm:$0xf]
        %v2489 = vld [vmem:[%s2485 + $0xc] sm:$0xf]
        %v2490 = vlaneseq
        %v2491 = vshrl.u32 %v2490, 7
        %v2492 = vsub.s32 3, %v2491
        %v2493 = vrot.slane %v460, %v2492
        %v2498 = vunpack.c.l.b16 %v2486
        %v2499 = vunpack.c.l.b16 %v2487
        %v2500 = vunpack.c.l.b16 %v2488
        %v2501 = vunpack.c.l.b16 %v2489
        %v2502 = vpack.c.b16 %v2499, %v2498
        %v2503 = vpack.c.b16 %v2501, %v2500
        %v2507 = vsel %vm494, %v2482, 0
        %2509 = vmatprep.subr.bf16.mxu0 0
        %2510 = vmatpush1.bf16.msra.mxu0 %v2502
        %2511 = vmatprep.subr.bf16.mxu0 0
        %2512 = vmatpush1.bf16.msra.mxu0 %v2503
        %2513 = vmatprep.subr.bf16.mxu0 0
        %2514 = vmatpush1.bf16.msra.mxu0 0
        %2515 = vmatprep.subr.bf16.mxu0 0
        %2516 = vmatpush1.bf16.msra.mxu0 0
        %2517 = vmatprep.subr.bf16.mxu0 0
        %2518 = vmatpush1.bf16.msra.mxu0 0
        %2519 = vmatprep.subr.bf16.mxu0 0
        %2520 = vmatpush1.bf16.msra.mxu0 0
        %2521 = vmatprep.subr.bf16.mxu0 0
        %2522 = vmatpush1.bf16.msra.mxu0 0
        %2523 = vmatprep.subr.bf16.mxu0 0
        %2524 = vmatpush1.bf16.msra.mxu0 0
        %2525 = vmatprep.subr.bf16.mxu0 0
        %2526 = vmatpush1.bf16.msra.mxu0 0
        %2527 = vmatprep.subr.bf16.mxu0 0
        %2528 = vmatpush1.bf16.msra.mxu0 0
        %2529 = vmatprep.subr.bf16.mxu0 0
        %2530 = vmatpush1.bf16.msra.mxu0 0
        %2531 = vmatprep.subr.bf16.mxu0 0
        %2532 = vmatpush1.bf16.msra.mxu0 0
        %2533 = vmatprep.subr.bf16.mxu0 0
        %2534 = vmatpush1.bf16.msra.mxu0 0
        %2535 = vmatprep.subr.bf16.mxu0 0
        %2536 = vmatpush1.bf16.msra.mxu0 0
        %2537 = vmatprep.subr.bf16.mxu0 0
        %2538 = vmatpush1.bf16.msra.mxu0 0
        %2539 = vmatprep.subr.bf16.mxu0 0
        %2540 = vmatpush1.bf16.msra.mxu0 0
        %2541 = vmatprep.mubr.bf16.mxu0 0
        %2542 = vmatmul.mubr.bf16.gmra.mrb[0].mxu0 %v2507
        %v2543 = vpop.f32.mrb[0].mxu0
        %v2544 = vadd.f32 %v2493, %v2543
        %v2545 = vpop.f32.mrb[0].mxu0
        %v2546 = vpop.f32.mrb[0].mxu0
        %v2547 = vadd.f32 %v2493, %v2546
        %v2548 = vpop.f32.mrb[0].mxu0
        %2549 = vdwg.mxu0
        %v2550 = vmul.f32 %v2544, %v2544
        %v2551 = vmul.f32 %v2547, %v2547
        %v2552 = vmul.f32 %v2544, %v2550
        %v2553 = vmul.f32 %v2547, %v2551
        %v2554 = vmul.f32 %v2552, 0.044715
        %v2555 = vmul.f32 %v2553, 0.044715
        %v2556 = vadd.f32 %v2544, %v2554
        %v2557 = vadd.f32 %v2547, %v2555
        %v2558 = vmul.f32 %v2556, 0.7978846
        %v2559 = vmul.f32 %v2557, 0.7978846
        %v2560 = vtanh.pop %v2558
        %v2561 = vtanh.pop %v2559
        %v2562 = vadd.f32 %v2560, 1.0
        %v2563 = vadd.f32 %v2561, 1.0
        %v2564 = vmul.f32 %v2562, 0.5
        %v2565 = vmul.f32 %v2563, 0.5
        %v2566 = vmul.f32 %v2544, %v2564
        %v2567 = vmul.f32 %v2547, %v2565
        %v2568 = vpack.c.bf16 %v2567, %v2566
        %s2569 = sadd.s32 8, %s2374
        %s2570 = smul.addr %s2569, 4
        %s2571 = scalar_lea.vmem [#allocation6], %s2570
        %v2572 = vld [vmem:[%s2571] sm:$0xf]
        %v2573 = vld [vmem:[%s2571 + $0x4] sm:$0xf]
        %v2574 = vld [vmem:[%s2571 + $0x8] sm:$0xf]
        %v2575 = vld [vmem:[%s2571 + $0xc] sm:$0xf]
        %v2576 = vlaneseq
        %v2577 = vshrl.u32 %v2576, 7
        %v2578 = vsub.s32 4, %v2577
        %v2579 = vrot.slane %v460, %v2578
        %v2584 = vunpack.c.l.b16 %v2572
        %v2585 = vunpack.c.l.b16 %v2573
        %v2586 = vunpack.c.l.b16 %v2574
        %v2587 = vunpack.c.l.b16 %v2575
        %v2588 = vpack.c.b16 %v2585, %v2584
        %v2589 = vpack.c.b16 %v2587, %v2586
        %v2593 = vsel %vm494, %v2568, 0
        %2595 = vmatprep.subr.bf16.mxu0 0
        %2596 = vmatpush1.bf16.msra.mxu0 %v2588
        %2597 = vmatprep.subr.bf16.mxu0 0
        %2598 = vmatpush1.bf16.msra.mxu0 %v2589
        %2599 = vmatprep.subr.bf16.mxu0 0
        %2600 = vmatpush1.bf16.msra.mxu0 0
        %2601 = vmatprep.subr.bf16.mxu0 0
        %2602 = vmatpush1.bf16.msra.mxu0 0
        %2603 = vmatprep.subr.bf16.mxu0 0
        %2604 = vmatpush1.bf16.msra.mxu0 0
        %2605 = vmatprep.subr.bf16.mxu0 0
        %2606 = vmatpush1.bf16.msra.mxu0 0
        %2607 = vmatprep.subr.bf16.mxu0 0
        %2608 = vmatpush1.bf16.msra.mxu0 0
        %2609 = vmatprep.subr.bf16.mxu0 0
        %2610 = vmatpush1.bf16.msra.mxu0 0
        %2611 = vmatprep.subr.bf16.mxu0 0
        %2612 = vmatpush1.bf16.msra.mxu0 0
        %2613 = vmatprep.subr.bf16.mxu0 0
        %2614 = vmatpush1.bf16.msra.mxu0 0
        %2615 = vmatprep.subr.bf16.mxu0 0
        %2616 = vmatpush1.bf16.msra.mxu0 0
        %2617 = vmatprep.subr.bf16.mxu0 0
        %2618 = vmatpush1.bf16.msra.mxu0 0
        %2619 = vmatprep.subr.bf16.mxu0 0
        %2620 = vmatpush1.bf16.msra.mxu0 0
        %2621 = vmatprep.subr.bf16.mxu0 0
        %2622 = vmatpush1.bf16.msra.mxu0 0
        %2623 = vmatprep.subr.bf16.mxu0 0
        %2624 = vmatpush1.bf16.msra.mxu0 0
        %2625 = vmatprep.subr.bf16.mxu0 0
        %2626 = vmatpush1.bf16.msra.mxu0 0
        %2627 = vmatprep.mubr.bf16.mxu0 0
        %2628 = vmatmul.mubr.bf16.gmra.mrb[0].mxu0 %v2593
        %v2629 = vpop.f32.mrb[0].mxu0
        %v2630 = vadd.f32 %v2579, %v2629
        %v2631 = vpop.f32.mrb[0].mxu0
        %v2632 = vpop.f32.mrb[0].mxu0
        %v2633 = vadd.f32 %v2579, %v2632
        %v2634 = vpop.f32.mrb[0].mxu0
        %2635 = vdwg.mxu0
        %v2636 = vadd.f32 %v2480, %v2630
        %v2637 = vadd.f32 %v2481, %v2633
        %v2638 = vsel %vm494, %v2636, 0.0
        %2639 = vadd.xlane.f32.xlu0 %v2638
        %v2640 = vpop.xlane.xlu0 %2639
        %v2641 = vsel %vm494, %v2637, 0.0
        %2642 = vadd.xlane.f32.xlu0 %v2641
        %v2643 = vpop.xlane.xlu0 %2642
        %v2644 = vmul.f32 %v2640, %v2449
        %v2645 = vmul.f32 %v2643, %v2449
        %v2646 = vsub.f32 %v2636, %v2644
        %v2647 = vsub.f32 %v2637, %v2645
        %v2648 = vmul.f32 %v2646, %v2646
        %v2649 = vmul.f32 %v2647, %v2647
        %v2650 = vsel %vm494, %v2648, 0.0
        %2651 = vadd.xlane.f32.xlu0 %v2650
        %v2652 = vpop.xlane.xlu0 %2651
        %v2653 = vsel %vm494, %v2649, 0.0
        %2654 = vadd.xlane.f32.xlu0 %v2653
        %v2655 = vpop.xlane.xlu0 %2654
        %v2656 = vmul.f32 %v2652, %v2449
        %v2657 = vmul.f32 %v2655, %v2449
        %v2658 = vadd.f32 %v2656, 1e-05
        %v2659 = vadd.f32 %v2657, 1e-05
        %v2660 = vrsqrt.pop %v2658
        %v2661 = vrsqrt.pop %v2659
        %v2662 = vmul.f32 %v2646, %v2660
        %v2663 = vmul.f32 %v2647, %v2661
        %v2664 = vlaneseq
        %v2665 = vshrl.u32 %v2664, 7
        %v2666 = vsub.s32 5, %v2665
        %v2667 = vrot.slane %v460, %v2666
        %v2668 = vmul.f32 %v2662, %v2667
        %v2669 = vmul.f32 %v2663, %v2667
        %v2670 = vlaneseq
        %v2671 = vshrl.u32 %v2670, 7
        %v2672 = vsub.s32 6, %v2671
        %v2673 = vrot.slane %v460, %v2672
        %v2674 = vadd.f32 %v2668, %v2673
        %v2675 = vadd.f32 %v2669, %v2673
        %v2676 = vpack.c.bf16 %v2675, %v2674
        %s2677 = sadd.s32 12, %s2374
        %s2678 = smul.addr %s2677, 4
        %s2679 = scalar_lea.vmem [#allocation6], %s2678
        %v2680 = vld [vmem:[%s2679] sm:$0xf]
        %v2681 = vld [vmem:[%s2679 + $0x4] sm:$0xf]
        %v2682 = vld [vmem:[%s2679 + $0x8] sm:$0xf]
        %v2683 = vld [vmem:[%s2679 + $0xc] sm:$0xf]
        %v2684 = vlaneseq
        %v2685 = vshrl.u32 %v2684, 7
        %v2686 = vsub.s32 7, %v2685
        %v2687 = vrot.slane %v460, %v2686
        %v2692 = vunpack.c.l.b16 %v2680
        %v2693 = vunpack.c.l.b16 %v2681
        %v2694 = vunpack.c.l.b16 %v2682
        %v2695 = vunpack.c.l.b16 %v2683
        %v2696 = vpack.c.b16 %v2693, %v2692
        %v2697 = vpack.c.b16 %v2695, %v2694
        %v2701 = vsel %vm494, %v2676, 0
        %2703 = vmatprep.subr.bf16.mxu0 0
        %2704 = vmatpush1.bf16.msra.mxu0 %v2696
        %2705 = vmatprep.subr.bf16.mxu0 0
        %2706 = vmatpush1.bf16.msra.mxu0 %v2697
        %2707 = vmatprep.subr.bf16.mxu0 0
        %2708 = vmatpush1.bf16.msra.mxu0 0
        %2709 = vmatprep.subr.bf16.mxu0 0
        %2710 = vmatpush1.bf16.msra.mxu0 0
        %2711 = vmatprep.subr.bf16.mxu0 0
        %2712 = vmatpush1.bf16.msra.mxu0 0
        %2713 = vmatprep.subr.bf16.mxu0 0
        %2714 = vmatpush1.bf16.msra.mxu0 0
        %2715 = vmatprep.subr.bf16.mxu0 0
        %2716 = vmatpush1.bf16.msra.mxu0 0
        %2717 = vmatprep.subr.bf16.mxu0 0
        %2718 = vmatpush1.bf16.msra.mxu0 0
        %2719 = vmatprep.subr.bf16.mxu0 0
        %2720 = vmatpush1.bf16.msra.mxu0 0
        %2721 = vmatprep.subr.bf16.mxu0 0
        %2722 = vmatpush1.bf16.msra.mxu0 0
        %2723 = vmatprep.subr.bf16.mxu0 0
        %2724 = vmatpush1.bf16.msra.mxu0 0
        %2725 = vmatprep.subr.bf16.mxu0 0
        %2726 = vmatpush1.bf16.msra.mxu0 0
        %2727 = vmatprep.subr.bf16.mxu0 0
        %2728 = vmatpush1.bf16.msra.mxu0 0
        %2729 = vmatprep.subr.bf16.mxu0 0
        %2730 = vmatpush1.bf16.msra.mxu0 0
        %2731 = vmatprep.subr.bf16.mxu0 0
        %2732 = vmatpush1.bf16.msra.mxu0 0
        %2733 = vmatprep.subr.bf16.mxu0 0
        %2734 = vmatpush1.bf16.msra.mxu0 0
        %2735 = vmatprep.mubr.bf16.mxu0 0
        %2736 = vmatmul.mubr.bf16.gmra.mrb[0].mxu0 %v2701
        %v2737 = vpop.f32.mrb[0].mxu0
        %v2738 = vadd.f32 %v2687, %v2737
        %v2739 = vpop.f32.mrb[0].mxu0
        %v2740 = vpop.f32.mrb[0].mxu0
        %v2741 = vadd.f32 %v2687, %v2740
        %v2742 = vpop.f32.mrb[0].mxu0
        %2743 = vdwg.mxu0
        %s2744 = smul.addr %s469, 4
        %s2745 = scalar_lea.vmem [#allocation4], %s2744
        %v2746 = vld [vmem:[%s2745] sm:$0xf]
        %v2747 = vld [vmem:[%s2745 + $0x4] sm:$0xf]
        %v2748 = vld [vmem:[%s2745 + $0x8] sm:$0xf]
        %v2749 = vld [vmem:[%s2745 + $0xc] sm:$0xf]
        %v2751 = vlaneseq
        %v2752 = vshrl.u32 %v2751, 7
        %v2753 = vsub.s32 0, %v2752
        %v2754 = vrot.slane %v465, %v2753
        %v2758 = vunpack.c.l.b16 %v456
        %v2759 = vunpack.c.l.b16 %v457
        %v2760 = vpack.c.b16 %v2759, %v2758
        %v2765 = vunpack.c.l.b16 %v2746
        %v2766 = vunpack.c.l.b16 %v2747
        %v2767 = vunpack.c.l.b16 %v2748
        %v2768 = vunpack.c.l.b16 %v2749
        %v2769 = vpack.c.b16 %v2766, %v2765
        %v2770 = vpack.c.b16 %v2768, %v2767
        %v2774 = vsel %vm494, %v2760, 0
        %2776 = vmatprep.subr.bf16.mxu0 0
        %2777 = vmatpush1.bf16.msra.mxu0 %v2769
        %2778 = vmatprep.subr.bf16.mxu0 0
        %2779 = vmatpush1.bf16.msra.mxu0 %v2770
        %2780 = vmatprep.subr.bf16.mxu0 0
        %2781 = vmatpush1.bf16.msra.mxu0 0
        %2782 = vmatprep.subr.bf16.mxu0 0
        %2783 = vmatpush1.bf16.msra.mxu0 0
        %2784 = vmatprep.subr.bf16.mxu0 0
        %2785 = vmatpush1.bf16.msra.mxu0 0
        %2786 = vmatprep.subr.bf16.mxu0 0
        %2787 = vmatpush1.bf16.msra.mxu0 0
        %2788 = vmatprep.subr.bf16.mxu0 0
        %2789 = vmatpush1.bf16.msra.mxu0 0
        %2790 = vmatprep.subr.bf16.mxu0 0
        %2791 = vmatpush1.bf16.msra.mxu0 0
        %2792 = vmatprep.subr.bf16.mxu0 0
        %2793 = vmatpush1.bf16.msra.mxu0 0
        %2794 = vmatprep.subr.bf16.mxu0 0
        %2795 = vmatpush1.bf16.msra.mxu0 0
        %2796 = vmatprep.subr.bf16.mxu0 0
        %2797 = vmatpush1.bf16.msra.mxu0 0
        %2798 = vmatprep.subr.bf16.mxu0 0
        %2799 = vmatpush1.bf16.msra.mxu0 0
        %2800 = vmatprep.subr.bf16.mxu0 0
        %2801 = vmatpush1.bf16.msra.mxu0 0
        %2802 = vmatprep.subr.bf16.mxu0 0
        %2803 = vmatpush1.bf16.msra.mxu0 0
        %2804 = vmatprep.subr.bf16.mxu0 0
        %2805 = vmatpush1.bf16.msra.mxu0 0
        %2806 = vmatprep.subr.bf16.mxu0 0
        %2807 = vmatpush1.bf16.msra.mxu0 0
        %2808 = vmatprep.mubr.bf16.mxu0 0
        %2809 = vmatmul.mubr.bf16.gmra.mrb[0].mxu0 %v2774
        %v2810 = vpop.f32.mrb[0].mxu0
        %v2811 = vadd.f32 %v2754, %v2810
        %v2812 = vpop.f32.mrb[0].mxu0
        %v2813 = vpop.f32.mrb[0].mxu0
        %v2814 = vadd.f32 %v2754, %v2813
        %v2815 = vpop.f32.mrb[0].mxu0
        %2816 = vdwg.mxu0
        %2819 = vrot.lane.b32.xlu0 %v2738, 112
        %v2820 = vpop.permute.xlu0 %2819
        %2821 = vrot.lane.b32.xlu0 %v2741, 112
        %v2822 = vpop.permute.xlu0 %2821
        %v2825 = vcombine.high %v2738, 0.0
        %v2827 = vunpack.c.l.s4 1983009808
        %v2828 = vunpack.c.0.s8 %v2827
        %v2829 = vlaneseq
        %v2830 = vshrl.u32 %v2829, 7
        %v2831 = vsub.s32 %v2828, %v2830
        %v2832 = vrot.slane %v2738, %v2831
        %v2834 = vunpack.c.l.s4 1983009808
        %v2835 = vunpack.c.0.s8 %v2834
        %v2836 = vlaneseq
        %v2837 = vshrl.u32 %v2836, 7
        %v2838 = vsub.s32 %v2835, %v2837
        %v2839 = vrot.slane %v2825, %v2838
        %v2840 = vcombine.high %v2820, 0.0
        %v2842 = vunpack.c.l.s4 1983009808
        %v2843 = vunpack.c.0.s8 %v2842
        %v2844 = vlaneseq
        %v2845 = vshrl.u32 %v2844, 7
        %v2846 = vsub.s32 %v2843, %v2845
        %v2847 = vrot.slane %v2820, %v2846
        %v2849 = vunpack.c.l.s4 1983009808
        %v2850 = vunpack.c.0.s8 %v2849
        %v2851 = vlaneseq
        %v2852 = vshrl.u32 %v2851, 7
        %v2853 = vsub.s32 %v2850, %v2852
        %v2854 = vrot.slane %v2840, %v2853
        %v2855 = vcombine.low %v2832, %v2847
        %v2856 = vcombine.high %v2832, %v2847
        %v2858 = vunpack.c.l.s4 1934713408
        %v2859 = vunpack.c.0.s8 %v2858
        %v2860 = vlaneseq
        %v2861 = vshrl.u32 %v2860, 7
        %v2862 = vsub.s32 %v2859, %v2861
        %v2863 = vrot.slane %v2855, %v2862
        %v2865 = vunpack.c.l.s4 1934713408
        %v2866 = vunpack.c.0.s8 %v2865
        %v2867 = vlaneseq
        %v2868 = vshrl.u32 %v2867, 7
        %v2869 = vsub.s32 %v2866, %v2868
        %v2870 = vrot.slane %v2856, %v2869
        %v2871 = vcombine.low %v2839, %v2854
        %v2872 = vcombine.high %v2839, %v2854
        %v2874 = vunpack.c.l.s4 1934713408
        %v2875 = vunpack.c.0.s8 %v2874
        %v2876 = vlaneseq
        %v2877 = vshrl.u32 %v2876, 7
        %v2878 = vsub.s32 %v2875, %v2877
        %v2879 = vrot.slane %v2871, %v2878
        %v2881 = vunpack.c.l.s4 1934713408
        %v2882 = vunpack.c.0.s8 %v2881
        %v2883 = vlaneseq
        %v2884 = vshrl.u32 %v2883, 7
        %v2885 = vsub.s32 %v2882, %v2884
        %v2886 = vrot.slane %v2872, %v2885
        %v2887 = vcombine.high %v2863, 0.0
        %v2888 = vcombine.high %v2870, 0.0
        %v2889 = vcombine.high %v2879, 0.0
        %v2890 = vcombine.high %v2886, 0.0
        %v2891 = vcombine.high %v2741, 0.0
        %v2893 = vunpack.c.l.s4 1983009808
        %v2894 = vunpack.c.0.s8 %v2893
        %v2895 = vlaneseq
        %v2896 = vshrl.u32 %v2895, 7
        %v2897 = vsub.s32 %v2894, %v2896
        %v2898 = vrot.slane %v2741, %v2897
        %v2900 = vunpack.c.l.s4 1983009808
        %v2901 = vunpack.c.0.s8 %v2900
        %v2902 = vlaneseq
        %v2903 = vshrl.u32 %v2902, 7
        %v2904 = vsub.s32 %v2901, %v2903
        %v2905 = vrot.slane %v2891, %v2904
        %v2906 = vcombine.high %v2822, 0.0
        %v2908 = vunpack.c.l.s4 1983009808
        %v2909 = vunpack.c.0.s8 %v2908
        %v2910 = vlaneseq
        %v2911 = vshrl.u32 %v2910, 7
        %v2912 = vsub.s32 %v2909, %v2911
        %v2913 = vrot.slane %v2822, %v2912
        %v2915 = vunpack.c.l.s4 1983009808
        %v2916 = vunpack.c.0.s8 %v2915
        %v2917 = vlaneseq
        %v2918 = vshrl.u32 %v2917, 7
        %v2919 = vsub.s32 %v2916, %v2918
        %v2920 = vrot.slane %v2906, %v2919
        %v2921 = vcombine.low %v2898, %v2913
        %v2922 = vcombine.high %v2898, %v2913
        %v2924 = vunpack.c.l.s4 1934713408
        %v2925 = vunpack.c.0.s8 %v2924
        %v2926 = vlaneseq
        %v2927 = vshrl.u32 %v2926, 7
        %v2928 = vsub.s32 %v2925, %v2927
        %v2929 = vrot.slane %v2921, %v2928
        %v2931 = vunpack.c.l.s4 1934713408
        %v2932 = vunpack.c.0.s8 %v2931
        %v2933 = vlaneseq
        %v2934 = vshrl.u32 %v2933, 7
        %v2935 = vsub.s32 %v2932, %v2934
        %v2936 = vrot.slane %v2922, %v2935
        %v2937 = vcombine.low %v2905, %v2920
        %v2938 = vcombine.high %v2905, %v2920
        %v2940 = vunpack.c.l.s4 1934713408
        %v2941 = vunpack.c.0.s8 %v2940
        %v2942 = vlaneseq
        %v2943 = vshrl.u32 %v2942, 7
        %v2944 = vsub.s32 %v2941, %v2943
        %v2945 = vrot.slane %v2937, %v2944
        %v2947 = vunpack.c.l.s4 1934713408
        %v2948 = vunpack.c.0.s8 %v2947
        %v2949 = vlaneseq
        %v2950 = vshrl.u32 %v2949, 7
        %v2951 = vsub.s32 %v2948, %v2950
        %v2952 = vrot.slane %v2938, %v2951
        %v2953 = vcombine.high %v2929, 0.0
        %v2954 = vcombine.high %v2936, 0.0
        %v2955 = vcombine.high %v2945, 0.0
        %v2956 = vcombine.high %v2952, 0.0
        %v2957 = vcombine.low %v2863, %v2870
        %v2959 = vunpack.c.l.s4 1983009808
        %v2960 = vunpack.c.0.s8 %v2959
        %v2961 = vlaneseq
        %v2962 = vshrl.u32 %v2961, 7
        %v2963 = vsub.s32 %v2960, %v2962
        %v2964 = vrot.slane %v2957, %v2963
        %v2965 = vcombine.low %v2887, %v2888
        %v2967 = vunpack.c.l.s4 1983009808
        %v2968 = vunpack.c.0.s8 %v2967
        %v2969 = vlaneseq
        %v2970 = vshrl.u32 %v2969, 7
        %v2971 = vsub.s32 %v2968, %v2970
        %v2972 = vrot.slane %v2965, %v2971
        %v2973 = vcombine.low %v2964, %v2972
        %v2975 = vunpack.c.l.s4 1934713408
        %v2976 = vunpack.c.0.s8 %v2975
        %v2977 = vlaneseq
        %v2978 = vshrl.u32 %v2977, 7
        %v2979 = vsub.s32 %v2976, %v2978
        %v2980 = vrot.slane %v2973, %v2979
        %v2981 = vcombine.high %v2980, 0.0
        %v2982 = vcombine.low %v2879, %v2886
        %v2984 = vunpack.c.l.s4 1983009808
        %v2985 = vunpack.c.0.s8 %v2984
        %v2986 = vlaneseq
        %v2987 = vshrl.u32 %v2986, 7
        %v2988 = vsub.s32 %v2985, %v2987
        %v2989 = vrot.slane %v2982, %v2988
        %v2990 = vcombine.low %v2889, %v2890
        %v2992 = vunpack.c.l.s4 1983009808
        %v2993 = vunpack.c.0.s8 %v2992
        %v2994 = vlaneseq
        %v2995 = vshrl.u32 %v2994, 7
        %v2996 = vsub.s32 %v2993, %v2995
        %v2997 = vrot.slane %v2990, %v2996
        %v2998 = vcombine.low %v2989, %v2997
        %v3000 = vunpack.c.l.s4 1934713408
        %v3001 = vunpack.c.0.s8 %v3000
        %v3002 = vlaneseq
        %v3003 = vshrl.u32 %v3002, 7
        %v3004 = vsub.s32 %v3001, %v3003
        %v3005 = vrot.slane %v2998, %v3004
        %v3006 = vcombine.high %v3005, 0.0
        %v3007 = vcombine.low %v2929, %v2936
        %v3009 = vunpack.c.l.s4 1983009808
        %v3010 = vunpack.c.0.s8 %v3009
        %v3011 = vlaneseq
        %v3012 = vshrl.u32 %v3011, 7
        %v3013 = vsub.s32 %v3010, %v3012
        %v3014 = vrot.slane %v3007, %v3013
        %v3015 = vcombine.low %v2953, %v2954
        %v3017 = vunpack.c.l.s4 1983009808
        %v3018 = vunpack.c.0.s8 %v3017
        %v3019 = vlaneseq
        %v3020 = vshrl.u32 %v3019, 7
        %v3021 = vsub.s32 %v3018, %v3020
        %v3022 = vrot.slane %v3015, %v3021
        %v3023 = vcombine.low %v3014, %v3022
        %v3025 = vunpack.c.l.s4 1934713408
        %v3026 = vunpack.c.0.s8 %v3025
        %v3027 = vlaneseq
        %v3028 = vshrl.u32 %v3027, 7
        %v3029 = vsub.s32 %v3026, %v3028
        %v3030 = vrot.slane %v3023, %v3029
        %v3031 = vcombine.high %v3030, 0.0
        %v3032 = vcombine.low %v2945, %v2952
        %v3034 = vunpack.c.l.s4 1983009808
        %v3035 = vunpack.c.0.s8 %v3034
        %v3036 = vlaneseq
        %v3037 = vshrl.u32 %v3036, 7
        %v3038 = vsub.s32 %v3035, %v3037
        %v3039 = vrot.slane %v3032, %v3038
        %v3040 = vcombine.low %v2955, %v2956
        %v3042 = vunpack.c.l.s4 1983009808
        %v3043 = vunpack.c.0.s8 %v3042
        %v3044 = vlaneseq
        %v3045 = vshrl.u32 %v3044, 7
        %v3046 = vsub.s32 %v3043, %v3045
        %v3047 = vrot.slane %v3040, %v3046
        %v3048 = vcombine.low %v3039, %v3047
        %v3050 = vunpack.c.l.s4 1934713408
        %v3051 = vunpack.c.0.s8 %v3050
        %v3052 = vlaneseq
        %v3053 = vshrl.u32 %v3052, 7
        %v3054 = vsub.s32 %v3051, %v3053
        %v3055 = vrot.slane %v3048, %v3054
        %v3056 = vcombine.high %v3055, 0.0
        %3059 = vrot.lane.b32.xlu0 %v2811, 112
        %v3060 = vpop.permute.xlu0 %3059
        %3061 = vrot.lane.b32.xlu0 %v2814, 112
        %v3062 = vpop.permute.xlu0 %3061
        %v3065 = vcombine.high %v2811, 0.0
        %v3067 = vunpack.c.l.s4 1983009808
        %v3068 = vunpack.c.0.s8 %v3067
        %v3069 = vlaneseq
        %v3070 = vshrl.u32 %v3069, 7
        %v3071 = vsub.s32 %v3068, %v3070
        %v3072 = vrot.slane %v2811, %v3071
        %v3074 = vunpack.c.l.s4 1983009808
        %v3075 = vunpack.c.0.s8 %v3074
        %v3076 = vlaneseq
        %v3077 = vshrl.u32 %v3076, 7
        %v3078 = vsub.s32 %v3075, %v3077
        %v3079 = vrot.slane %v3065, %v3078
        %v3080 = vcombine.high %v3060, 0.0
        %v3082 = vunpack.c.l.s4 1983009808
        %v3083 = vunpack.c.0.s8 %v3082
        %v3084 = vlaneseq
        %v3085 = vshrl.u32 %v3084, 7
        %v3086 = vsub.s32 %v3083, %v3085
        %v3087 = vrot.slane %v3060, %v3086
        %v3089 = vunpack.c.l.s4 1983009808
        %v3090 = vunpack.c.0.s8 %v3089
        %v3091 = vlaneseq
        %v3092 = vshrl.u32 %v3091, 7
        %v3093 = vsub.s32 %v3090, %v3092
        %v3094 = vrot.slane %v3080, %v3093
        %v3095 = vcombine.low %v3072, %v3087
        %v3096 = vcombine.high %v3072, %v3087
        %v3098 = vunpack.c.l.s4 1934713408
        %v3099 = vunpack.c.0.s8 %v3098
        %v3100 = vlaneseq
        %v3101 = vshrl.u32 %v3100, 7
        %v3102 = vsub.s32 %v3099, %v3101
        %v3103 = vrot.slane %v3095, %v3102
        %v3105 = vunpack.c.l.s4 1934713408
        %v3106 = vunpack.c.0.s8 %v3105
        %v3107 = vlaneseq
        %v3108 = vshrl.u32 %v3107, 7
        %v3109 = vsub.s32 %v3106, %v3108
        %v3110 = vrot.slane %v3096, %v3109
        %v3111 = vcombine.low %v3079, %v3094
        %v3112 = vcombine.high %v3079, %v3094
        %v3114 = vunpack.c.l.s4 1934713408
        %v3115 = vunpack.c.0.s8 %v3114
        %v3116 = vlaneseq
        %v3117 = vshrl.u32 %v3116, 7
        %v3118 = vsub.s32 %v3115, %v3117
        %v3119 = vrot.slane %v3111, %v3118
        %v3121 = vunpack.c.l.s4 1934713408
        %v3122 = vunpack.c.0.s8 %v3121
        %v3123 = vlaneseq
        %v3124 = vshrl.u32 %v3123, 7
        %v3125 = vsub.s32 %v3122, %v3124
        %v3126 = vrot.slane %v3112, %v3125
        %v3127 = vcombine.high %v3103, 0.0
        %v3128 = vcombine.high %v3110, 0.0
        %v3129 = vcombine.high %v3119, 0.0
        %v3130 = vcombine.high %v3126, 0.0
        %v3131 = vcombine.high %v2814, 0.0
        %v3133 = vunpack.c.l.s4 1983009808
        %v3134 = vunpack.c.0.s8 %v3133
        %v3135 = vlaneseq
        %v3136 = vshrl.u32 %v3135, 7
        %v3137 = vsub.s32 %v3134, %v3136
        %v3138 = vrot.slane %v2814, %v3137
        %v3140 = vunpack.c.l.s4 1983009808
        %v3141 = vunpack.c.0.s8 %v3140
        %v3142 = vlaneseq
        %v3143 = vshrl.u32 %v3142, 7
        %v3144 = vsub.s32 %v3141, %v3143
        %v3145 = vrot.slane %v3131, %v3144
        %v3146 = vcombine.high %v3062, 0.0
        %v3148 = vunpack.c.l.s4 1983009808
        %v3149 = vunpack.c.0.s8 %v3148
        %v3150 = vlaneseq
        %v3151 = vshrl.u32 %v3150, 7
        %v3152 = vsub.s32 %v3149, %v3151
        %v3153 = vrot.slane %v3062, %v3152
        %v3155 = vunpack.c.l.s4 1983009808
        %v3156 = vunpack.c.0.s8 %v3155
        %v3157 = vlaneseq
        %v3158 = vshrl.u32 %v3157, 7
        %v3159 = vsub.s32 %v3156, %v3158
        %v3160 = vrot.slane %v3146, %v3159
        %v3161 = vcombine.low %v3138, %v3153
        %v3162 = vcombine.high %v3138, %v3153
        %v3164 = vunpack.c.l.s4 1934713408
        %v3165 = vunpack.c.0.s8 %v3164
        %v3166 = vlaneseq
        %v3167 = vshrl.u32 %v3166, 7
        %v3168 = vsub.s32 %v3165, %v3167
        %v3169 = vrot.slane %v3161, %v3168
        %v3171 = vunpack.c.l.s4 1934713408
        %v3172 = vunpack.c.0.s8 %v3171
        %v3173 = vlaneseq
        %v3174 = vshrl.u32 %v3173, 7
        %v3175 = vsub.s32 %v3172, %v3174
        %v3176 = vrot.slane %v3162, %v3175
        %v3177 = vcombine.low %v3145, %v3160
        %v3178 = vcombine.high %v3145, %v3160
        %v3180 = vunpack.c.l.s4 1934713408
        %v3181 = vunpack.c.0.s8 %v3180
        %v3182 = vlaneseq
        %v3183 = vshrl.u32 %v3182, 7
        %v3184 = vsub.s32 %v3181, %v3183
        %v3185 = vrot.slane %v3177, %v3184
        %v3187 = vunpack.c.l.s4 1934713408
        %v3188 = vunpack.c.0.s8 %v3187
        %v3189 = vlaneseq
        %v3190 = vshrl.u32 %v3189, 7
        %v3191 = vsub.s32 %v3188, %v3190
        %v3192 = vrot.slane %v3178, %v3191
        %v3193 = vcombine.high %v3169, 0.0
        %v3194 = vcombine.high %v3176, 0.0
        %v3195 = vcombine.high %v3185, 0.0
        %v3196 = vcombine.high %v3192, 0.0
        %v3197 = vcombine.low %v3103, %v3110
        %v3199 = vunpack.c.l.s4 1983009808
        %v3200 = vunpack.c.0.s8 %v3199
        %v3201 = vlaneseq
        %v3202 = vshrl.u32 %v3201, 7
        %v3203 = vsub.s32 %v3200, %v3202
        %v3204 = vrot.slane %v3197, %v3203
        %v3205 = vcombine.low %v3127, %v3128
        %v3207 = vunpack.c.l.s4 1983009808
        %v3208 = vunpack.c.0.s8 %v3207
        %v3209 = vlaneseq
        %v3210 = vshrl.u32 %v3209, 7
        %v3211 = vsub.s32 %v3208, %v3210
        %v3212 = vrot.slane %v3205, %v3211
        %v3213 = vcombine.low %v3204, %v3212
        %v3215 = vunpack.c.l.s4 1934713408
        %v3216 = vunpack.c.0.s8 %v3215
        %v3217 = vlaneseq
        %v3218 = vshrl.u32 %v3217, 7
        %v3219 = vsub.s32 %v3216, %v3218
        %v3220 = vrot.slane %v3213, %v3219
        %v3221 = vcombine.high %v3220, 0.0
        %v3222 = vcombine.low %v3119, %v3126
        %v3224 = vunpack.c.l.s4 1983009808
        %v3225 = vunpack.c.0.s8 %v3224
        %v3226 = vlaneseq
        %v3227 = vshrl.u32 %v3226, 7
        %v3228 = vsub.s32 %v3225, %v3227
        %v3229 = vrot.slane %v3222, %v3228
        %v3230 = vcombine.low %v3129, %v3130
        %v3232 = vunpack.c.l.s4 1983009808
        %v3233 = vunpack.c.0.s8 %v3232
        %v3234 = vlaneseq
        %v3235 = vshrl.u32 %v3234, 7
        %v3236 = vsub.s32 %v3233, %v3235
        %v3237 = vrot.slane %v3230, %v3236
        %v3238 = vcombine.low %v3229, %v3237
        %v3240 = vunpack.c.l.s4 1934713408
        %v3241 = vunpack.c.0.s8 %v3240
        %v3242 = vlaneseq
        %v3243 = vshrl.u32 %v3242, 7
        %v3244 = vsub.s32 %v3241, %v3243
        %v3245 = vrot.slane %v3238, %v3244
        %v3246 = vcombine.high %v3245, 0.0
        %v3247 = vcombine.low %v3169, %v3176
        %v3249 = vunpack.c.l.s4 1983009808
        %v3250 = vunpack.c.0.s8 %v3249
        %v3251 = vlaneseq
        %v3252 = vshrl.u32 %v3251, 7
        %v3253 = vsub.s32 %v3250, %v3252
        %v3254 = vrot.slane %v3247, %v3253
        %v3255 = vcombine.low %v3193, %v3194
        %v3257 = vunpack.c.l.s4 1983009808
        %v3258 = vunpack.c.0.s8 %v3257
        %v3259 = vlaneseq
        %v3260 = vshrl.u32 %v3259, 7
        %v3261 = vsub.s32 %v3258, %v3260
        %v3262 = vrot.slane %v3255, %v3261
        %v3263 = vcombine.low %v3254, %v3262
        %v3265 = vunpack.c.l.s4 1934713408
        %v3266 = vunpack.c.0.s8 %v3265
        %v3267 = vlaneseq
        %v3268 = vshrl.u32 %v3267, 7
        %v3269 = vsub.s32 %v3266, %v3268
        %v3270 = vrot.slane %v3263, %v3269
        %v3271 = vcombine.high %v3270, 0.0
        %v3272 = vcombine.low %v3185, %v3192
        %v3274 = vunpack.c.l.s4 1983009808
        %v3275 = vunpack.c.0.s8 %v3274
        %v3276 = vlaneseq
        %v3277 = vshrl.u32 %v3276, 7
        %v3278 = vsub.s32 %v3275, %v3277
        %v3279 = vrot.slane %v3272, %v3278
        %v3280 = vcombine.low %v3195, %v3196
        %v3282 = vunpack.c.l.s4 1983009808
        %v3283 = vunpack.c.0.s8 %v3282
        %v3284 = vlaneseq
        %v3285 = vshrl.u32 %v3284, 7
        %v3286 = vsub.s32 %v3283, %v3285
        %v3287 = vrot.slane %v3280, %v3286
        %v3288 = vcombine.low %v3279, %v3287
        %v3290 = vunpack.c.l.s4 1934713408
        %v3291 = vunpack.c.0.s8 %v3290
        %v3292 = vlaneseq
        %v3293 = vshrl.u32 %v3292, 7
        %v3294 = vsub.s32 %v3291, %v3293
        %v3295 = vrot.slane %v3288, %v3294
        %v3296 = vcombine.high %v3295, 0.0
        %3297 = vrot.lane.b32.xlu0 %v2811, 96
        %v3298 = vpop.permute.xlu0 %3297
        %3299 = vrot.lane.b32.xlu0 %v2814, 96
        %v3300 = vpop.permute.xlu0 %3299
        %3301 = vrot.lane.b32.xlu0 %v3060, 96
        %v3302 = vpop.permute.xlu0 %3301
        %3303 = vrot.lane.b32.xlu0 %v3062, 96
        %v3304 = vpop.permute.xlu0 %3303
        %v3309 = vcombine.high %v3298, 0.0
        %v3311 = vunpack.c.l.s4 1983009808
        %v3312 = vunpack.c.0.s8 %v3311
        %v3313 = vlaneseq
        %v3314 = vshrl.u32 %v3313, 7
        %v3315 = vsub.s32 %v3312, %v3314
        %v3316 = vrot.slane %v3298, %v3315
        %v3318 = vunpack.c.l.s4 1983009808
        %v3319 = vunpack.c.0.s8 %v3318
        %v3320 = vlaneseq
        %v3321 = vshrl.u32 %v3320, 7
        %v3322 = vsub.s32 %v3319, %v3321
        %v3323 = vrot.slane %v3309, %v3322
        %v3324 = vcombine.high %v3302, 0.0
        %v3326 = vunpack.c.l.s4 1983009808
        %v3327 = vunpack.c.0.s8 %v3326
        %v3328 = vlaneseq
        %v3329 = vshrl.u32 %v3328, 7
        %v3330 = vsub.s32 %v3327, %v3329
        %v3331 = vrot.slane %v3302, %v3330
        %v3333 = vunpack.c.l.s4 1983009808
        %v3334 = vunpack.c.0.s8 %v3333
        %v3335 = vlaneseq
        %v3336 = vshrl.u32 %v3335, 7
        %v3337 = vsub.s32 %v3334, %v3336
        %v3338 = vrot.slane %v3324, %v3337
        %v3339 = vcombine.low %v3316, %v3331
        %v3340 = vcombine.high %v3316, %v3331
        %v3342 = vunpack.c.l.s4 1934713408
        %v3343 = vunpack.c.0.s8 %v3342
        %v3344 = vlaneseq
        %v3345 = vshrl.u32 %v3344, 7
        %v3346 = vsub.s32 %v3343, %v3345
        %v3347 = vrot.slane %v3339, %v3346
        %v3349 = vunpack.c.l.s4 1934713408
        %v3350 = vunpack.c.0.s8 %v3349
        %v3351 = vlaneseq
        %v3352 = vshrl.u32 %v3351, 7
        %v3353 = vsub.s32 %v3350, %v3352
        %v3354 = vrot.slane %v3340, %v3353
        %v3355 = vcombine.low %v3323, %v3338
        %v3356 = vcombine.high %v3323, %v3338
        %v3358 = vunpack.c.l.s4 1934713408
        %v3359 = vunpack.c.0.s8 %v3358
        %v3360 = vlaneseq
        %v3361 = vshrl.u32 %v3360, 7
        %v3362 = vsub.s32 %v3359, %v3361
        %v3363 = vrot.slane %v3355, %v3362
        %v3365 = vunpack.c.l.s4 1934713408
        %v3366 = vunpack.c.0.s8 %v3365
        %v3367 = vlaneseq
        %v3368 = vshrl.u32 %v3367, 7
        %v3369 = vsub.s32 %v3366, %v3368
        %v3370 = vrot.slane %v3356, %v3369
        %v3371 = vcombine.high %v3347, 0.0
        %v3372 = vcombine.high %v3354, 0.0
        %v3373 = vcombine.high %v3363, 0.0
        %v3374 = vcombine.high %v3370, 0.0
        %v3375 = vcombine.high %v3300, 0.0
        %v3377 = vunpack.c.l.s4 1983009808
        %v3378 = vunpack.c.0.s8 %v3377
        %v3379 = vlaneseq
        %v3380 = vshrl.u32 %v3379, 7
        %v3381 = vsub.s32 %v3378, %v3380
        %v3382 = vrot.slane %v3300, %v3381
        %v3384 = vunpack.c.l.s4 1983009808
        %v3385 = vunpack.c.0.s8 %v3384
        %v3386 = vlaneseq
        %v3387 = vshrl.u32 %v3386, 7
        %v3388 = vsub.s32 %v3385, %v3387
        %v3389 = vrot.slane %v3375, %v3388
        %v3390 = vcombine.high %v3304, 0.0
        %v3392 = vunpack.c.l.s4 1983009808
        %v3393 = vunpack.c.0.s8 %v3392
        %v3394 = vlaneseq
        %v3395 = vshrl.u32 %v3394, 7
        %v3396 = vsub.s32 %v3393, %v3395
        %v3397 = vrot.slane %v3304, %v3396
        %v3399 = vunpack.c.l.s4 1983009808
        %v3400 = vunpack.c.0.s8 %v3399
        %v3401 = vlaneseq
        %v3402 = vshrl.u32 %v3401, 7
        %v3403 = vsub.s32 %v3400, %v3402
        %v3404 = vrot.slane %v3390, %v3403
        %v3405 = vcombine.low %v3382, %v3397
        %v3406 = vcombine.high %v3382, %v3397
        %v3408 = vunpack.c.l.s4 1934713408
        %v3409 = vunpack.c.0.s8 %v3408
        %v3410 = vlaneseq
        %v3411 = vshrl.u32 %v3410, 7
        %v3412 = vsub.s32 %v3409, %v3411
        %v3413 = vrot.slane %v3405, %v3412
        %v3415 = vunpack.c.l.s4 1934713408
        %v3416 = vunpack.c.0.s8 %v3415
        %v3417 = vlaneseq
        %v3418 = vshrl.u32 %v3417, 7
        %v3419 = vsub.s32 %v3416, %v3418
        %v3420 = vrot.slane %v3406, %v3419
        %v3421 = vcombine.low %v3389, %v3404
        %v3422 = vcombine.high %v3389, %v3404
        %v3424 = vunpack.c.l.s4 1934713408
        %v3425 = vunpack.c.0.s8 %v3424
        %v3426 = vlaneseq
        %v3427 = vshrl.u32 %v3426, 7
        %v3428 = vsub.s32 %v3425, %v3427
        %v3429 = vrot.slane %v3421, %v3428
        %v3431 = vunpack.c.l.s4 1934713408
        %v3432 = vunpack.c.0.s8 %v3431
        %v3433 = vlaneseq
        %v3434 = vshrl.u32 %v3433, 7
        %v3435 = vsub.s32 %v3432, %v3434
        %v3436 = vrot.slane %v3422, %v3435
        %v3437 = vcombine.high %v3413, 0.0
        %v3438 = vcombine.high %v3420, 0.0
        %v3439 = vcombine.high %v3429, 0.0
        %v3440 = vcombine.high %v3436, 0.0
        %v3441 = vcombine.low %v3347, %v3354
        %v3443 = vunpack.c.l.s4 1983009808
        %v3444 = vunpack.c.0.s8 %v3443
        %v3445 = vlaneseq
        %v3446 = vshrl.u32 %v3445, 7
        %v3447 = vsub.s32 %v3444, %v3446
        %v3448 = vrot.slane %v3441, %v3447
        %v3449 = vcombine.low %v3371, %v3372
        %v3451 = vunpack.c.l.s4 1983009808
        %v3452 = vunpack.c.0.s8 %v3451
        %v3453 = vlaneseq
        %v3454 = vshrl.u32 %v3453, 7
        %v3455 = vsub.s32 %v3452, %v3454
        %v3456 = vrot.slane %v3449, %v3455
        %v3457 = vcombine.low %v3448, %v3456
        %v3459 = vunpack.c.l.s4 1934713408
        %v3460 = vunpack.c.0.s8 %v3459
        %v3461 = vlaneseq
        %v3462 = vshrl.u32 %v3461, 7
        %v3463 = vsub.s32 %v3460, %v3462
        %v3464 = vrot.slane %v3457, %v3463
        %v3465 = vcombine.high %v3464, 0.0
        %v3466 = vcombine.low %v3363, %v3370
        %v3468 = vunpack.c.l.s4 1983009808
        %v3469 = vunpack.c.0.s8 %v3468
        %v3470 = vlaneseq
        %v3471 = vshrl.u32 %v3470, 7
        %v3472 = vsub.s32 %v3469, %v3471
        %v3473 = vrot.slane %v3466, %v3472
        %v3474 = vcombine.low %v3373, %v3374
        %v3476 = vunpack.c.l.s4 1983009808
        %v3477 = vunpack.c.0.s8 %v3476
        %v3478 = vlaneseq
        %v3479 = vshrl.u32 %v3478, 7
        %v3480 = vsub.s32 %v3477, %v3479
        %v3481 = vrot.slane %v3474, %v3480
        %v3482 = vcombine.low %v3473, %v3481
        %v3484 = vunpack.c.l.s4 1934713408
        %v3485 = vunpack.c.0.s8 %v3484
        %v3486 = vlaneseq
        %v3487 = vshrl.u32 %v3486, 7
        %v3488 = vsub.s32 %v3485, %v3487
        %v3489 = vrot.slane %v3482, %v3488
        %v3490 = vcombine.high %v3489, 0.0
        %v3491 = vcombine.low %v3413, %v3420
        %v3493 = vunpack.c.l.s4 1983009808
        %v3494 = vunpack.c.0.s8 %v3493
        %v3495 = vlaneseq
        %v3496 = vshrl.u32 %v3495, 7
        %v3497 = vsub.s32 %v3494, %v3496
        %v3498 = vrot.slane %v3491, %v3497
        %v3499 = vcombine.low %v3437, %v3438
        %v3501 = vunpack.c.l.s4 1983009808
        %v3502 = vunpack.c.0.s8 %v3501
        %v3503 = vlaneseq
        %v3504 = vshrl.u32 %v3503, 7
        %v3505 = vsub.s32 %v3502, %v3504
        %v3506 = vrot.slane %v3499, %v3505
        %v3507 = vcombine.low %v3498, %v3506
        %v3509 = vunpack.c.l.s4 1934713408
        %v3510 = vunpack.c.0.s8 %v3509
        %v3511 = vlaneseq
        %v3512 = vshrl.u32 %v3511, 7
        %v3513 = vsub.s32 %v3510, %v3512
        %v3514 = vrot.slane %v3507, %v3513
        %v3515 = vcombine.high %v3514, 0.0
        %v3516 = vcombine.low %v3429, %v3436
        %v3518 = vunpack.c.l.s4 1983009808
        %v3519 = vunpack.c.0.s8 %v3518
        %v3520 = vlaneseq
        %v3521 = vshrl.u32 %v3520, 7
        %v3522 = vsub.s32 %v3519, %v3521
        %v3523 = vrot.slane %v3516, %v3522
        %v3524 = vcombine.low %v3439, %v3440
        %v3526 = vunpack.c.l.s4 1983009808
        %v3527 = vunpack.c.0.s8 %v3526
        %v3528 = vlaneseq
        %v3529 = vshrl.u32 %v3528, 7
        %v3530 = vsub.s32 %v3527, %v3529
        %v3531 = vrot.slane %v3524, %v3530
        %v3532 = vcombine.low %v3523, %v3531
        %v3534 = vunpack.c.l.s4 1934713408
        %v3535 = vunpack.c.0.s8 %v3534
        %v3536 = vlaneseq
        %v3537 = vshrl.u32 %v3536, 7
        %v3538 = vsub.s32 %v3535, %v3537
        %v3539 = vrot.slane %v3532, %v3538
        %v3540 = vcombine.high %v3539, 0.0
        %v3541 = vpack.c.bf16 %v2980, %v2980
        %v3542 = vpack.c.bf16 %v2981, %v2981
        %v3543 = vpack.c.bf16 %v3005, %v3005
        %v3544 = vpack.c.bf16 %v3006, %v3006
        %v3545 = vpack.c.bf16 %v3030, %v3030
        %v3546 = vpack.c.bf16 %v3031, %v3031
        %v3547 = vpack.c.bf16 %v3055, %v3055
        %v3548 = vpack.c.bf16 %v3056, %v3056
        %v3549 = vpack.c.bf16 %v3220, %v3220
        %v3550 = vpack.c.bf16 %v3221, %v3221
        %v3551 = vpack.c.bf16 %v3245, %v3245
        %v3552 = vpack.c.bf16 %v3246, %v3246
        %v3553 = vpack.c.bf16 %v3270, %v3270
        %v3554 = vpack.c.bf16 %v3271, %v3271
        %v3555 = vpack.c.bf16 %v3295, %v3295
        %v3556 = vpack.c.bf16 %v3296, %v3296
        %v3558 = vsel %vm1283, %v3541, 0
        %v3561 = vsel %vm1283, %v3549, 0
        %3563 = vmatprep.subr.bf16.mxu0 0
        %3564 = vmatpush1.bf16.xpose.msra.mxu0 %v3561
        %3565 = vmatprep.subr.bf16.mxu0 0
        %3566 = vmatpush1.bf16.xpose.msra.mxu0 0
        %3567 = vmatprep.subr.bf16.mxu0 0
        %3568 = vmatpush1.bf16.xpose.msra.mxu0 0
        %3569 = vmatprep.subr.bf16.mxu0 0
        %3570 = vmatpush1.bf16.xpose.msra.mxu0 0
        %3571 = vmatprep.subr.bf16.mxu0 0
        %3572 = vmatpush1.bf16.xpose.msra.mxu0 0
        %3573 = vmatprep.subr.bf16.mxu0 0
        %3574 = vmatpush1.bf16.xpose.msra.mxu0 0
        %3575 = vmatprep.subr.bf16.mxu0 0
        %3576 = vmatpush1.bf16.xpose.msra.mxu0 0
        %3577 = vmatprep.subr.bf16.mxu0 0
        %3578 = vmatpush1.bf16.xpose.msra.mxu0 0
        %3579 = vmatprep.subr.bf16.mxu0 0
        %3580 = vmatpush1.bf16.xpose.msra.mxu0 0
        %3581 = vmatprep.subr.bf16.mxu0 0
        %3582 = vmatpush1.bf16.xpose.msra.mxu0 0
        %3583 = vmatprep.subr.bf16.mxu0 0
        %3584 = vmatpush1.bf16.xpose.msra.mxu0 0
        %3585 = vmatprep.subr.bf16.mxu0 0
        %3586 = vmatpush1.bf16.xpose.msra.mxu0 0
        %3587 = vmatprep.subr.bf16.mxu0 0
        %3588 = vmatpush1.bf16.xpose.msra.mxu0 0
        %3589 = vmatprep.subr.bf16.mxu0 0
        %3590 = vmatpush1.bf16.xpose.msra.mxu0 0
        %3591 = vmatprep.subr.bf16.mxu0 0
        %3592 = vmatpush1.bf16.xpose.msra.mxu0 0
        %3593 = vmatprep.subr.bf16.mxu0 0
        %3594 = vmatpush1.bf16.xpose.msra.mxu0 0
        %3595 = vmatprep.mubr.bf16.mxu0 0
        %3596 = vmatmul.mubr.bf16.gmra.mrb[0].mxu0 %v3558
        %v3597 = vpop.f32.mrb[0].mxu0
        %v3598 = vadd.f32 0.0, %v3597
        %v3599 = vpop.f32.mrb[0].mxu0
        %v3600 = vpop.f32.mrb[0].mxu0
        %v3601 = vpop.f32.mrb[0].mxu0
        %3602 = vdwg.mxu0
        %v3604 = vsel %vm1283, %v3542, 0
        %v3607 = vsel %vm1283, %v3550, 0
        %3609 = vmatprep.subr.bf16.mxu0 0
        %3610 = vmatpush1.bf16.xpose.msra.mxu0 %v3607
        %3611 = vmatprep.subr.bf16.mxu0 0
        %3612 = vmatpush1.bf16.xpose.msra.mxu0 0
        %3613 = vmatprep.subr.bf16.mxu0 0
        %3614 = vmatpush1.bf16.xpose.msra.mxu0 0
        %3615 = vmatprep.subr.bf16.mxu0 0
        %3616 = vmatpush1.bf16.xpose.msra.mxu0 0
        %3617 = vmatprep.subr.bf16.mxu0 0
        %3618 = vmatpush1.bf16.xpose.msra.mxu0 0
        %3619 = vmatprep.subr.bf16.mxu0 0
        %3620 = vmatpush1.bf16.xpose.msra.mxu0 0
        %3621 = vmatprep.subr.bf16.mxu0 0
        %3622 = vmatpush1.bf16.xpose.msra.mxu0 0
        %3623 = vmatprep.subr.bf16.mxu0 0
        %3624 = vmatpush1.bf16.xpose.msra.mxu0 0
        %3625 = vmatprep.subr.bf16.mxu0 0
        %3626 = vmatpush1.bf16.xpose.msra.mxu0 0
        %3627 = vmatprep.subr.bf16.mxu0 0
        %3628 = vmatpush1.bf16.xpose.msra.mxu0 0
        %3629 = vmatprep.subr.bf16.mxu0 0
        %3630 = vmatpush1.bf16.xpose.msra.mxu0 0
        %3631 = vmatprep.subr.bf16.mxu0 0
        %3632 = vmatpush1.bf16.xpose.msra.mxu0 0
        %3633 = vmatprep.subr.bf16.mxu0 0
        %3634 = vmatpush1.bf16.xpose.msra.mxu0 0
        %3635 = vmatprep.subr.bf16.mxu0 0
        %3636 = vmatpush1.bf16.xpose.msra.mxu0 0
        %3637 = vmatprep.subr.bf16.mxu0 0
        %3638 = vmatpush1.bf16.xpose.msra.mxu0 0
        %3639 = vmatprep.subr.bf16.mxu0 0
        %3640 = vmatpush1.bf16.xpose.msra.mxu0 0
        %3641 = vmatprep.mubr.bf16.mxu0 0
        %3642 = vmatmul.mubr.bf16.gmra.mrb[0].mxu0 %v3604
        %v3643 = vpop.f32.mrb[0].mxu0
        %v3644 = vadd.f32 0.0, %v3643
        %v3645 = vpop.f32.mrb[0].mxu0
        %v3646 = vpop.f32.mrb[0].mxu0
        %v3647 = vpop.f32.mrb[0].mxu0
        %3648 = vdwg.mxu0
        %v3650 = vsel %vm1283, %v3543, 0
        %v3653 = vsel %vm1283, %v3551, 0
        %3655 = vmatprep.subr.bf16.mxu0 0
        %3656 = vmatpush1.bf16.xpose.msra.mxu0 %v3653
        %3657 = vmatprep.subr.bf16.mxu0 0
        %3658 = vmatpush1.bf16.xpose.msra.mxu0 0
        %3659 = vmatprep.subr.bf16.mxu0 0
        %3660 = vmatpush1.bf16.xpose.msra.mxu0 0
        %3661 = vmatprep.subr.bf16.mxu0 0
        %3662 = vmatpush1.bf16.xpose.msra.mxu0 0
        %3663 = vmatprep.subr.bf16.mxu0 0
        %3664 = vmatpush1.bf16.xpose.msra.mxu0 0
        %3665 = vmatprep.subr.bf16.mxu0 0
        %3666 = vmatpush1.bf16.xpose.msra.mxu0 0
        %3667 = vmatprep.subr.bf16.mxu0 0
        %3668 = vmatpush1.bf16.xpose.msra.mxu0 0
        %3669 = vmatprep.subr.bf16.mxu0 0
        %3670 = vmatpush1.bf16.xpose.msra.mxu0 0
        %3671 = vmatprep.subr.bf16.mxu0 0
        %3672 = vmatpush1.bf16.xpose.msra.mxu0 0
        %3673 = vmatprep.subr.bf16.mxu0 0
        %3674 = vmatpush1.bf16.xpose.msra.mxu0 0
        %3675 = vmatprep.subr.bf16.mxu0 0
        %3676 = vmatpush1.bf16.xpose.msra.mxu0 0
        %3677 = vmatprep.subr.bf16.mxu0 0
        %3678 = vmatpush1.bf16.xpose.msra.mxu0 0
        %3679 = vmatprep.subr.bf16.mxu0 0
        %3680 = vmatpush1.bf16.xpose.msra.mxu0 0
        %3681 = vmatprep.subr.bf16.mxu0 0
        %3682 = vmatpush1.bf16.xpose.msra.mxu0 0
        %3683 = vmatprep.subr.bf16.mxu0 0
        %3684 = vmatpush1.bf16.xpose.msra.mxu0 0
        %3685 = vmatprep.subr.bf16.mxu0 0
        %3686 = vmatpush1.bf16.xpose.msra.mxu0 0
        %3687 = vmatprep.mubr.bf16.mxu0 0
        %3688 = vmatmul.mubr.bf16.gmra.mrb[0].mxu0 %v3650
        %v3689 = vpop.f32.mrb[0].mxu0
        %v3690 = vadd.f32 0.0, %v3689
        %v3691 = vpop.f32.mrb[0].mxu0
        %v3692 = vpop.f32.mrb[0].mxu0
        %v3693 = vpop.f32.mrb[0].mxu0
        %3694 = vdwg.mxu0
        %v3696 = vsel %vm1283, %v3544, 0
        %v3699 = vsel %vm1283, %v3552, 0
        %3701 = vmatprep.subr.bf16.mxu0 0
        %3702 = vmatpush1.bf16.xpose.msra.mxu0 %v3699
        %3703 = vmatprep.subr.bf16.mxu0 0
        %3704 = vmatpush1.bf16.xpose.msra.mxu0 0
        %3705 = vmatprep.subr.bf16.mxu0 0
        %3706 = vmatpush1.bf16.xpose.msra.mxu0 0
        %3707 = vmatprep.subr.bf16.mxu0 0
        %3708 = vmatpush1.bf16.xpose.msra.mxu0 0
        %3709 = vmatprep.subr.bf16.mxu0 0
        %3710 = vmatpush1.bf16.xpose.msra.mxu0 0
        %3711 = vmatprep.subr.bf16.mxu0 0
        %3712 = vmatpush1.bf16.xpose.msra.mxu0 0
        %3713 = vmatprep.subr.bf16.mxu0 0
        %3714 = vmatpush1.bf16.xpose.msra.mxu0 0
        %3715 = vmatprep.subr.bf16.mxu0 0
        %3716 = vmatpush1.bf16.xpose.msra.mxu0 0
        %3717 = vmatprep.subr.bf16.mxu0 0
        %3718 = vmatpush1.bf16.xpose.msra.mxu0 0
        %3719 = vmatprep.subr.bf16.mxu0 0
        %3720 = vmatpush1.bf16.xpose.msra.mxu0 0
        %3721 = vmatprep.subr.bf16.mxu0 0
        %3722 = vmatpush1.bf16.xpose.msra.mxu0 0
        %3723 = vmatprep.subr.bf16.mxu0 0
        %3724 = vmatpush1.bf16.xpose.msra.mxu0 0
        %3725 = vmatprep.subr.bf16.mxu0 0
        %3726 = vmatpush1.bf16.xpose.msra.mxu0 0
        %3727 = vmatprep.subr.bf16.mxu0 0
        %3728 = vmatpush1.bf16.xpose.msra.mxu0 0
        %3729 = vmatprep.subr.bf16.mxu0 0
        %3730 = vmatpush1.bf16.xpose.msra.mxu0 0
        %3731 = vmatprep.subr.bf16.mxu0 0
        %3732 = vmatpush1.bf16.xpose.msra.mxu0 0
        %3733 = vmatprep.mubr.bf16.mxu0 0
        %3734 = vmatmul.mubr.bf16.gmra.mrb[0].mxu0 %v3696
        %v3735 = vpop.f32.mrb[0].mxu0
        %v3736 = vadd.f32 0.0, %v3735
        %v3737 = vpop.f32.mrb[0].mxu0
        %v3738 = vpop.f32.mrb[0].mxu0
        %v3739 = vpop.f32.mrb[0].mxu0
        %3740 = vdwg.mxu0
        %v3742 = vsel %vm1283, %v3545, 0
        %v3745 = vsel %vm1283, %v3553, 0
        %3747 = vmatprep.subr.bf16.mxu0 0
        %3748 = vmatpush1.bf16.xpose.msra.mxu0 %v3745
        %3749 = vmatprep.subr.bf16.mxu0 0
        %3750 = vmatpush1.bf16.xpose.msra.mxu0 0
        %3751 = vmatprep.subr.bf16.mxu0 0
        %3752 = vmatpush1.bf16.xpose.msra.mxu0 0
        %3753 = vmatprep.subr.bf16.mxu0 0
        %3754 = vmatpush1.bf16.xpose.msra.mxu0 0
        %3755 = vmatprep.subr.bf16.mxu0 0
        %3756 = vmatpush1.bf16.xpose.msra.mxu0 0
        %3757 = vmatprep.subr.bf16.mxu0 0
        %3758 = vmatpush1.bf16.xpose.msra.mxu0 0
        %3759 = vmatprep.subr.bf16.mxu0 0
        %3760 = vmatpush1.bf16.xpose.msra.mxu0 0
        %3761 = vmatprep.subr.bf16.mxu0 0
        %3762 = vmatpush1.bf16.xpose.msra.mxu0 0
        %3763 = vmatprep.subr.bf16.mxu0 0
        %3764 = vmatpush1.bf16.xpose.msra.mxu0 0
        %3765 = vmatprep.subr.bf16.mxu0 0
        %3766 = vmatpush1.bf16.xpose.msra.mxu0 0
        %3767 = vmatprep.subr.bf16.mxu0 0
        %3768 = vmatpush1.bf16.xpose.msra.mxu0 0
        %3769 = vmatprep.subr.bf16.mxu0 0
        %3770 = vmatpush1.bf16.xpose.msra.mxu0 0
        %3771 = vmatprep.subr.bf16.mxu0 0
        %3772 = vmatpush1.bf16.xpose.msra.mxu0 0
        %3773 = vmatprep.subr.bf16.mxu0 0
        %3774 = vmatpush1.bf16.xpose.msra.mxu0 0
        %3775 = vmatprep.subr.bf16.mxu0 0
        %3776 = vmatpush1.bf16.xpose.msra.mxu0 0
        %3777 = vmatprep.subr.bf16.mxu0 0
        %3778 = vmatpush1.bf16.xpose.msra.mxu0 0
        %3779 = vmatprep.mubr.bf16.mxu0 0
        %3780 = vmatmul.mubr.bf16.gmra.mrb[0].mxu0 %v3742
        %v3781 = vpop.f32.mrb[0].mxu0
        %v3782 = vadd.f32 0.0, %v3781
        %v3783 = vpop.f32.mrb[0].mxu0
        %v3784 = vpop.f32.mrb[0].mxu0
        %v3785 = vpop.f32.mrb[0].mxu0
        %3786 = vdwg.mxu0
        %v3788 = vsel %vm1283, %v3546, 0
        %v3791 = vsel %vm1283, %v3554, 0
        %3793 = vmatprep.subr.bf16.mxu0 0
        %3794 = vmatpush1.bf16.xpose.msra.mxu0 %v3791
        %3795 = vmatprep.subr.bf16.mxu0 0
        %3796 = vmatpush1.bf16.xpose.msra.mxu0 0
        %3797 = vmatprep.subr.bf16.mxu0 0
        %3798 = vmatpush1.bf16.xpose.msra.mxu0 0
        %3799 = vmatprep.subr.bf16.mxu0 0
        %3800 = vmatpush1.bf16.xpose.msra.mxu0 0
        %3801 = vmatprep.subr.bf16.mxu0 0
        %3802 = vmatpush1.bf16.xpose.msra.mxu0 0
        %3803 = vmatprep.subr.bf16.mxu0 0
        %3804 = vmatpush1.bf16.xpose.msra.mxu0 0
        %3805 = vmatprep.subr.bf16.mxu0 0
        %3806 = vmatpush1.bf16.xpose.msra.mxu0 0
        %3807 = vmatprep.subr.bf16.mxu0 0
        %3808 = vmatpush1.bf16.xpose.msra.mxu0 0
        %3809 = vmatprep.subr.bf16.mxu0 0
        %3810 = vmatpush1.bf16.xpose.msra.mxu0 0
        %3811 = vmatprep.subr.bf16.mxu0 0
        %3812 = vmatpush1.bf16.xpose.msra.mxu0 0
        %3813 = vmatprep.subr.bf16.mxu0 0
        %3814 = vmatpush1.bf16.xpose.msra.mxu0 0
        %3815 = vmatprep.subr.bf16.mxu0 0
        %3816 = vmatpush1.bf16.xpose.msra.mxu0 0
        %3817 = vmatprep.subr.bf16.mxu0 0
        %3818 = vmatpush1.bf16.xpose.msra.mxu0 0
        %3819 = vmatprep.subr.bf16.mxu0 0
        %3820 = vmatpush1.bf16.xpose.msra.mxu0 0
        %3821 = vmatprep.subr.bf16.mxu0 0
        %3822 = vmatpush1.bf16.xpose.msra.mxu0 0
        %3823 = vmatprep.subr.bf16.mxu0 0
        %3824 = vmatpush1.bf16.xpose.msra.mxu0 0
        %3825 = vmatprep.mubr.bf16.mxu0 0
        %3826 = vmatmul.mubr.bf16.gmra.mrb[0].mxu0 %v3788
        %v3827 = vpop.f32.mrb[0].mxu0
        %v3828 = vadd.f32 0.0, %v3827
        %v3829 = vpop.f32.mrb[0].mxu0
        %v3830 = vpop.f32.mrb[0].mxu0
        %v3831 = vpop.f32.mrb[0].mxu0
        %3832 = vdwg.mxu0
        %v3834 = vsel %vm1283, %v3547, 0
        %v3837 = vsel %vm1283, %v3555, 0
        %3839 = vmatprep.subr.bf16.mxu0 0
        %3840 = vmatpush1.bf16.xpose.msra.mxu0 %v3837
        %3841 = vmatprep.subr.bf16.mxu0 0
        %3842 = vmatpush1.bf16.xpose.msra.mxu0 0
        %3843 = vmatprep.subr.bf16.mxu0 0
        %3844 = vmatpush1.bf16.xpose.msra.mxu0 0
        %3845 = vmatprep.subr.bf16.mxu0 0
        %3846 = vmatpush1.bf16.xpose.msra.mxu0 0
        %3847 = vmatprep.subr.bf16.mxu0 0
        %3848 = vmatpush1.bf16.xpose.msra.mxu0 0
        %3849 = vmatprep.subr.bf16.mxu0 0
        %3850 = vmatpush1.bf16.xpose.msra.mxu0 0
        %3851 = vmatprep.subr.bf16.mxu0 0
        %3852 = vmatpush1.bf16.xpose.msra.mxu0 0
        %3853 = vmatprep.subr.bf16.mxu0 0
        %3854 = vmatpush1.bf16.xpose.msra.mxu0 0
        %3855 = vmatprep.subr.bf16.mxu0 0
        %3856 = vmatpush1.bf16.xpose.msra.mxu0 0
        %3857 = vmatprep.subr.bf16.mxu0 0
        %3858 = vmatpush1.bf16.xpose.msra.mxu0 0
        %3859 = vmatprep.subr.bf16.mxu0 0
        %3860 = vmatpush1.bf16.xpose.msra.mxu0 0
        %3861 = vmatprep.subr.bf16.mxu0 0
        %3862 = vmatpush1.bf16.xpose.msra.mxu0 0
        %3863 = vmatprep.subr.bf16.mxu0 0
        %3864 = vmatpush1.bf16.xpose.msra.mxu0 0
        %3865 = vmatprep.subr.bf16.mxu0 0
        %3866 = vmatpush1.bf16.xpose.msra.mxu0 0
        %3867 = vmatprep.subr.bf16.mxu0 0
        %3868 = vmatpush1.bf16.xpose.msra.mxu0 0
        %3869 = vmatprep.subr.bf16.mxu0 0
        %3870 = vmatpush1.bf16.xpose.msra.mxu0 0
        %3871 = vmatprep.mubr.bf16.mxu0 0
        %3872 = vmatmul.mubr.bf16.gmra.mrb[0].mxu0 %v3834
        %v3873 = vpop.f32.mrb[0].mxu0
        %v3874 = vadd.f32 0.0, %v3873
        %v3875 = vpop.f32.mrb[0].mxu0
        %v3876 = vpop.f32.mrb[0].mxu0
        %v3877 = vpop.f32.mrb[0].mxu0
        %3878 = vdwg.mxu0
        %v3880 = vsel %vm1283, %v3548, 0
        %v3883 = vsel %vm1283, %v3556, 0
        %3885 = vmatprep.subr.bf16.mxu0 0
        %3886 = vmatpush1.bf16.xpose.msra.mxu0 %v3883
        %3887 = vmatprep.subr.bf16.mxu0 0
        %3888 = vmatpush1.bf16.xpose.msra.mxu0 0
        %3889 = vmatprep.subr.bf16.mxu0 0
        %3890 = vmatpush1.bf16.xpose.msra.mxu0 0
        %3891 = vmatprep.subr.bf16.mxu0 0
        %3892 = vmatpush1.bf16.xpose.msra.mxu0 0
        %3893 = vmatprep.subr.bf16.mxu0 0
        %3894 = vmatpush1.bf16.xpose.msra.mxu0 0
        %3895 = vmatprep.subr.bf16.mxu0 0
        %3896 = vmatpush1.bf16.xpose.msra.mxu0 0
        %3897 = vmatprep.subr.bf16.mxu0 0
        %3898 = vmatpush1.bf16.xpose.msra.mxu0 0
        %3899 = vmatprep.subr.bf16.mxu0 0
        %3900 = vmatpush1.bf16.xpose.msra.mxu0 0
        %3901 = vmatprep.subr.bf16.mxu0 0
        %3902 = vmatpush1.bf16.xpose.msra.mxu0 0
        %3903 = vmatprep.subr.bf16.mxu0 0
        %3904 = vmatpush1.bf16.xpose.msra.mxu0 0
        %3905 = vmatprep.subr.bf16.mxu0 0
        %3906 = vmatpush1.bf16.xpose.msra.mxu0 0
        %3907 = vmatprep.subr.bf16.mxu0 0
        %3908 = vmatpush1.bf16.xpose.msra.mxu0 0
        %3909 = vmatprep.subr.bf16.mxu0 0
        %3910 = vmatpush1.bf16.xpose.msra.mxu0 0
        %3911 = vmatprep.subr.bf16.mxu0 0
        %3912 = vmatpush1.bf16.xpose.msra.mxu0 0
        %3913 = vmatprep.subr.bf16.mxu0 0
        %3914 = vmatpush1.bf16.xpose.msra.mxu0 0
        %3915 = vmatprep.subr.bf16.mxu0 0
        %3916 = vmatpush1.bf16.xpose.msra.mxu0 0
        %3917 = vmatprep.mubr.bf16.mxu0 0
        %3918 = vmatmul.mubr.bf16.gmra.mrb[0].mxu0 %v3880
        %v3919 = vpop.f32.mrb[0].mxu0
        %v3920 = vadd.f32 0.0, %v3919
        %v3921 = vpop.f32.mrb[0].mxu0
        %v3922 = vpop.f32.mrb[0].mxu0
        %v3923 = vpop.f32.mrb[0].mxu0
        %3924 = vdwg.mxu0
        %v3925 = vmul.f32 %v3598, 0.25
        %v3926 = vmul.f32 %v3644, 0.25
        %v3927 = vmul.f32 %v3690, 0.25
        %v3928 = vmul.f32 %v3736, 0.25
        %v3929 = vmul.f32 %v3782, 0.25
        %v3930 = vmul.f32 %v3828, 0.25
        %v3931 = vmul.f32 %v3874, 0.25
        %v3932 = vmul.f32 %v3920, 0.25
        %v3933 = vsel %vm1660, %v3925, -inf
        %3934 = vmax.xlane.f32.xlu0 %v3933
        %v3935 = vpop.xlane.xlu0 %3934
        %v3936 = vsel %vm1660, %v3926, -inf
        %3937 = vmax.xlane.f32.xlu0 %v3936
        %v3938 = vpop.xlane.xlu0 %3937
        %v3939 = vsel %vm1660, %v3927, -inf
        %3940 = vmax.xlane.f32.xlu0 %v3939
        %v3941 = vpop.xlane.xlu0 %3940
        %v3942 = vsel %vm1660, %v3928, -inf
        %3943 = vmax.xlane.f32.xlu0 %v3942
        %v3944 = vpop.xlane.xlu0 %3943
        %v3945 = vsel %vm1660, %v3929, -inf
        %3946 = vmax.xlane.f32.xlu0 %v3945
        %v3947 = vpop.xlane.xlu0 %3946
        %v3948 = vsel %vm1660, %v3930, -inf
        %3949 = vmax.xlane.f32.xlu0 %v3948
        %v3950 = vpop.xlane.xlu0 %3949
        %v3951 = vsel %vm1660, %v3931, -inf
        %3952 = vmax.xlane.f32.xlu0 %v3951
        %v3953 = vpop.xlane.xlu0 %3952
        %v3954 = vsel %vm1660, %v3932, -inf
        %3955 = vmax.xlane.f32.xlu0 %v3954
        %v3956 = vpop.xlane.xlu0 %3955
        %v3957 = vsub.f32 %v3925, %v3935
        %v3958 = vsub.f32 %v3926, %v3938
        %v3959 = vsub.f32 %v3927, %v3941
        %v3960 = vsub.f32 %v3928, %v3944
        %v3961 = vsub.f32 %v3929, %v3947
        %v3962 = vsub.f32 %v3930, %v3950
        %v3963 = vsub.f32 %v3931, %v3953
        %v3964 = vsub.f32 %v3932, %v3956
        %v3965 = vmul.f32 %v3957, 1.442695
        %v3966 = vpow.pop %v3965
        %v3967 = vmul.f32 %v3958, 1.442695
        %v3968 = vpow.pop %v3967
        %v3969 = vmul.f32 %v3959, 1.442695
        %v3970 = vpow.pop %v3969
        %v3971 = vmul.f32 %v3960, 1.442695
        %v3972 = vpow.pop %v3971
        %v3973 = vmul.f32 %v3961, 1.442695
        %v3974 = vpow.pop %v3973
        %v3975 = vmul.f32 %v3962, 1.442695
        %v3976 = vpow.pop %v3975
        %v3977 = vmul.f32 %v3963, 1.442695
        %v3978 = vpow.pop %v3977
        %v3979 = vmul.f32 %v3964, 1.442695
        %v3980 = vpow.pop %v3979
        %v3981 = vsel %vm1660, %v3966, 0.0
        %3982 = vadd.xlane.f32.xlu0 %v3981
        %v3983 = vpop.xlane.xlu0 %3982
        %v3984 = vsel %vm1660, %v3968, 0.0
        %3985 = vadd.xlane.f32.xlu0 %v3984
        %v3986 = vpop.xlane.xlu0 %3985
        %v3987 = vsel %vm1660, %v3970, 0.0
        %3988 = vadd.xlane.f32.xlu0 %v3987
        %v3989 = vpop.xlane.xlu0 %3988
        %v3990 = vsel %vm1660, %v3972, 0.0
        %3991 = vadd.xlane.f32.xlu0 %v3990
        %v3992 = vpop.xlane.xlu0 %3991
        %v3993 = vsel %vm1660, %v3974, 0.0
        %3994 = vadd.xlane.f32.xlu0 %v3993
        %v3995 = vpop.xlane.xlu0 %3994
        %v3996 = vsel %vm1660, %v3976, 0.0
        %3997 = vadd.xlane.f32.xlu0 %v3996
        %v3998 = vpop.xlane.xlu0 %3997
        %v3999 = vsel %vm1660, %v3978, 0.0
        %4000 = vadd.xlane.f32.xlu0 %v3999
        %v4001 = vpop.xlane.xlu0 %4000
        %v4002 = vsel %vm1660, %v3980, 0.0
        %4003 = vadd.xlane.f32.xlu0 %v4002
        %v4004 = vpop.xlane.xlu0 %4003
        %v4005 = vrcp.pop %v3983
        %v4006 = vrcp.pop %v3986
        %v4007 = vrcp.pop %v3989
        %v4008 = vrcp.pop %v3992
        %v4009 = vrcp.pop %v3995
        %v4010 = vrcp.pop %v3998
        %v4011 = vrcp.pop %v4001
        %v4012 = vrcp.pop %v4004
        %v4013 = vmul.f32 %v3966, %v4005
        %v4014 = vmul.f32 %v3968, %v4006
        %v4015 = vmul.f32 %v3970, %v4007
        %v4016 = vmul.f32 %v3972, %v4008
        %v4017 = vmul.f32 %v3974, %v4009
        %v4018 = vmul.f32 %v3976, %v4010
        %v4019 = vmul.f32 %v3978, %v4011
        %v4020 = vmul.f32 %v3980, %v4012
        %v4021 = vpack.c.bf16 %v4013, %v4013
        %v4022 = vpack.c.bf16 %v4014, %v4014
        %v4023 = vpack.c.bf16 %v4015, %v4015
        %v4024 = vpack.c.bf16 %v4016, %v4016
        %v4025 = vpack.c.bf16 %v4017, %v4017
        %v4026 = vpack.c.bf16 %v4018, %v4018
        %v4027 = vpack.c.bf16 %v4019, %v4019
        %v4028 = vpack.c.bf16 %v4020, %v4020
        %v4029 = vpack.c.bf16 %v3464, %v3464
        %v4030 = vpack.c.bf16 %v3465, %v3465
        %v4031 = vpack.c.bf16 %v3489, %v3489
        %v4032 = vpack.c.bf16 %v3490, %v3490
        %v4033 = vpack.c.bf16 %v3514, %v3514
        %v4034 = vpack.c.bf16 %v3515, %v3515
        %v4035 = vpack.c.bf16 %v3539, %v3539
        %v4036 = vpack.c.bf16 %v3540, %v3540
        %v4038 = vsel %vm1765, %v4021, 0
        %v4041 = vsel %vm1769, %v4029, 0
        %4043 = vmatprep.subr.bf16.mxu0 0
        %4044 = vmatpush1.bf16.msra.mxu0 %v4041
        %4045 = vmatprep.subr.bf16.mxu0 0
        %4046 = vmatpush1.bf16.msra.mxu0 0
        %4047 = vmatprep.subr.bf16.mxu0 0
        %4048 = vmatpush1.bf16.msra.mxu0 0
        %4049 = vmatprep.subr.bf16.mxu0 0
        %4050 = vmatpush1.bf16.msra.mxu0 0
        %4051 = vmatprep.subr.bf16.mxu0 0
        %4052 = vmatpush1.bf16.msra.mxu0 0
        %4053 = vmatprep.subr.bf16.mxu0 0
        %4054 = vmatpush1.bf16.msra.mxu0 0
        %4055 = vmatprep.subr.bf16.mxu0 0
        %4056 = vmatpush1.bf16.msra.mxu0 0
        %4057 = vmatprep.subr.bf16.mxu0 0
        %4058 = vmatpush1.bf16.msra.mxu0 0
        %4059 = vmatprep.subr.bf16.mxu0 0
        %4060 = vmatpush1.bf16.msra.mxu0 0
        %4061 = vmatprep.subr.bf16.mxu0 0
        %4062 = vmatpush1.bf16.msra.mxu0 0
        %4063 = vmatprep.subr.bf16.mxu0 0
        %4064 = vmatpush1.bf16.msra.mxu0 0
        %4065 = vmatprep.subr.bf16.mxu0 0
        %4066 = vmatpush1.bf16.msra.mxu0 0
        %4067 = vmatprep.subr.bf16.mxu0 0
        %4068 = vmatpush1.bf16.msra.mxu0 0
        %4069 = vmatprep.subr.bf16.mxu0 0
        %4070 = vmatpush1.bf16.msra.mxu0 0
        %4071 = vmatprep.subr.bf16.mxu0 0
        %4072 = vmatpush1.bf16.msra.mxu0 0
        %4073 = vmatprep.subr.bf16.mxu0 0
        %4074 = vmatpush1.bf16.msra.mxu0 0
        %4075 = vmatprep.mubr.bf16.mxu0 0
        %4076 = vmatmul.mubr.bf16.gmra.mrb[0].mxu0 %v4038
        %v4077 = vpop.f32.mrb[0].mxu0
        %v4078 = vadd.f32 0.0, %v4077
        %v4079 = vpop.f32.mrb[0].mxu0
        %v4080 = vpop.f32.mrb[0].mxu0
        %v4081 = vpop.f32.mrb[0].mxu0
        %4082 = vdwg.mxu0
        %v4084 = vsel %vm1765, %v4022, 0
        %v4087 = vsel %vm1769, %v4030, 0
        %4089 = vmatprep.subr.bf16.mxu0 0
        %4090 = vmatpush1.bf16.msra.mxu0 %v4087
        %4091 = vmatprep.subr.bf16.mxu0 0
        %4092 = vmatpush1.bf16.msra.mxu0 0
        %4093 = vmatprep.subr.bf16.mxu0 0
        %4094 = vmatpush1.bf16.msra.mxu0 0
        %4095 = vmatprep.subr.bf16.mxu0 0
        %4096 = vmatpush1.bf16.msra.mxu0 0
        %4097 = vmatprep.subr.bf16.mxu0 0
        %4098 = vmatpush1.bf16.msra.mxu0 0
        %4099 = vmatprep.subr.bf16.mxu0 0
        %4100 = vmatpush1.bf16.msra.mxu0 0
        %4101 = vmatprep.subr.bf16.mxu0 0
        %4102 = vmatpush1.bf16.msra.mxu0 0
        %4103 = vmatprep.subr.bf16.mxu0 0
        %4104 = vmatpush1.bf16.msra.mxu0 0
        %4105 = vmatprep.subr.bf16.mxu0 0
        %4106 = vmatpush1.bf16.msra.mxu0 0
        %4107 = vmatprep.subr.bf16.mxu0 0
        %4108 = vmatpush1.bf16.msra.mxu0 0
        %4109 = vmatprep.subr.bf16.mxu0 0
        %4110 = vmatpush1.bf16.msra.mxu0 0
        %4111 = vmatprep.subr.bf16.mxu0 0
        %4112 = vmatpush1.bf16.msra.mxu0 0
        %4113 = vmatprep.subr.bf16.mxu0 0
        %4114 = vmatpush1.bf16.msra.mxu0 0
        %4115 = vmatprep.subr.bf16.mxu0 0
        %4116 = vmatpush1.bf16.msra.mxu0 0
        %4117 = vmatprep.subr.bf16.mxu0 0
        %4118 = vmatpush1.bf16.msra.mxu0 0
        %4119 = vmatprep.subr.bf16.mxu0 0
        %4120 = vmatpush1.bf16.msra.mxu0 0
        %4121 = vmatprep.mubr.bf16.mxu0 0
        %4122 = vmatmul.mubr.bf16.gmra.mrb[0].mxu0 %v4084
        %v4123 = vpop.f32.mrb[0].mxu0
        %v4124 = vadd.f32 0.0, %v4123
        %v4125 = vpop.f32.mrb[0].mxu0
        %v4126 = vpop.f32.mrb[0].mxu0
        %v4127 = vpop.f32.mrb[0].mxu0
        %4128 = vdwg.mxu0
        %v4130 = vsel %vm1765, %v4023, 0
        %v4133 = vsel %vm1769, %v4031, 0
        %4135 = vmatprep.subr.bf16.mxu0 0
        %4136 = vmatpush1.bf16.msra.mxu0 %v4133
        %4137 = vmatprep.subr.bf16.mxu0 0
        %4138 = vmatpush1.bf16.msra.mxu0 0
        %4139 = vmatprep.subr.bf16.mxu0 0
        %4140 = vmatpush1.bf16.msra.mxu0 0
        %4141 = vmatprep.subr.bf16.mxu0 0
        %4142 = vmatpush1.bf16.msra.mxu0 0
        %4143 = vmatprep.subr.bf16.mxu0 0
        %4144 = vmatpush1.bf16.msra.mxu0 0
        %4145 = vmatprep.subr.bf16.mxu0 0
        %4146 = vmatpush1.bf16.msra.mxu0 0
        %4147 = vmatprep.subr.bf16.mxu0 0
        %4148 = vmatpush1.bf16.msra.mxu0 0
        %4149 = vmatprep.subr.bf16.mxu0 0
        %4150 = vmatpush1.bf16.msra.mxu0 0
        %4151 = vmatprep.subr.bf16.mxu0 0
        %4152 = vmatpush1.bf16.msra.mxu0 0
        %4153 = vmatprep.subr.bf16.mxu0 0
        %4154 = vmatpush1.bf16.msra.mxu0 0
        %4155 = vmatprep.subr.bf16.mxu0 0
        %4156 = vmatpush1.bf16.msra.mxu0 0
        %4157 = vmatprep.subr.bf16.mxu0 0
        %4158 = vmatpush1.bf16.msra.mxu0 0
        %4159 = vmatprep.subr.bf16.mxu0 0
        %4160 = vmatpush1.bf16.msra.mxu0 0
        %4161 = vmatprep.subr.bf16.mxu0 0
        %4162 = vmatpush1.bf16.msra.mxu0 0
        %4163 = vmatprep.subr.bf16.mxu0 0
        %4164 = vmatpush1.bf16.msra.mxu0 0
        %4165 = vmatprep.subr.bf16.mxu0 0
        %4166 = vmatpush1.bf16.msra.mxu0 0
        %4167 = vmatprep.mubr.bf16.mxu0 0
        %4168 = vmatmul.mubr.bf16.gmra.mrb[0].mxu0 %v4130
        %v4169 = vpop.f32.mrb[0].mxu0
        %v4170 = vadd.f32 0.0, %v4169
        %v4171 = vpop.f32.mrb[0].mxu0
        %v4172 = vpop.f32.mrb[0].mxu0
        %v4173 = vpop.f32.mrb[0].mxu0
        %4174 = vdwg.mxu0
        %v4176 = vsel %vm1765, %v4024, 0
        %v4179 = vsel %vm1769, %v4032, 0
        %4181 = vmatprep.subr.bf16.mxu0 0
        %4182 = vmatpush1.bf16.msra.mxu0 %v4179
        %4183 = vmatprep.subr.bf16.mxu0 0
        %4184 = vmatpush1.bf16.msra.mxu0 0
        %4185 = vmatprep.subr.bf16.mxu0 0
        %4186 = vmatpush1.bf16.msra.mxu0 0
        %4187 = vmatprep.subr.bf16.mxu0 0
        %4188 = vmatpush1.bf16.msra.mxu0 0
        %4189 = vmatprep.subr.bf16.mxu0 0
        %4190 = vmatpush1.bf16.msra.mxu0 0
        %4191 = vmatprep.subr.bf16.mxu0 0
        %4192 = vmatpush1.bf16.msra.mxu0 0
        %4193 = vmatprep.subr.bf16.mxu0 0
        %4194 = vmatpush1.bf16.msra.mxu0 0
        %4195 = vmatprep.subr.bf16.mxu0 0
        %4196 = vmatpush1.bf16.msra.mxu0 0
        %4197 = vmatprep.subr.bf16.mxu0 0
        %4198 = vmatpush1.bf16.msra.mxu0 0
        %4199 = vmatprep.subr.bf16.mxu0 0
        %4200 = vmatpush1.bf16.msra.mxu0 0
        %4201 = vmatprep.subr.bf16.mxu0 0
        %4202 = vmatpush1.bf16.msra.mxu0 0
        %4203 = vmatprep.subr.bf16.mxu0 0
        %4204 = vmatpush1.bf16.msra.mxu0 0
        %4205 = vmatprep.subr.bf16.mxu0 0
        %4206 = vmatpush1.bf16.msra.mxu0 0
        %4207 = vmatprep.subr.bf16.mxu0 0
        %4208 = vmatpush1.bf16.msra.mxu0 0
        %4209 = vmatprep.subr.bf16.mxu0 0
        %4210 = vmatpush1.bf16.msra.mxu0 0
        %4211 = vmatprep.subr.bf16.mxu0 0
        %4212 = vmatpush1.bf16.msra.mxu0 0
        %4213 = vmatprep.mubr.bf16.mxu0 0
        %4214 = vmatmul.mubr.bf16.gmra.mrb[0].mxu0 %v4176
        %v4215 = vpop.f32.mrb[0].mxu0
        %v4216 = vadd.f32 0.0, %v4215
        %v4217 = vpop.f32.mrb[0].mxu0
        %v4218 = vpop.f32.mrb[0].mxu0
        %v4219 = vpop.f32.mrb[0].mxu0
        %4220 = vdwg.mxu0
        %v4222 = vsel %vm1765, %v4025, 0
        %v4225 = vsel %vm1769, %v4033, 0
        %4227 = vmatprep.subr.bf16.mxu0 0
        %4228 = vmatpush1.bf16.msra.mxu0 %v4225
        %4229 = vmatprep.subr.bf16.mxu0 0
        %4230 = vmatpush1.bf16.msra.mxu0 0
        %4231 = vmatprep.subr.bf16.mxu0 0
        %4232 = vmatpush1.bf16.msra.mxu0 0
        %4233 = vmatprep.subr.bf16.mxu0 0
        %4234 = vmatpush1.bf16.msra.mxu0 0
        %4235 = vmatprep.subr.bf16.mxu0 0
        %4236 = vmatpush1.bf16.msra.mxu0 0
        %4237 = vmatprep.subr.bf16.mxu0 0
        %4238 = vmatpush1.bf16.msra.mxu0 0
        %4239 = vmatprep.subr.bf16.mxu0 0
        %4240 = vmatpush1.bf16.msra.mxu0 0
        %4241 = vmatprep.subr.bf16.mxu0 0
        %4242 = vmatpush1.bf16.msra.mxu0 0
        %4243 = vmatprep.subr.bf16.mxu0 0
        %4244 = vmatpush1.bf16.msra.mxu0 0
        %4245 = vmatprep.subr.bf16.mxu0 0
        %4246 = vmatpush1.bf16.msra.mxu0 0
        %4247 = vmatprep.subr.bf16.mxu0 0
        %4248 = vmatpush1.bf16.msra.mxu0 0
        %4249 = vmatprep.subr.bf16.mxu0 0
        %4250 = vmatpush1.bf16.msra.mxu0 0
        %4251 = vmatprep.subr.bf16.mxu0 0
        %4252 = vmatpush1.bf16.msra.mxu0 0
        %4253 = vmatprep.subr.bf16.mxu0 0
        %4254 = vmatpush1.bf16.msra.mxu0 0
        %4255 = vmatprep.subr.bf16.mxu0 0
        %4256 = vmatpush1.bf16.msra.mxu0 0
        %4257 = vmatprep.subr.bf16.mxu0 0
        %4258 = vmatpush1.bf16.msra.mxu0 0
        %4259 = vmatprep.mubr.bf16.mxu0 0
        %4260 = vmatmul.mubr.bf16.gmra.mrb[0].mxu0 %v4222
        %v4261 = vpop.f32.mrb[0].mxu0
        %v4262 = vadd.f32 0.0, %v4261
        %v4263 = vpop.f32.mrb[0].mxu0
        %v4264 = vpop.f32.mrb[0].mxu0
        %v4265 = vpop.f32.mrb[0].mxu0
        %4266 = vdwg.mxu0
        %v4268 = vsel %vm1765, %v4026, 0
        %v4271 = vsel %vm1769, %v4034, 0
        %4273 = vmatprep.subr.bf16.mxu0 0
        %4274 = vmatpush1.bf16.msra.mxu0 %v4271
        %4275 = vmatprep.subr.bf16.mxu0 0
        %4276 = vmatpush1.bf16.msra.mxu0 0
        %4277 = vmatprep.subr.bf16.mxu0 0
        %4278 = vmatpush1.bf16.msra.mxu0 0
        %4279 = vmatprep.subr.bf16.mxu0 0
        %4280 = vmatpush1.bf16.msra.mxu0 0
        %4281 = vmatprep.subr.bf16.mxu0 0
        %4282 = vmatpush1.bf16.msra.mxu0 0
        %4283 = vmatprep.subr.bf16.mxu0 0
        %4284 = vmatpush1.bf16.msra.mxu0 0
        %4285 = vmatprep.subr.bf16.mxu0 0
        %4286 = vmatpush1.bf16.msra.mxu0 0
        %4287 = vmatprep.subr.bf16.mxu0 0
        %4288 = vmatpush1.bf16.msra.mxu0 0
        %4289 = vmatprep.subr.bf16.mxu0 0
        %4290 = vmatpush1.bf16.msra.mxu0 0
        %4291 = vmatprep.subr.bf16.mxu0 0
        %4292 = vmatpush1.bf16.msra.mxu0 0
        %4293 = vmatprep.subr.bf16.mxu0 0
        %4294 = vmatpush1.bf16.msra.mxu0 0
        %4295 = vmatprep.subr.bf16.mxu0 0
        %4296 = vmatpush1.bf16.msra.mxu0 0
        %4297 = vmatprep.subr.bf16.mxu0 0
        %4298 = vmatpush1.bf16.msra.mxu0 0
        %4299 = vmatprep.subr.bf16.mxu0 0
        %4300 = vmatpush1.bf16.msra.mxu0 0
        %4301 = vmatprep.subr.bf16.mxu0 0
        %4302 = vmatpush1.bf16.msra.mxu0 0
        %4303 = vmatprep.subr.bf16.mxu0 0
        %4304 = vmatpush1.bf16.msra.mxu0 0
        %4305 = vmatprep.mubr.bf16.mxu0 0
        %4306 = vmatmul.mubr.bf16.gmra.mrb[0].mxu0 %v4268
        %v4307 = vpop.f32.mrb[0].mxu0
        %v4308 = vadd.f32 0.0, %v4307
        %v4309 = vpop.f32.mrb[0].mxu0
        %v4310 = vpop.f32.mrb[0].mxu0
        %v4311 = vpop.f32.mrb[0].mxu0
        %4312 = vdwg.mxu0
        %v4314 = vsel %vm1765, %v4027, 0
        %v4317 = vsel %vm1769, %v4035, 0
        %4319 = vmatprep.subr.bf16.mxu0 0
        %4320 = vmatpush1.bf16.msra.mxu0 %v4317
        %4321 = vmatprep.subr.bf16.mxu0 0
        %4322 = vmatpush1.bf16.msra.mxu0 0
        %4323 = vmatprep.subr.bf16.mxu0 0
        %4324 = vmatpush1.bf16.msra.mxu0 0
        %4325 = vmatprep.subr.bf16.mxu0 0
        %4326 = vmatpush1.bf16.msra.mxu0 0
        %4327 = vmatprep.subr.bf16.mxu0 0
        %4328 = vmatpush1.bf16.msra.mxu0 0
        %4329 = vmatprep.subr.bf16.mxu0 0
        %4330 = vmatpush1.bf16.msra.mxu0 0
        %4331 = vmatprep.subr.bf16.mxu0 0
        %4332 = vmatpush1.bf16.msra.mxu0 0
        %4333 = vmatprep.subr.bf16.mxu0 0
        %4334 = vmatpush1.bf16.msra.mxu0 0
        %4335 = vmatprep.subr.bf16.mxu0 0
        %4336 = vmatpush1.bf16.msra.mxu0 0
        %4337 = vmatprep.subr.bf16.mxu0 0
        %4338 = vmatpush1.bf16.msra.mxu0 0
        %4339 = vmatprep.subr.bf16.mxu0 0
        %4340 = vmatpush1.bf16.msra.mxu0 0
        %4341 = vmatprep.subr.bf16.mxu0 0
        %4342 = vmatpush1.bf16.msra.mxu0 0
        %4343 = vmatprep.subr.bf16.mxu0 0
        %4344 = vmatpush1.bf16.msra.mxu0 0
        %4345 = vmatprep.subr.bf16.mxu0 0
        %4346 = vmatpush1.bf16.msra.mxu0 0
        %4347 = vmatprep.subr.bf16.mxu0 0
        %4348 = vmatpush1.bf16.msra.mxu0 0
        %4349 = vmatprep.subr.bf16.mxu0 0
        %4350 = vmatpush1.bf16.msra.mxu0 0
        %4351 = vmatprep.mubr.bf16.mxu0 0
        %4352 = vmatmul.mubr.bf16.gmra.mrb[0].mxu0 %v4314
        %v4353 = vpop.f32.mrb[0].mxu0
        %v4354 = vadd.f32 0.0, %v4353
        %v4355 = vpop.f32.mrb[0].mxu0
        %v4356 = vpop.f32.mrb[0].mxu0
        %v4357 = vpop.f32.mrb[0].mxu0
        %4358 = vdwg.mxu0
        %v4360 = vsel %vm1765, %v4028, 0
        %v4363 = vsel %vm1769, %v4036, 0
        %4365 = vmatprep.subr.bf16.mxu0 0
        %4366 = vmatpush1.bf16.msra.mxu0 %v4363
        %4367 = vmatprep.subr.bf16.mxu0 0
        %4368 = vmatpush1.bf16.msra.mxu0 0
        %4369 = vmatprep.subr.bf16.mxu0 0
        %4370 = vmatpush1.bf16.msra.mxu0 0
        %4371 = vmatprep.subr.bf16.mxu0 0
        %4372 = vmatpush1.bf16.msra.mxu0 0
        %4373 = vmatprep.subr.bf16.mxu0 0
        %4374 = vmatpush1.bf16.msra.mxu0 0
        %4375 = vmatprep.subr.bf16.mxu0 0
        %4376 = vmatpush1.bf16.msra.mxu0 0
        %4377 = vmatprep.subr.bf16.mxu0 0
        %4378 = vmatpush1.bf16.msra.mxu0 0
        %4379 = vmatprep.subr.bf16.mxu0 0
        %4380 = vmatpush1.bf16.msra.mxu0 0
        %4381 = vmatprep.subr.bf16.mxu0 0
        %4382 = vmatpush1.bf16.msra.mxu0 0
        %4383 = vmatprep.subr.bf16.mxu0 0
        %4384 = vmatpush1.bf16.msra.mxu0 0
        %4385 = vmatprep.subr.bf16.mxu0 0
        %4386 = vmatpush1.bf16.msra.mxu0 0
        %4387 = vmatprep.subr.bf16.mxu0 0
        %4388 = vmatpush1.bf16.msra.mxu0 0
        %4389 = vmatprep.subr.bf16.mxu0 0
        %4390 = vmatpush1.bf16.msra.mxu0 0
        %4391 = vmatprep.subr.bf16.mxu0 0
        %4392 = vmatpush1.bf16.msra.mxu0 0
        %4393 = vmatprep.subr.bf16.mxu0 0
        %4394 = vmatpush1.bf16.msra.mxu0 0
        %4395 = vmatprep.subr.bf16.mxu0 0
        %4396 = vmatpush1.bf16.msra.mxu0 0
        %4397 = vmatprep.mubr.bf16.mxu0 0
        %4398 = vmatmul.mubr.bf16.gmra.mrb[0].mxu0 %v4360
        %v4399 = vpop.f32.mrb[0].mxu0
        %v4400 = vadd.f32 0.0, %v4399
        %v4401 = vpop.f32.mrb[0].mxu0
        %v4402 = vpop.f32.mrb[0].mxu0
        %v4403 = vpop.f32.mrb[0].mxu0
        %4404 = vdwg.mxu0
        %v4406 = vunpack.c.l.s4 1983009808
        %v4407 = vunpack.c.0.s8 %v4406
        %v4408 = vlaneseq
        %v4409 = vshrl.u32 %v4408, 7
        %v4410 = vsub.s32 %v4407, %v4409
        %v4411 = vrot.slane %v4078, %v4410
        %v4413 = vunpack.c.l.s4 1983009808
        %v4414 = vunpack.c.0.s8 %v4413
        %v4415 = vlaneseq
        %v4416 = vshrl.u32 %v4415, 7
        %v4417 = vsub.s32 %v4414, %v4416
        %v4418 = vrot.slane %v4124, %v4417
        %v4419 = vcombine.low %v4411, %v4418
        %v4420 = vcombine.high %v4411, %v4418
        %v4422 = vunpack.c.l.s4 1934713408
        %v4423 = vunpack.c.0.s8 %v4422
        %v4424 = vlaneseq
        %v4425 = vshrl.u32 %v4424, 7
        %v4426 = vsub.s32 %v4423, %v4425
        %v4427 = vrot.slane %v4419, %v4426
        %v4429 = vunpack.c.l.s4 1934713408
        %v4430 = vunpack.c.0.s8 %v4429
        %v4431 = vlaneseq
        %v4432 = vshrl.u32 %v4431, 7
        %v4433 = vsub.s32 %v4430, %v4432
        %v4434 = vrot.slane %v4420, %v4433
        %v4435 = vcombine.high %v4427, 0.0
        %v4436 = vcombine.high %v4434, 0.0
        %v4438 = vunpack.c.l.s4 1983009808
        %v4439 = vunpack.c.0.s8 %v4438
        %v4440 = vlaneseq
        %v4441 = vshrl.u32 %v4440, 7
        %v4442 = vsub.s32 %v4439, %v4441
        %v4443 = vrot.slane %v4170, %v4442
        %v4445 = vunpack.c.l.s4 1983009808
        %v4446 = vunpack.c.0.s8 %v4445
        %v4447 = vlaneseq
        %v4448 = vshrl.u32 %v4447, 7
        %v4449 = vsub.s32 %v4446, %v4448
        %v4450 = vrot.slane %v4216, %v4449
        %v4451 = vcombine.low %v4443, %v4450
        %v4452 = vcombine.high %v4443, %v4450
        %v4454 = vunpack.c.l.s4 1934713408
        %v4455 = vunpack.c.0.s8 %v4454
        %v4456 = vlaneseq
        %v4457 = vshrl.u32 %v4456, 7
        %v4458 = vsub.s32 %v4455, %v4457
        %v4459 = vrot.slane %v4451, %v4458
        %v4461 = vunpack.c.l.s4 1934713408
        %v4462 = vunpack.c.0.s8 %v4461
        %v4463 = vlaneseq
        %v4464 = vshrl.u32 %v4463, 7
        %v4465 = vsub.s32 %v4462, %v4464
        %v4466 = vrot.slane %v4452, %v4465
        %v4467 = vcombine.high %v4459, 0.0
        %v4468 = vcombine.high %v4466, 0.0
        %v4470 = vunpack.c.l.s4 1983009808
        %v4471 = vunpack.c.0.s8 %v4470
        %v4472 = vlaneseq
        %v4473 = vshrl.u32 %v4472, 7
        %v4474 = vsub.s32 %v4471, %v4473
        %v4475 = vrot.slane %v4262, %v4474
        %v4477 = vunpack.c.l.s4 1983009808
        %v4478 = vunpack.c.0.s8 %v4477
        %v4479 = vlaneseq
        %v4480 = vshrl.u32 %v4479, 7
        %v4481 = vsub.s32 %v4478, %v4480
        %v4482 = vrot.slane %v4308, %v4481
        %v4483 = vcombine.low %v4475, %v4482
        %v4484 = vcombine.high %v4475, %v4482
        %v4486 = vunpack.c.l.s4 1934713408
        %v4487 = vunpack.c.0.s8 %v4486
        %v4488 = vlaneseq
        %v4489 = vshrl.u32 %v4488, 7
        %v4490 = vsub.s32 %v4487, %v4489
        %v4491 = vrot.slane %v4483, %v4490
        %v4493 = vunpack.c.l.s4 1934713408
        %v4494 = vunpack.c.0.s8 %v4493
        %v4495 = vlaneseq
        %v4496 = vshrl.u32 %v4495, 7
        %v4497 = vsub.s32 %v4494, %v4496
        %v4498 = vrot.slane %v4484, %v4497
        %v4499 = vcombine.high %v4491, 0.0
        %v4500 = vcombine.high %v4498, 0.0
        %v4502 = vunpack.c.l.s4 1983009808
        %v4503 = vunpack.c.0.s8 %v4502
        %v4504 = vlaneseq
        %v4505 = vshrl.u32 %v4504, 7
        %v4506 = vsub.s32 %v4503, %v4505
        %v4507 = vrot.slane %v4354, %v4506
        %v4509 = vunpack.c.l.s4 1983009808
        %v4510 = vunpack.c.0.s8 %v4509
        %v4511 = vlaneseq
        %v4512 = vshrl.u32 %v4511, 7
        %v4513 = vsub.s32 %v4510, %v4512
        %v4514 = vrot.slane %v4400, %v4513
        %v4515 = vcombine.low %v4507, %v4514
        %v4516 = vcombine.high %v4507, %v4514
        %v4518 = vunpack.c.l.s4 1934713408
        %v4519 = vunpack.c.0.s8 %v4518
        %v4520 = vlaneseq
        %v4521 = vshrl.u32 %v4520, 7
        %v4522 = vsub.s32 %v4519, %v4521
        %v4523 = vrot.slane %v4515, %v4522
        %v4525 = vunpack.c.l.s4 1934713408
        %v4526 = vunpack.c.0.s8 %v4525
        %v4527 = vlaneseq
        %v4528 = vshrl.u32 %v4527, 7
        %v4529 = vsub.s32 %v4526, %v4528
        %v4530 = vrot.slane %v4516, %v4529
        %v4531 = vcombine.high %v4523, 0.0
        %v4532 = vcombine.high %v4530, 0.0
        %v4533 = vcombine.low %v4427, %v4434
        %v4535 = vunpack.c.l.s4 1983009808
        %v4536 = vunpack.c.0.s8 %v4535
        %v4537 = vlaneseq
        %v4538 = vshrl.u32 %v4537, 7
        %v4539 = vsub.s32 %v4536, %v4538
        %v4540 = vrot.slane %v4533, %v4539
        %v4541 = vcombine.low %v4435, %v4436
        %v4543 = vunpack.c.l.s4 1983009808
        %v4544 = vunpack.c.0.s8 %v4543
        %v4545 = vlaneseq
        %v4546 = vshrl.u32 %v4545, 7
        %v4547 = vsub.s32 %v4544, %v4546
        %v4548 = vrot.slane %v4541, %v4547
        %v4549 = vcombine.low %v4459, %v4466
        %v4551 = vunpack.c.l.s4 1983009808
        %v4552 = vunpack.c.0.s8 %v4551
        %v4553 = vlaneseq
        %v4554 = vshrl.u32 %v4553, 7
        %v4555 = vsub.s32 %v4552, %v4554
        %v4556 = vrot.slane %v4549, %v4555
        %v4557 = vcombine.low %v4467, %v4468
        %v4559 = vunpack.c.l.s4 1983009808
        %v4560 = vunpack.c.0.s8 %v4559
        %v4561 = vlaneseq
        %v4562 = vshrl.u32 %v4561, 7
        %v4563 = vsub.s32 %v4560, %v4562
        %v4564 = vrot.slane %v4557, %v4563
        %v4565 = vcombine.low %v4540, %v4548
        %v4567 = vunpack.c.l.s4 1934713408
        %v4568 = vunpack.c.0.s8 %v4567
        %v4569 = vlaneseq
        %v4570 = vshrl.u32 %v4569, 7
        %v4571 = vsub.s32 %v4568, %v4570
        %v4572 = vrot.slane %v4565, %v4571
        %v4573 = vcombine.low %v4556, %v4564
        %v4575 = vunpack.c.l.s4 1934713408
        %v4576 = vunpack.c.0.s8 %v4575
        %v4577 = vlaneseq
        %v4578 = vshrl.u32 %v4577, 7
        %v4579 = vsub.s32 %v4576, %v4578
        %v4580 = vrot.slane %v4573, %v4579
        %v4581 = vcombine.low %v4572, %v4580
        %v4582 = vcombine.high %v4572, %v4580
        %v4583 = vcombine.low %v4491, %v4498
        %v4585 = vunpack.c.l.s4 1983009808
        %v4586 = vunpack.c.0.s8 %v4585
        %v4587 = vlaneseq
        %v4588 = vshrl.u32 %v4587, 7
        %v4589 = vsub.s32 %v4586, %v4588
        %v4590 = vrot.slane %v4583, %v4589
        %v4591 = vcombine.low %v4499, %v4500
        %v4593 = vunpack.c.l.s4 1983009808
        %v4594 = vunpack.c.0.s8 %v4593
        %v4595 = vlaneseq
        %v4596 = vshrl.u32 %v4595, 7
        %v4597 = vsub.s32 %v4594, %v4596
        %v4598 = vrot.slane %v4591, %v4597
        %v4599 = vcombine.low %v4523, %v4530
        %v4601 = vunpack.c.l.s4 1983009808
        %v4602 = vunpack.c.0.s8 %v4601
        %v4603 = vlaneseq
        %v4604 = vshrl.u32 %v4603, 7
        %v4605 = vsub.s32 %v4602, %v4604
        %v4606 = vrot.slane %v4599, %v4605
        %v4607 = vcombine.low %v4531, %v4532
        %v4609 = vunpack.c.l.s4 1983009808
        %v4610 = vunpack.c.0.s8 %v4609
        %v4611 = vlaneseq
        %v4612 = vshrl.u32 %v4611, 7
        %v4613 = vsub.s32 %v4610, %v4612
        %v4614 = vrot.slane %v4607, %v4613
        %v4615 = vcombine.low %v4590, %v4598
        %v4617 = vunpack.c.l.s4 1934713408
        %v4618 = vunpack.c.0.s8 %v4617
        %v4619 = vlaneseq
        %v4620 = vshrl.u32 %v4619, 7
        %v4621 = vsub.s32 %v4618, %v4620
        %v4622 = vrot.slane %v4615, %v4621
        %v4623 = vcombine.low %v4606, %v4614
        %v4625 = vunpack.c.l.s4 1934713408
        %v4626 = vunpack.c.0.s8 %v4625
        %v4627 = vlaneseq
        %v4628 = vshrl.u32 %v4627, 7
        %v4629 = vsub.s32 %v4626, %v4628
        %v4630 = vrot.slane %v4623, %v4629
        %v4631 = vcombine.low %v4622, %v4630
        %v4632 = vcombine.high %v4622, %v4630
        %4635 = vrot.lane.b32.xlu0 %v4582, 16
        %v4636 = vpop.permute.xlu0 %4635
        %4637 = vrot.lane.b32.xlu0 %v4632, 16
        %v4638 = vpop.permute.xlu0 %4637
        %v4641 = vsel %vm1283, %v4581, %v4636
        %v4642 = vsel %vm1283, %v4631, %v4638
        %v4643 = vpack.c.bf16 %v4642, %v4641
        %s4644 = sadd.s32 16, %s2374
        %s4645 = smul.addr %s4644, 4
        %s4646 = scalar_lea.vmem [#allocation6], %s4645
        %v4647 = vld [vmem:[%s4646] sm:$0xf]
        %v4648 = vld [vmem:[%s4646 + $0x4] sm:$0xf]
        %v4649 = vld [vmem:[%s4646 + $0x8] sm:$0xf]
        %v4650 = vld [vmem:[%s4646 + $0xc] sm:$0xf]
        %v4651 = vlaneseq
        %v4652 = vshrl.u32 %v4651, 7
        %v4653 = vsub.s32 0, %v4652
        %v4654 = vrot.slane %v461, %v4653
        %v4659 = vunpack.c.l.b16 %v4647
        %v4660 = vunpack.c.l.b16 %v4648
        %v4661 = vunpack.c.l.b16 %v4649
        %v4662 = vunpack.c.l.b16 %v4650
        %v4663 = vpack.c.b16 %v4660, %v4659
        %v4664 = vpack.c.b16 %v4662, %v4661
        %v4668 = vsel %vm494, %v4643, 0
        %4670 = vmatprep.subr.bf16.mxu0 0
        %4671 = vmatpush1.bf16.msra.mxu0 %v4663
        %4672 = vmatprep.subr.bf16.mxu0 0
        %4673 = vmatpush1.bf16.msra.mxu0 %v4664
        %4674 = vmatprep.subr.bf16.mxu0 0
        %4675 = vmatpush1.bf16.msra.mxu0 0
        %4676 = vmatprep.subr.bf16.mxu0 0
        %4677 = vmatpush1.bf16.msra.mxu0 0
        %4678 = vmatprep.subr.bf16.mxu0 0
        %4679 = vmatpush1.bf16.msra.mxu0 0
        %4680 = vmatprep.subr.bf16.mxu0 0
        %4681 = vmatpush1.bf16.msra.mxu0 0
        %4682 = vmatprep.subr.bf16.mxu0 0
        %4683 = vmatpush1.bf16.msra.mxu0 0
        %4684 = vmatprep.subr.bf16.mxu0 0
        %4685 = vmatpush1.bf16.msra.mxu0 0
        %4686 = vmatprep.subr.bf16.mxu0 0
        %4687 = vmatpush1.bf16.msra.mxu0 0
        %4688 = vmatprep.subr.bf16.mxu0 0
        %4689 = vmatpush1.bf16.msra.mxu0 0
        %4690 = vmatprep.subr.bf16.mxu0 0
        %4691 = vmatpush1.bf16.msra.mxu0 0
        %4692 = vmatprep.subr.bf16.mxu0 0
        %4693 = vmatpush1.bf16.msra.mxu0 0
        %4694 = vmatprep.subr.bf16.mxu0 0
        %4695 = vmatpush1.bf16.msra.mxu0 0
        %4696 = vmatprep.subr.bf16.mxu0 0
        %4697 = vmatpush1.bf16.msra.mxu0 0
        %4698 = vmatprep.subr.bf16.mxu0 0
        %4699 = vmatpush1.bf16.msra.mxu0 0
        %4700 = vmatprep.subr.bf16.mxu0 0
        %4701 = vmatpush1.bf16.msra.mxu0 0
        %4702 = vmatprep.mubr.bf16.mxu0 0
        %4703 = vmatmul.mubr.bf16.gmra.mrb[0].mxu0 %v4668
        %v4704 = vpop.f32.mrb[0].mxu0
        %v4705 = vadd.f32 %v4654, %v4704
        %v4706 = vpop.f32.mrb[0].mxu0
        %v4707 = vpop.f32.mrb[0].mxu0
        %v4708 = vadd.f32 %v4654, %v4707
        %v4709 = vpop.f32.mrb[0].mxu0
        %4710 = vdwg.mxu0
        %v4711 = vadd.f32 %v2674, %v4705
        %v4712 = vadd.f32 %v2675, %v4708
        %v4713 = vsel %vm494, %v4711, 0.0
        %4714 = vadd.xlane.f32.xlu0 %v4713
        %v4715 = vpop.xlane.xlu0 %4714
        %v4716 = vsel %vm494, %v4712, 0.0
        %4717 = vadd.xlane.f32.xlu0 %v4716
        %v4718 = vpop.xlane.xlu0 %4717
        %v4719 = vmul.f32 %v4715, %v2449
        %v4720 = vmul.f32 %v4718, %v2449
        %v4721 = vsub.f32 %v4711, %v4719
        %v4722 = vsub.f32 %v4712, %v4720
        %v4723 = vmul.f32 %v4721, %v4721
        %v4724 = vmul.f32 %v4722, %v4722
        %v4725 = vsel %vm494, %v4723, 0.0
        %4726 = vadd.xlane.f32.xlu0 %v4725
        %v4727 = vpop.xlane.xlu0 %4726
        %v4728 = vsel %vm494, %v4724, 0.0
        %4729 = vadd.xlane.f32.xlu0 %v4728
        %v4730 = vpop.xlane.xlu0 %4729
        %v4731 = vmul.f32 %v4727, %v2449
        %v4732 = vmul.f32 %v4730, %v2449
        %v4733 = vadd.f32 %v4731, 1e-05
        %v4734 = vadd.f32 %v4732, 1e-05
        %v4735 = vrsqrt.pop %v4733
        %v4736 = vrsqrt.pop %v4734
        %v4737 = vmul.f32 %v4721, %v4735
        %v4738 = vmul.f32 %v4722, %v4736
        %v4739 = vlaneseq
        %v4740 = vshrl.u32 %v4739, 7
        %v4741 = vsub.s32 1, %v4740
        %v4742 = vrot.slane %v461, %v4741
        %v4743 = vmul.f32 %v4737, %v4742
        %v4744 = vmul.f32 %v4738, %v4742
        %v4745 = vlaneseq
        %v4746 = vshrl.u32 %v4745, 7
        %v4747 = vsub.s32 2, %v4746
        %v4748 = vrot.slane %v461, %v4747
        %v4749 = vadd.f32 %v4743, %v4748
        %v4750 = vadd.f32 %v4744, %v4748
        %v4751 = vpack.c.bf16 %v4750, %v4749
        %s4752 = sadd.s32 20, %s2374
        %s4753 = smul.addr %s4752, 4
        %s4754 = scalar_lea.vmem [#allocation6], %s4753
        %v4755 = vld [vmem:[%s4754] sm:$0xf]
        %v4756 = vld [vmem:[%s4754 + $0x4] sm:$0xf]
        %v4757 = vld [vmem:[%s4754 + $0x8] sm:$0xf]
        %v4758 = vld [vmem:[%s4754 + $0xc] sm:$0xf]
        %v4759 = vlaneseq
        %v4760 = vshrl.u32 %v4759, 7
        %v4761 = vsub.s32 3, %v4760
        %v4762 = vrot.slane %v461, %v4761
        %v4767 = vunpack.c.l.b16 %v4755
        %v4768 = vunpack.c.l.b16 %v4756
        %v4769 = vunpack.c.l.b16 %v4757
        %v4770 = vunpack.c.l.b16 %v4758
        %v4771 = vpack.c.b16 %v4768, %v4767
        %v4772 = vpack.c.b16 %v4770, %v4769
        %v4776 = vsel %vm494, %v4751, 0
        %4778 = vmatprep.subr.bf16.mxu0 0
        %4779 = vmatpush1.bf16.msra.mxu0 %v4771
        %4780 = vmatprep.subr.bf16.mxu0 0
        %4781 = vmatpush1.bf16.msra.mxu0 %v4772
        %4782 = vmatprep.subr.bf16.mxu0 0
        %4783 = vmatpush1.bf16.msra.mxu0 0
        %4784 = vmatprep.subr.bf16.mxu0 0
        %4785 = vmatpush1.bf16.msra.mxu0 0
        %4786 = vmatprep.subr.bf16.mxu0 0
        %4787 = vmatpush1.bf16.msra.mxu0 0
        %4788 = vmatprep.subr.bf16.mxu0 0
        %4789 = vmatpush1.bf16.msra.mxu0 0
        %4790 = vmatprep.subr.bf16.mxu0 0
        %4791 = vmatpush1.bf16.msra.mxu0 0
        %4792 = vmatprep.subr.bf16.mxu0 0
        %4793 = vmatpush1.bf16.msra.mxu0 0
        %4794 = vmatprep.subr.bf16.mxu0 0
        %4795 = vmatpush1.bf16.msra.mxu0 0
        %4796 = vmatprep.subr.bf16.mxu0 0
        %4797 = vmatpush1.bf16.msra.mxu0 0
        %4798 = vmatprep.subr.bf16.mxu0 0
        %4799 = vmatpush1.bf16.msra.mxu0 0
        %4800 = vmatprep.subr.bf16.mxu0 0
        %4801 = vmatpush1.bf16.msra.mxu0 0
        %4802 = vmatprep.subr.bf16.mxu0 0
        %4803 = vmatpush1.bf16.msra.mxu0 0
        %4804 = vmatprep.subr.bf16.mxu0 0
        %4805 = vmatpush1.bf16.msra.mxu0 0
        %4806 = vmatprep.subr.bf16.mxu0 0
        %4807 = vmatpush1.bf16.msra.mxu0 0
        %4808 = vmatprep.subr.bf16.mxu0 0
        %4809 = vmatpush1.bf16.msra.mxu0 0
        %4810 = vmatprep.mubr.bf16.mxu0 0
        %4811 = vmatmul.mubr.bf16.gmra.mrb[0].mxu0 %v4776
        %v4812 = vpop.f32.mrb[0].mxu0
        %v4813 = vadd.f32 %v4762, %v4812
        %v4814 = vpop.f32.mrb[0].mxu0
        %v4815 = vpop.f32.mrb[0].mxu0
        %v4816 = vadd.f32 %v4762, %v4815
        %v4817 = vpop.f32.mrb[0].mxu0
        %4818 = vdwg.mxu0
        %v4819 = vmul.f32 %v4813, %v4813
        %v4820 = vmul.f32 %v4816, %v4816
        %v4821 = vmul.f32 %v4813, %v4819
        %v4822 = vmul.f32 %v4816, %v4820
        %v4823 = vmul.f32 %v4821, 0.044715
        %v4824 = vmul.f32 %v4822, 0.044715
        %v4825 = vadd.f32 %v4813, %v4823
        %v4826 = vadd.f32 %v4816, %v4824
        %v4827 = vmul.f32 %v4825, 0.7978846
        %v4828 = vmul.f32 %v4826, 0.7978846
        %v4829 = vtanh.pop %v4827
        %v4830 = vtanh.pop %v4828
        %v4831 = vadd.f32 %v4829, 1.0
        %v4832 = vadd.f32 %v4830, 1.0
        %v4833 = vmul.f32 %v4831, 0.5
        %v4834 = vmul.f32 %v4832, 0.5
        %v4835 = vmul.f32 %v4813, %v4833
        %v4836 = vmul.f32 %v4816, %v4834
        %v4837 = vpack.c.bf16 %v4836, %v4835
        %s4838 = sadd.s32 24, %s2374
        %s4839 = smul.addr %s4838, 4
        %s4840 = scalar_lea.vmem [#allocation6], %s4839
        %v4841 = vld [vmem:[%s4840] sm:$0xf]
        %v4842 = vld [vmem:[%s4840 + $0x4] sm:$0xf]
        %v4843 = vld [vmem:[%s4840 + $0x8] sm:$0xf]
        %v4844 = vld [vmem:[%s4840 + $0xc] sm:$0xf]
        %v4845 = vlaneseq
        %v4846 = vshrl.u32 %v4845, 7
        %v4847 = vsub.s32 4, %v4846
        %v4848 = vrot.slane %v461, %v4847
        %v4853 = vunpack.c.l.b16 %v4841
        %v4854 = vunpack.c.l.b16 %v4842
        %v4855 = vunpack.c.l.b16 %v4843
        %v4856 = vunpack.c.l.b16 %v4844
        %v4857 = vpack.c.b16 %v4854, %v4853
        %v4858 = vpack.c.b16 %v4856, %v4855
        %v4862 = vsel %vm494, %v4837, 0
        %4864 = vmatprep.subr.bf16.mxu0 0
        %4865 = vmatpush1.bf16.msra.mxu0 %v4857
        %4866 = vmatprep.subr.bf16.mxu0 0
        %4867 = vmatpush1.bf16.msra.mxu0 %v4858
        %4868 = vmatprep.subr.bf16.mxu0 0
        %4869 = vmatpush1.bf16.msra.mxu0 0
        %4870 = vmatprep.subr.bf16.mxu0 0
        %4871 = vmatpush1.bf16.msra.mxu0 0
        %4872 = vmatprep.subr.bf16.mxu0 0
        %4873 = vmatpush1.bf16.msra.mxu0 0
        %4874 = vmatprep.subr.bf16.mxu0 0
        %4875 = vmatpush1.bf16.msra.mxu0 0
        %4876 = vmatprep.subr.bf16.mxu0 0
        %4877 = vmatpush1.bf16.msra.mxu0 0
        %4878 = vmatprep.subr.bf16.mxu0 0
        %4879 = vmatpush1.bf16.msra.mxu0 0
        %4880 = vmatprep.subr.bf16.mxu0 0
        %4881 = vmatpush1.bf16.msra.mxu0 0
        %4882 = vmatprep.subr.bf16.mxu0 0
        %4883 = vmatpush1.bf16.msra.mxu0 0
        %4884 = vmatprep.subr.bf16.mxu0 0
        %4885 = vmatpush1.bf16.msra.mxu0 0
        %4886 = vmatprep.subr.bf16.mxu0 0
        %4887 = vmatpush1.bf16.msra.mxu0 0
        %4888 = vmatprep.subr.bf16.mxu0 0
        %4889 = vmatpush1.bf16.msra.mxu0 0
        %4890 = vmatprep.subr.bf16.mxu0 0
        %4891 = vmatpush1.bf16.msra.mxu0 0
        %4892 = vmatprep.subr.bf16.mxu0 0
        %4893 = vmatpush1.bf16.msra.mxu0 0
        %4894 = vmatprep.subr.bf16.mxu0 0
        %4895 = vmatpush1.bf16.msra.mxu0 0
        %4896 = vmatprep.mubr.bf16.mxu0 0
        %4897 = vmatmul.mubr.bf16.gmra.mrb[0].mxu0 %v4862
        %v4898 = vpop.f32.mrb[0].mxu0
        %v4899 = vadd.f32 %v4848, %v4898
        %v4900 = vpop.f32.mrb[0].mxu0
        %v4901 = vpop.f32.mrb[0].mxu0
        %v4902 = vadd.f32 %v4848, %v4901
        %v4903 = vpop.f32.mrb[0].mxu0
        %4904 = vdwg.mxu0
        %v4905 = vadd.f32 %v4749, %v4899
        %v4906 = vadd.f32 %v4750, %v4902
        %v4907 = vsel %vm494, %v4905, 0.0
        %4908 = vadd.xlane.f32.xlu0 %v4907
        %v4909 = vpop.xlane.xlu0 %4908
        %v4910 = vsel %vm494, %v4906, 0.0
        %4911 = vadd.xlane.f32.xlu0 %v4910
        %v4912 = vpop.xlane.xlu0 %4911
        %v4913 = vmul.f32 %v4909, %v2449
        %v4914 = vmul.f32 %v4912, %v2449
        %v4915 = vsub.f32 %v4905, %v4913
        %v4916 = vsub.f32 %v4906, %v4914
        %v4917 = vmul.f32 %v4915, %v4915
        %v4918 = vmul.f32 %v4916, %v4916
        %v4919 = vsel %vm494, %v4917, 0.0
        %4920 = vadd.xlane.f32.xlu0 %v4919
        %v4921 = vpop.xlane.xlu0 %4920
        %v4922 = vsel %vm494, %v4918, 0.0
        %4923 = vadd.xlane.f32.xlu0 %v4922
        %v4924 = vpop.xlane.xlu0 %4923
        %v4925 = vmul.f32 %v4921, %v2449
        %v4926 = vmul.f32 %v4924, %v2449
        %v4927 = vadd.f32 %v4925, 1e-05
        %v4928 = vadd.f32 %v4926, 1e-05
        %v4929 = vrsqrt.pop %v4927
        %v4930 = vrsqrt.pop %v4928
        %v4931 = vmul.f32 %v4915, %v4929
        %v4932 = vmul.f32 %v4916, %v4930
        %v4933 = vlaneseq
        %v4934 = vshrl.u32 %v4933, 7
        %v4935 = vsub.s32 5, %v4934
        %v4936 = vrot.slane %v461, %v4935
        %v4937 = vmul.f32 %v4931, %v4936
        %v4938 = vmul.f32 %v4932, %v4936
        %v4939 = vlaneseq
        %v4940 = vshrl.u32 %v4939, 7
        %v4941 = vsub.s32 6, %v4940
        %v4942 = vrot.slane %v461, %v4941
        %v4943 = vadd.f32 %v4937, %v4942
        %v4944 = vadd.f32 %v4938, %v4942
        %v4945 = vpack.c.bf16 %v4944, %v4943
        %s4946 = smul.addr %s469, 4
        %s4947 = scalar_lea.vmem %s8, %s4946
        %v4948 = vld [vmem:[%s4947] sm:$0xf]
        %v4949 = vld [vmem:[%s4947 + $0x4] sm:$0xf]
        %v4950 = vld [vmem:[%s4947 + $0x8] sm:$0xf]
        %v4951 = vld [vmem:[%s4947 + $0xc] sm:$0xf]
        %v4953 = vlaneseq
        %v4954 = vshrl.u32 %v4953, 7
        %v4955 = vsub.s32 0, %v4954
        %v4956 = vrot.slane %v467, %v4955
        %v4962 = vunpack.c.l.b16 %v4948
        %v4963 = vunpack.c.l.b16 %v4949
        %v4964 = vunpack.c.l.b16 %v4950
        %v4965 = vunpack.c.l.b16 %v4951
        %v4966 = vpack.c.b16 %v4963, %v4962
        %v4967 = vpack.c.b16 %v4965, %v4964
        %v4971 = vsel %vm494, %v4945, 0
        %4973 = vmatprep.subr.bf16.mxu0 0
        %4974 = vmatpush1.bf16.msra.mxu0 %v4966
        %4975 = vmatprep.subr.bf16.mxu0 0
        %4976 = vmatpush1.bf16.msra.mxu0 %v4967
        %4977 = vmatprep.subr.bf16.mxu0 0
        %4978 = vmatpush1.bf16.msra.mxu0 0
        %4979 = vmatprep.subr.bf16.mxu0 0
        %4980 = vmatpush1.bf16.msra.mxu0 0
        %4981 = vmatprep.subr.bf16.mxu0 0
        %4982 = vmatpush1.bf16.msra.mxu0 0
        %4983 = vmatprep.subr.bf16.mxu0 0
        %4984 = vmatpush1.bf16.msra.mxu0 0
        %4985 = vmatprep.subr.bf16.mxu0 0
        %4986 = vmatpush1.bf16.msra.mxu0 0
        %4987 = vmatprep.subr.bf16.mxu0 0
        %4988 = vmatpush1.bf16.msra.mxu0 0
        %4989 = vmatprep.subr.bf16.mxu0 0
        %4990 = vmatpush1.bf16.msra.mxu0 0
        %4991 = vmatprep.subr.bf16.mxu0 0
        %4992 = vmatpush1.bf16.msra.mxu0 0
        %4993 = vmatprep.subr.bf16.mxu0 0
        %4994 = vmatpush1.bf16.msra.mxu0 0
        %4995 = vmatprep.subr.bf16.mxu0 0
        %4996 = vmatpush1.bf16.msra.mxu0 0
        %4997 = vmatprep.subr.bf16.mxu0 0
        %4998 = vmatpush1.bf16.msra.mxu0 0
        %4999 = vmatprep.subr.bf16.mxu0 0
        %5000 = vmatpush1.bf16.msra.mxu0 0
        %5001 = vmatprep.subr.bf16.mxu0 0
        %5002 = vmatpush1.bf16.msra.mxu0 0
        %5003 = vmatprep.subr.bf16.mxu0 0
        %5004 = vmatpush1.bf16.msra.mxu0 0
        %5005 = vmatprep.mubr.bf16.mxu0 0
        %5006 = vmatmul.mubr.bf16.gmra.mrb[0].mxu0 %v4971
        %v5007 = vpop.f32.mrb[0].mxu0
        %v5008 = vadd.f32 %v4956, %v5007
        %v5009 = vpop.f32.mrb[0].mxu0
        %v5010 = vpop.f32.mrb[0].mxu0
        %v5011 = vadd.f32 %v4956, %v5010
        %v5012 = vpop.f32.mrb[0].mxu0
        %5013 = vdwg.mxu0
        %5014 = vst.msk [vmem:[#allocation2] sm:$0xff] %vm494, %v4943
        %5015 = vst.msk [vmem:[#allocation2 + $0x8] sm:$0xff] %vm494, %v4944
        %v5016 = vld [vmem:[#allocation3] sm:$0xff]
        %v5017 = vld [vmem:[#allocation3 + $0x8] sm:$0xff]
        %v5018 = vadd.f32 %v5016, %v5008
        %v5019 = vadd.f32 %v5017, %v5011
        %vm5020 = vcmask 64512
        %5021 = vst.msk [vmem:[#allocation3] sm:$0xff] %vm5020, %v5018
        %5022 = vst.msk [vmem:[#allocation3 + $0x8] sm:$0xff] %vm5020, %v5019
        %p5023 = scmp.eq.s32.totalorder %s28, 1
        // Predicated region
        $region73: #{tpu_custom_call.1} parent=59 // pred_check
          %p5024 = pneg %p5023
        $region74: #{tpu_custom_call.1} parent=59 // pred_check_branch
          %5026 = sbr.rel (%p5024) target = $region76
        $region75: #{tpu_custom_call.1} parent=59 // pred_region
          %v5027 = vld [vmem:[#allocation3] sm:$0xff]
          %v5028 = vld [vmem:[#allocation3 + $0x8] sm:$0xff]
          %5029 = vst.msk [vmem:[%s439] sm:$0xff] %vm5020, %v5027
          %5030 = vst.msk [vmem:[%s439 + $0x8] sm:$0xff] %vm5020, %v5028
        $region76: #{tpu_custom_call.1} parent=59 // pred_fallthru
          _
        %s5031 = smul.u32 2, %s27
        %p5032 = scmp.lt.s32.totalorder %s5031, 3
        %s5033 = scalar_select %p5032, %s5031, 3
        %s5034 = smul.addr %s5033, 8
        %s5035 = scalar_lea.vmem %s10, %s5034
        // Predicated region
        $region77: #{tpu_custom_call.1} parent=59 // pred_check
          %p5036 = pneg %p275
        $region78: #{tpu_custom_call.1} parent=59 // pred_check_branch
          %5038 = sbr.rel (%p5036) target = $region80
        $region79: #{tpu_custom_call.1} parent=59 // pred_region
          %s5039 = smul.u32 2, %s27
        $region80: #{tpu_custom_call.1} parent=59 // pred_fallthru
          _
      $region60: #{tpu_custom_call.1} parent=5 // pred_fallthru
        _
      %p5040 = scmp.le.s32.totalorder 2, %s18
      // Predicated region
      $region81: #{tpu_custom_call.1} parent=5 // pred_check
        %p5041 = pneg %p5040
      $region82: #{tpu_custom_call.1} parent=5 // pred_check_branch
        %5043 = sbr.rel (%p5041) target = $region84
      $region83: #{tpu_custom_call.1} parent=5 // pred_region
        %s5044 = ssub.s32 %s18, 2
        // Predicated region
        $region85: #{tpu_custom_call.1} parent=83 // pred_check
          %p5045 = pneg %p281
        $region86: #{tpu_custom_call.1} parent=83 // pred_check_branch
          %5047 = sbr.rel (%p5045) target = $region88
        $region87: #{tpu_custom_call.1} parent=83 // pred_region
          %s5048 = smul.u32 2, %s29
          %p5049 = scmp.lt.s32.totalorder %s5048, 3
          %s5050 = scalar_select %p5049, %s5048, 3
          %s5051 = smul.addr %s5050, 8
          %s5052 = scalar_lea.vmem %s10, %s5051
        $region88: #{tpu_custom_call.1} parent=83 // pred_fallthru
          _
      $region84: #{tpu_custom_call.1} parent=5 // pred_fallthru
        _
    $region6: #{tpu_custom_call.1} parent=1 // loop_footer
      %s22 = sadd.s32 1, %s18
    $region7: #{tpu_custom_call.1} parent=1 // loop_footer_branch
      %17 = sbr.rel target = $region3
    $region8: #{tpu_custom_call.1} parent=1 // loop_exit
      _
    %5053 = vsyncpa [#allocation5], 1
    %s5054 = scalar_lea.sflag [#allocation5], 1
    %5055 = vsyncpa %s5054, 1
    %5056 = vsyncpa [#allocation7], 1

</llo_original>
